<compile_context>
chip_gen: v7x
topology: tpu7x:2x2x1
jax: 0.10.0
libtpu: 0.0.40
codegen_flags: <defaults>
</compile_context>

<pallas_src>
import jax
import jax.numpy as jnp
from jax.experimental import pallas as pl
from jax.experimental.pallas import tpu as pltpu

_NEG_SLOPE = 0.2
_BN_EPS = 1e-5
_LAYER_DIMS = ((1, 128), (128, 256), (256, 512), (512, 1024))
_HAS_BN = (False, True, True, True)

# Per-layer (tm_cap, tn_cap, tk_cap), keyed by Cout.  Chosen so every layer is
# 2 grid steps with one parallel axis of extent 2 (v7x megacore) and per-step
# VMEM stays well under 32-48 MiB (v7x-safe).
_TILE_CAPS = {
    128:  (1024, 128, 128),
    256:  (256, 256, 2048),
    512:  (128, 256, 4096),
    1024: (32, 512, 8192),
}
_DEFAULT_CAPS = (256, 256, 2048)


def _pick_tile(dim, cap, align):
    """Largest legal block extent <= cap: divides dim and is align-aligned
    (or equals the full dim, which is always legal)."""
    if dim <= cap:
        return dim
    t = (cap // align) * align
    while t >= align:
        if dim % t == 0:
            return t
        t -= align
    return dim


# ---------------------------------------------------------------------------
# Kernel 1: fused im2col-matmul + (bias/BN folded) scale-shift + LeakyReLU
# ---------------------------------------------------------------------------
def _conv_mm_kernel(p_ref, w_ref, ss_ref, o_ref, acc_ref):
    """One grid step of y = LeakyReLU((P @ W) * scale + shift).

    p_ref:  (tm, tk)  bf16 im2col patch tile
    w_ref:  (tk, tn)  bf16 weight tile
    ss_ref: (2, tn)   f32 packed [scale; shift]
    o_ref:  (tm, tn)  bf16 output tile
    acc_ref:(tm, tn)  f32 accumulator scratch (resident across the K axis)
    """
    @pl.when(pl.program_id(2) == 0)
    def _():
        acc_ref[...] = jnp.zeros_like(acc_ref)

    acc_ref[...] += jnp.dot(p_ref[...], w_ref[...],
                            preferred_element_type=jnp.float32)

    @pl.when(pl.program_id(2) == pl.num_programs(2) - 1)
    def _():
        h = acc_ref[...] * ss_ref[0:1, :] + ss_ref[1:2, :]
        o_ref[...] = jnp.maximum(h, _NEG_SLOPE * h).astype(o_ref.dtype)


def _conv_bn_lrelu(patches, w_mat, ss, *, tm_cap, tn_cap, tk_cap):
    """patches: (M, K) bf16; w_mat: (K, N) bf16; ss: (2, N) f32 -> (M, N) bf16."""
    M, K = patches.shape
    K2, N = w_mat.shape
    assert K == K2
    tm = _pick_tile(M, tm_cap, 8)
    tn = _pick_tile(N, tn_cap, 128)
    tk = _pick_tile(K, tk_cap, 128)
    grid = (M // tm, N // tn, K // tk)   # reduction axis (K) last

    return pl.pallas_call(
        _conv_mm_kernel,
        out_shape=jax.ShapeDtypeStruct((M, N), jnp.bfloat16),
        grid_spec=pltpu.PrefetchScalarGridSpec(
            num_scalar_prefetch=0,
            grid=grid,
            in_specs=[
                pl.BlockSpec((tm, tk), lambda i, j, k: (i, k)),   # patches
                pl.BlockSpec((tk, tn), lambda i, j, k: (k, j)),   # weights
                pl.BlockSpec((2, tn), lambda i, j, k: (0, j)),    # scale+shift
            ],
            out_specs=pl.BlockSpec((tm, tn), lambda i, j, k: (i, j)),
            scratch_shapes=[pltpu.VMEM((tm, tn), jnp.float32)],
        ),
        compiler_params=pltpu.CompilerParams(
            dimension_semantics=("parallel", "parallel", "arbitrary"),
            vmem_limit_bytes=48 * 1024 * 1024,   # v7x-safe (<64 MiB physical)
        ),
        cost_estimate=pl.CostEstimate(
            flops=2 * M * N * K,
            transcendentals=0,
            bytes_accessed=2 * (M * K + K * N + M * N) + 4 * 2 * N,
        ),
    )(patches, w_mat, ss)


# ---------------------------------------------------------------------------
# Kernel 2: Linear(F, 1) + Sigmoid, one step, VPU multiply + lane reduction
# ---------------------------------------------------------------------------
def _head_kernel(x_ref, w_ref, b_ref, o_ref):
    """x_ref: (B, F) bf16; w_ref: (1, F) f32; b_ref: (1,1); o_ref: (B, 1)."""
    x = x_ref[...].astype(jnp.float32)
    logits = jnp.sum(x * w_ref[...], axis=-1, keepdims=True) + b_ref[...]
    o_ref[...] = 1.0 / (1.0 + jnp.exp(-logits))


def _fc_sigmoid(flat, w_fc, b_fc):
    """flat: (B, F) bf16; w_fc: (F,) f32; b_fc: () -> (B, 1) f32.

    Single grid step (F=16384 fits trivially in VMEM).  Output is (B, 1):
    lane-sparse, acceptable for tiny B; emit lane-dense/transposed if B grows.
    """
    B, F = flat.shape
    return pl.pallas_call(
        _head_kernel,
        out_shape=jax.ShapeDtypeStruct((B, 1), jnp.float32),
        grid_spec=pltpu.PrefetchScalarGridSpec(
            num_scalar_prefetch=0,
            grid=(1,),
            in_specs=[
                pl.BlockSpec((B, F), lambda k: (0, 0)),   # activations
                pl.BlockSpec((1, F), lambda k: (0, 0)),   # fc weight row
                pl.BlockSpec((1, 1), lambda k: (0, 0)),   # bias
            ],
            out_specs=pl.BlockSpec((B, 1), lambda k: (0, 0)),
        ),
        compiler_params=pltpu.CompilerParams(
            dimension_semantics=("arbitrary",),
            vmem_limit_bytes=32 * 1024 * 1024,
        ),
    )(flat, w_fc.reshape(1, F), jnp.reshape(b_fc, (1, 1)))


# ---------------------------------------------------------------------------
# Wrapper: im2col + layer plumbing (pure layout ops; all compute is in Pallas)
# ---------------------------------------------------------------------------
def _extract_patches_4x4_s2(x):
    """x: (B, H, W, C) -> (B, H//2, W//2, 16*C) patches for k=4, s=2, p=1.

    Feature ordering is (kh, kw, c), matching w_hwio.reshape(16*C, Cout).
    """
    B, H, W, C = x.shape
    Ho, Wo = H // 2, W // 2
    xp = jnp.pad(x, ((0, 0), (1, 1), (1, 1), (0, 0)))
    cols = []
    for kh in range(4):
        for kw in range(4):
            cols.append(xp[:, kh:kh + 2 * Ho:2, kw:kw + 2 * Wo:2, :])
    return jnp.concatenate(cols, axis=-1)


def specgan_discriminator_forward(x_nchw, params):
    conv_params, (w_fc, b_fc) = params
    # NCHW -> NHWC so channels ride the lane axis; bf16 activations.
    h = jnp.transpose(x_nchw, (0, 2, 3, 1)).astype(jnp.bfloat16)

    for p in conv_params:
        B, H, W, Cin = h.shape
        Ho, Wo = H // 2, W // 2
        Cout = p["w_hwio"].shape[-1]
        patches = _extract_patches_4x4_s2(h).reshape(B * Ho * Wo, 16 * Cin)
        w_mat = p["w_hwio"].reshape(16 * Cin, Cout).astype(jnp.bfloat16)

        # Pad K up to a lane-dense multiple of 128 (only layer 1: 16 -> 128);
        # zero rows contribute nothing and make patch loads unmasked.
        K = patches.shape[1]
        if K % 128 != 0:
            Kp = ((K + 127) // 128) * 128
            patches = jnp.pad(patches, ((0, 0), (0, Kp - K)))
            w_mat = jnp.pad(w_mat, ((0, Kp - K), (0, 0)))

        tm_cap, tn_cap, tk_cap = _TILE_CAPS.get(Cout, _DEFAULT_CAPS)
        out2d = _conv_bn_lrelu(patches, w_mat, p["ss"],
                               tm_cap=tm_cap, tn_cap=tn_cap, tk_cap=tk_cap)
        h = out2d.reshape(B, Ho, Wo, Cout)

    flat = h.reshape(h.shape[0], -1)          # NHWC flatten order (see note)
    return _fc_sigmoid(flat, w_fc, b_fc)


# ---------------------------------------------------------------------------
# Parameters (synthetic, deterministic) and pure-JAX reference
# ---------------------------------------------------------------------------
def init_params(key):
    conv_params = []
    for (cin, cout), bn in zip(_LAYER_DIMS, _HAS_BN):
        key, k_w, k_b, k_g, k_be, k_m, k_v = jax.random.split(key, 7)
        fan_in = 16 * cin
        w = jax.random.normal(k_w, (4, 4, cin, cout), jnp.float32) / jnp.sqrt(fan_in)
        b = 0.05 * jax.random.normal(k_b, (cout,), jnp.float32)
        if bn:
            gamma = 1.0 + 0.1 * jax.random.normal(k_g, (cout,), jnp.float32)
            beta = 0.1 * jax.random.normal(k_be, (cout,), jnp.float32)
            mean = 0.1 * jax.random.normal(k_m, (cout,), jnp.float32)
            var = jax.random.uniform(k_v, (cout,), jnp.float32, 0.5, 1.5)
            inv_std = gamma / jnp.sqrt(var + _BN_EPS)
            scale = inv_std
            shift = (b - mean) * inv_std + beta       # conv bias folded in
        else:
            gamma = jnp.ones((cout,), jnp.float32)
            beta = jnp.zeros((cout,), jnp.float32)
            mean = jnp.zeros((cout,), jnp.float32)
            var = jnp.ones((cout,), jnp.float32)
            scale = jnp.ones((cout,), jnp.float32)
            shift = b
        conv_params.append(dict(
            w_hwio=w, b=b, gamma=gamma, beta=beta, mean=mean, var=var,
            ss=jnp.stack([scale, shift], axis=0)))    # (2, cout) packed

    key, k_fw, k_fb = jax.random.split(key, 3)
    F = 1024 * 4 * 4
    w_fc = jax.random.normal(k_fw, (F,), jnp.float32) / jnp.sqrt(F)
    b_fc = 0.05 * jax.random.normal(k_fb, (), jnp.float32)
    return conv_params, (w_fc, b_fc)


def reference_forward(x_nchw, params):
    conv_params, (w_fc, b_fc) = params
    h = jnp.transpose(x_nchw, (0, 2, 3, 1)).astype(jnp.float32)
    for p, bn in zip(conv_params, _HAS_BN):
        h = jax.lax.conv_general_dilated(
            h, p["w_hwio"], window_strides=(2, 2), padding=((1, 1), (1, 1)),
            dimension_numbers=("NHWC", "HWIO", "NHWC"),
            precision=jax.lax.Precision.HIGHEST)
        h = h + p["b"]
        if bn:
            h = (h - p["mean"]) * (p["gamma"] / jnp.sqrt(p["var"] + _BN_EPS)) + p["beta"]
        h = jnp.where(h >= 0.0, h, _NEG_SLOPE * h)
    flat = h.reshape(h.shape[0], -1)
    logits = jnp.matmul(flat, w_fc.reshape(-1, 1),
                        precision=jax.lax.Precision.HIGHEST) + b_fc
    return jax.nn.sigmoid(logits)


if __name__ == "__main__":
    key = jax.random.PRNGKey(0)
    k_x, k_p = jax.random.split(key)

    # (N, C, H, W) = (2, 1, 64, 64): the Linear(1024*4*4, 1) head fixes the
    # spatial size at 64x64 (64 -> 32 -> 16 -> 8 -> 4 over the four s=2 convs).
    x = jax.random.normal(k_x, (2, 1, 64, 64), jnp.float32)
    params = init_params(k_p)

    out = specgan_discriminator_forward(x, params)
    out = jax.block_until_ready(out)

    ref = reference_forward(x, params)
    assert out.shape == (2, 1), out.shape
    assert bool(jnp.all(jnp.isfinite(out)))
    # bf16 operands (f32 accumulation) vs a pure-f32 reference.
    assert jnp.allclose(out, ref, atol=2e-2, rtol=2e-2), (out, ref)

    print("KERNEL_OK")
</pallas_src>

<mosaic_0001>
module attributes {stable_mosaic.version = 11 : i64} {
  func.func @_conv_mm_kernel(%arg0: i32, %arg1: i32, %arg2: i32, %arg3: memref<1024x128xbf16, #tpu.memory_space<vmem>>, %arg4: memref<128x128xbf16, #tpu.memory_space<vmem>>, %arg5: memref<2x128xf32, #tpu.memory_space<vmem>>, %arg6: memref<1024x128xbf16, #tpu.memory_space<vmem>>, %arg7: memref<1024x128xf32, #tpu.memory_space<vmem>>) attributes {dimension_semantics = [#tpu.dimension_semantics<parallel>, #tpu.dimension_semantics<parallel>, #tpu.dimension_semantics<arbitrary>], iteration_bounds = array<i64: 2, 1, 1>, scalar_prefetch = 0 : i64, scratch_operands = 1 : i64, tpu.core_type = #tpu.core_type<tc>, window_params = [{transform_indices = @transform_0, window_bounds = array<i64: 1024, 128>}, {transform_indices = @transform_1, window_bounds = array<i64: 128, 128>}, {transform_indices = @transform_2, window_bounds = array<i64: 2, 128>}, {transform_indices = @transform_3, window_bounds = array<i64: 1024, 128>}]} {
    %c0_i32 = arith.constant 0 : i32
    %0 = arith.cmpi eq, %arg2, %c0_i32 : i32
    %1 = arith.extui %0 : i1 to i32
    %c0_i32_0 = arith.constant 0 : i32
    %2 = arith.cmpi ne, %1, %c0_i32_0 : i32
    scf.if %2 {
      %cst_10 = arith.constant 0.000000e+00 : f32
      %12 = vector.broadcast %cst_10 : f32 to vector<1024x128xf32>
      %c0_11 = arith.constant 0 : index
      %c0_12 = arith.constant 0 : index
      %13 = vector.load %arg7[%c0_11, %c0_12] : memref<1024x128xf32, #tpu.memory_space<vmem>>, vector<1024x128xf32>
      tpu.vector_store %arg7[%c0_11, %c0_12], %12 {strides = array<i32>} : memref<1024x128xf32, #tpu.memory_space<vmem>>, vector<1024x128xf32>,
    } else {
    }
    %c0 = arith.constant 0 : index
    %c0_1 = arith.constant 0 : index
    %3 = vector.load %arg7[%c0, %c0_1] : memref<1024x128xf32, #tpu.memory_space<vmem>>, vector<1024x128xf32>
    %c0_2 = arith.constant 0 : index
    %c0_3 = arith.constant 0 : index
    %4 = vector.load %arg3[%c0_2, %c0_3] : memref<1024x128xbf16, #tpu.memory_space<vmem>>, vector<1024x128xbf16>
    %c0_4 = arith.constant 0 : index
    %c0_5 = arith.constant 0 : index
    %5 = vector.load %arg4[%c0_4, %c0_5] : memref<128x128xbf16, #tpu.memory_space<vmem>>, vector<128x128xbf16>
    %cst = arith.constant dense<0.000000e+00> : vector<1024x128xf32>
    %6 = tpu.matmul %4, %5, %cst {dimension_numbers = #tpu.dot_dimension_numbers<[1], [0], [0], [1], [0, 0, 1, 1], [], []>} : vector<1024x128xbf16>, vector<128x128xbf16>, vector<1024x128xf32> -> vector<1024x128xf32>
    %7 = arith.addf %3, %6 : vector<1024x128xf32>
    %c0_6 = arith.constant 0 : index
    %c0_7 = arith.constant 0 : index
    %8 = vector.load %arg7[%c0_6, %c0_7] : memref<1024x128xf32, #tpu.memory_space<vmem>>, vector<1024x128xf32>
    tpu.vector_store %arg7[%c0_6, %c0_7], %7 {strides = array<i32>} : memref<1024x128xf32, #tpu.memory_space<vmem>>, vector<1024x128xf32>,
    %c0_i32_8 = arith.constant 0 : i32
    %9 = arith.cmpi eq, %arg2, %c0_i32_8 : i32
    %10 = arith.extui %9 : i1 to i32
    %c0_i32_9 = arith.constant 0 : i32
    %11 = arith.cmpi ne, %10, %c0_i32_9 : i32
    scf.if %11 {
      %c0_10 = arith.constant 0 : index
      %c0_11 = arith.constant 0 : index
      %12 = vector.load %arg7[%c0_10, %c0_11] : memref<1024x128xf32, #tpu.memory_space<vmem>>, vector<1024x128xf32>
      %c0_12 = arith.constant 0 : index
      %c0_13 = arith.constant 0 : index
      %13 = vector.load %arg5[%c0_12, %c0_13] : memref<2x128xf32, #tpu.memory_space<vmem>>, vector<1x128xf32>
      %14 = vector.broadcast %13 : vector<1x128xf32> to vector<1024x128xf32>
      %15 = arith.mulf %12, %14 : vector<1024x128xf32>
      %c1 = arith.constant 1 : index
      %c0_14 = arith.constant 0 : index
      %16 = vector.load %arg5[%c1, %c0_14] : memref<2x128xf32, #tpu.memory_space<vmem>>, vector<1x128xf32>
      %17 = vector.broadcast %16 : vector<1x128xf32> to vector<1024x128xf32>
      %18 = arith.addf %15, %17 : vector<1024x128xf32>
      %cst_15 = arith.constant 2.000000e-01 : f32
      %19 = vector.broadcast %cst_15 : f32 to vector<1024x128xf32>
      %20 = arith.mulf %19, %18 : vector<1024x128xf32>
      %21 = arith.maximumf %18, %20 : vector<1024x128xf32>
      %22 = arith.truncf %21 : vector<1024x128xf32> to vector<1024x128xbf16>
      %c0_16 = arith.constant 0 : index
      %c0_17 = arith.constant 0 : index
      %23 = vector.load %arg6[%c0_16, %c0_17] : memref<1024x128xbf16, #tpu.memory_space<vmem>>, vector<1024x128xbf16>
      tpu.vector_store %arg6[%c0_16, %c0_17], %22 {strides = array<i32>} : memref<1024x128xbf16, #tpu.memory_space<vmem>>, vector<1024x128xbf16>,
    } else {
    }
    return
  }
  func.func @transform_0(%arg0: i32, %arg1: i32, %arg2: i32) -> (i32, i32) {
    %c0_i32 = arith.constant 0 : i32
    return %arg0, %arg2 : i32, i32
  }
  func.func @transform_1(%arg0: i32, %arg1: i32, %arg2: i32) -> (i32, i32) {
    %c0_i32 = arith.constant 0 : i32
    return %arg2, %arg1 : i32, i32
  }
  func.func @transform_2(%arg0: i32, %arg1: i32, %arg2: i32) -> (i32, i32) {
    %c0_i32 = arith.constant 0 : i32
    %c0_i32_0 = arith.constant 0 : i32
    return %c0_i32, %arg1 : i32, i32
  }
  func.func @transform_3(%arg0: i32, %arg1: i32, %arg2: i32) -> (i32, i32) {
    %c0_i32 = arith.constant 0 : i32
    return %arg0, %arg1 : i32, i32
  }
}

</mosaic_0001>

<llo_original>
// kernel: tpu_custom_call.1
$region0: #{tpu_custom_call.1}
  #allocation0 [shape = 'u32[]', space=smem, size = 0x4, offset = 0x4, fixed_abs, tag = 'smem constant byte address 0x4 - core index']
  #allocation1 [shape = 'u32[144,128]{1,0:T(1,128)}', space=vmem, size = 0x12000, scoped, tag = 'internal scratch']
  #allocation2 [shape = 'f32[1024,128]{1,0:T(8,128)}', space=vmem, size = 0x80000, scoped, tag = 'scratch operand']
  %s0 = inlined_call_operand.hbm [shape: bf16[2048,128], index: 0, kind: input, shape index: {}]
  %s1 = inlined_call_operand.hbm [shape: bf16[128,128], index: 1, kind: input, shape index: {}]
  %s2 = inlined_call_operand.vmem [shape: f32[2,128], index: 2, kind: input, shape index: {}]
  %s3 = inlined_call_operand.hbm [shape: bf16[2048,128], index: 3, kind: output, shape index: {}]
  %s4 = sld [smem:[#allocation0]]
  $region61: #{tpu_custom_call.1} parent=0
    _
  %s6 = ssub.s32 1, %s4
  %s7 = scalar_select 0, %s6, %s4
  $region1: #{tpu_custom_call.1} parent=0
    #allocation3 [shape = 'u8[524288]{0}', space=vmem, size = 0x80000, scoped, tag = 'input window, operand 0']
    #allocation4 [shape = 's32[2]{0}', space=sflag, size = 0x8, scoped, tag = 'scoped memory for tpu_custom_call.1']
    #allocation5 [shape = 's32[2]{0}', space=sflag, size = 0x8, scoped, tag = 'scoped memory for tpu_custom_call.1']
    #allocation6 [shape = 'u8[32768]{0}', space=vmem, size = 0x8000, scoped, tag = 'input window, operand 1, single buffered']
    #allocation7 [shape = 's32[1]{0}', space=sflag, size = 0x4, scoped, tag = 'scoped memory for tpu_custom_call.1']
    #allocation8 [shape = 'u8[524288]{0}', space=vmem, size = 0x80000, scoped, tag = 'output window, operand 0']
    %8 = vsyncpa [#allocation4], 0
    %s9 = scalar_lea.sflag [#allocation4], 1
    %10 = vsyncpa %s9, 0
    %11 = vsyncpa [#allocation7], 0
    %12 = vsyncpa [#allocation5], 0
    %s13 = scalar_lea.sflag [#allocation5], 1
    %14 = vsyncpa %s13, 0
    loop: start=0, step=1, limit=4
    $region2: #{tpu_custom_call.1} parent=1 // loop_pre_header
      _
    $region3: #{tpu_custom_call.1} parent=1 // loop_header
      %s16 = sphi 0, %s20
      %p17 = scmp.ge.s32.totalorder %s16, 4
      %s23 = sphi 0, %s42
      %s24 = sphi 0, %s38
      %s25 = sphi 0, %s34
      %s26 = sphi 0, %s23
      %s27 = sphi 0, %s24
      %s28 = sphi 0, %s25
      %s29 = sphi 0, %s26
      %s30 = sphi 0, %s27
      %s31 = sphi 0, %s28
      %s47 = sphi 0, %s49
      %s50 = sphi 0, %s47
      %s51 = sphi 0, %s50
      %s67 = sphi 0, %s51
      %s75 = sphi 0, %s77
      %s78 = sphi 0, %s75
      %s79 = sphi 0, %s78
      %s95 = sphi 0, %s79
      %s101 = sphi 0, %s103
      %s104 = sphi 0, %s101
      %s105 = sphi 0, %s104
      %s121 = sphi 0, %s105
      %s129 = sphi 0, %s131
      %s132 = sphi 0, %s129
      %s133 = sphi 0, %s132
      %s149 = sphi 0, %s133
    $region4: #{tpu_custom_call.1} parent=1 // loop_header_branch
      %19 = sbr.rel (%p17) target = $region8
    $region5: #{tpu_custom_call.1} parent=1 // loop_body
      %s21 = ssub.s32 %s16, 1
      %s22 = ssub.s32 %s16, 2
      %s32 = sadd.s32 1, %s25
      %p33 = scmp.ge.s32.totalorder %s32, 1
      %s34 = scalar_select %p33, 0, %s32
      %s35 = sadd.s32 1, %s24
      %s36 = scalar_select %p33, %s35, %s24
      %p37 = scmp.ge.s32.totalorder %s36, 1
      %s38 = scalar_select %p37, 0, %s36
      %s39 = sadd.s32 1, %s23
      %s40 = scalar_select %p37, %s39, %s23
      %p41 = scmp.ge.s32.totalorder %s40, 2
      %s42 = scalar_select %p41, 0, %s40
      %s43 = ssub.s32 %s23, %s42
      %s44 = ssub.s32 %s25, %s34
      %s45 = sor.u32 %s43, %s44
      %p46 = scmp.eq.s32.totalorder %s45, 0
      %s48 = sadd.s32 %s47, 1
      %s49 = scalar_select %p46, %s47, %s48
      %p52 = pneg %p46
      %p53 = scmp.eq.s32.totalorder %s16, 1
      %p54 = por %p52, %p53
      %p55 = scmp.ne.s32.totalorder %s47, %s50
      %p56 = scmp.eq.s32.totalorder %s16, 0
      %p57 = por %p55, %p56
      %p58 = scmp.ne.s32.totalorder %s47, %s50
      %p59 = scmp.eq.s32.totalorder %s21, 1
      %p60 = por %p58, %p59
      %p61 = scmp.ne.s32.totalorder %s50, %s51
      %p62 = scmp.eq.s32.totalorder %s21, 0
      %p63 = por %p61, %p62
      %p64 = scmp.ne.s32.totalorder %s50, %s51
      %p65 = scmp.eq.s32.totalorder %s22, 1
      %p66 = por %p64, %p65
      %p68 = scmp.ne.s32.totalorder %s51, %s67
      %p69 = scmp.eq.s32.totalorder %s22, 0
      %p70 = por %p68, %p69
      %s71 = ssub.s32 %s25, %s34
      %s72 = ssub.s32 %s24, %s38
      %s73 = sor.u32 %s71, %s72
      %p74 = scmp.eq.s32.totalorder %s73, 0
      %s76 = sadd.s32 %s75, 1
      %s77 = scalar_select %p74, %s75, %s76
      %p80 = pneg %p74
      %p81 = scmp.eq.s32.totalorder %s16, 1
      %p82 = por %p80, %p81
      %p83 = scmp.ne.s32.totalorder %s75, %s78
      %p84 = scmp.eq.s32.totalorder %s16, 0
      %p85 = por %p83, %p84
      %p86 = scmp.ne.s32.totalorder %s75, %s78
      %p87 = scmp.eq.s32.totalorder %s21, 1
      %p88 = por %p86, %p87
      %p89 = scmp.ne.s32.totalorder %s78, %s79
      %p90 = scmp.eq.s32.totalorder %s21, 0
      %p91 = por %p89, %p90
      %p92 = scmp.ne.s32.totalorder %s78, %s79
      %p93 = scmp.eq.s32.totalorder %s22, 1
      %p94 = por %p92, %p93
      %p96 = scmp.ne.s32.totalorder %s79, %s95
      %p97 = scmp.eq.s32.totalorder %s22, 0
      %p98 = por %p96, %p97
      %s99 = ssub.s32 %s24, %s38
      %p100 = scmp.eq.s32.totalorder %s99, 0
      %s102 = sadd.s32 %s101, 1
      %s103 = scalar_select %p100, %s101, %s102
      %p106 = pneg %p100
      %p107 = scmp.eq.s32.totalorder %s16, 1
      %p108 = por %p106, %p107
      %p109 = scmp.ne.s32.totalorder %s101, %s104
      %p110 = scmp.eq.s32.totalorder %s16, 0
      %p111 = por %p109, %p110
      %p112 = scmp.ne.s32.totalorder %s101, %s104
      %p113 = scmp.eq.s32.totalorder %s21, 1
      %p114 = por %p112, %p113
      %p115 = scmp.ne.s32.totalorder %s104, %s105
      %p116 = scmp.eq.s32.totalorder %s21, 0
      %p117 = por %p115, %p116
      %p118 = scmp.ne.s32.totalorder %s104, %s105
      %p119 = scmp.eq.s32.totalorder %s22, 1
      %p120 = por %p118, %p119
      %p122 = scmp.ne.s32.totalorder %s105, %s121
      %p123 = scmp.eq.s32.totalorder %s22, 0
      %p124 = por %p122, %p123
      %s125 = ssub.s32 %s23, %s42
      %s126 = ssub.s32 %s24, %s38
      %s127 = sor.u32 %s125, %s126
      %p128 = scmp.eq.s32.totalorder %s127, 0
      %s130 = sadd.s32 %s129, 1
      %s131 = scalar_select %p128, %s129, %s130
      %p134 = pneg %p128
      %p135 = scmp.eq.s32.totalorder %s16, 1
      %p136 = por %p134, %p135
      %p137 = scmp.ne.s32.totalorder %s129, %s132
      %p138 = scmp.eq.s32.totalorder %s16, 0
      %p139 = por %p137, %p138
      %p140 = scmp.ne.s32.totalorder %s129, %s132
      %p141 = scmp.eq.s32.totalorder %s21, 1
      %p142 = por %p140, %p141
      %p143 = scmp.ne.s32.totalorder %s132, %s133
      %p144 = scmp.eq.s32.totalorder %s21, 0
      %p145 = por %p143, %p144
      %p146 = scmp.ne.s32.totalorder %s132, %s133
      %p147 = scmp.eq.s32.totalorder %s22, 1
      %p148 = por %p146, %p147
      %p150 = scmp.ne.s32.totalorder %s133, %s149
      %p151 = scmp.eq.s32.totalorder %s22, 0
      %p152 = por %p150, %p151
      %p153 = scmp.le.s32.totalorder 1, %s16
      %p154 = scmp.lt.s32.totalorder %s16, 3
      %p155 = pnand %p153, %p154
      %p156 = pneg %p155
      // Predicated region
      $region9: #{tpu_custom_call.1} parent=5 // pred_check
        _
      $region10: #{tpu_custom_call.1} parent=5 // pred_check_branch
        %158 = sbr.rel (%p155) target = $region12
      $region11: #{tpu_custom_call.1} parent=5 // pred_region
        %s159 = ssub.s32 %s16, 1
        // Predicated region
        $region13: #{tpu_custom_call.1} parent=11 // pred_check
          %p160 = pneg %p91
        $region14: #{tpu_custom_call.1} parent=11 // pred_check_branch
          %162 = sbr.rel (%p160) target = $region16
        $region15: #{tpu_custom_call.1} parent=11 // pred_region
          %s163 = smul.u32 16, %s28
          %s165 = ssub.s32 1024, 1024
          %166 = vsyncadd [#allocation7], %s165
          %s167 = sadd.s32 %s27, %s163
          %s168 = smul.addr %s167, 64
          %s169 = scalar_lea.hbm %s1, %s168
          %s170 = sshll.u32 [#allocation6], 4
          %s171 = int_to_ptr.vmem [resolvable:$true] %s170
          %176 = dma.hbm_to_vmem [thread:$0]  %s169, 1024, %s171, [#allocation7], 64, 64, 4
        $region16: #{tpu_custom_call.1} parent=11 // pred_fallthru
          _
        // Predicated region
        $region17: #{tpu_custom_call.1} parent=11 // pred_check
          %p177 = pneg %p117
        $region18: #{tpu_custom_call.1} parent=11 // pred_check_branch
          %179 = sbr.rel (%p177) target = $region20
        $region19: #{tpu_custom_call.1} parent=11 // pred_region
          %p180 = scmp.lt.s32.totalorder %s27, 0
          %s181 = scalar_select %p180, %s27, 0
          %s182 = smul.addr %s181, 2
          %s183 = scalar_lea.vmem %s2, %s182
        $region20: #{tpu_custom_call.1} parent=11 // pred_fallthru
          _
      $region12: #{tpu_custom_call.1} parent=5 // pred_fallthru
        _
      %p184 = scmp.lt.s32.totalorder %s16, 2
      // Predicated region
      $region21: #{tpu_custom_call.1} parent=5 // pred_check
        %p185 = pneg %p184
      $region22: #{tpu_custom_call.1} parent=5 // pred_check_branch
        %187 = sbr.rel (%p185) target = $region24
      $region23: #{tpu_custom_call.1} parent=5 // pred_region
        // Predicated region
        $region25: #{tpu_custom_call.1} parent=23 // pred_check
          %p188 = pneg %p57
        $region26: #{tpu_custom_call.1} parent=23 // pred_check_branch
          %190 = sbr.rel (%p188) target = $region28
        $region27: #{tpu_custom_call.1} parent=23 // pred_region
          %s191 = sand.u32 %s47, 1
          %s192 = scalar_lea.sflag [#allocation4], %s191
          %s193 = sand.u32 %s47, 1
          %s194 = smul.addr %s193, 512
          %s195 = scalar_lea.vmem [#allocation3], %s194
          %s196 = smul.u32 128, %s23
          %s198 = ssub.s32 8192, 8192
          %199 = vsyncadd %s192, %s198
          %s200 = sadd.s32 %s25, %s196
          %s201 = smul.addr %s200, 64
          %s202 = scalar_lea.hbm %s0, %s201
          %s203 = sshll.u32 %s195, 4
          %s204 = int_to_ptr.vmem [resolvable:$true] %s203
          %209 = dma.hbm_to_vmem [thread:$0]  %s202, 8192, %s204, %s192, 64, 64, 4
        $region28: #{tpu_custom_call.1} parent=23 // pred_fallthru
          _
      $region24: #{tpu_custom_call.1} parent=5 // pred_fallthru
        _
      %p210 = scmp.le.s32.totalorder 1, %s16
      %p211 = scmp.lt.s32.totalorder %s16, 3
      %p212 = pnand %p210, %p211
      %p213 = pneg %p212
      // Predicated region
      $region29: #{tpu_custom_call.1} parent=5 // pred_check
        _
      $region30: #{tpu_custom_call.1} parent=5 // pred_check_branch
        %215 = sbr.rel (%p212) target = $region32
      $region31: #{tpu_custom_call.1} parent=5 // pred_region
        %s216 = ssub.s32 %s16, 1
        %s217 = sand.u32 %s50, 1
        %s218 = scalar_lea.sflag [#allocation4], %s217
        %s219 = sand.u32 %s50, 1
        %s220 = smul.addr %s219, 512
        %s221 = scalar_lea.vmem [#allocation3], %s220
        // Predicated region
        $region33: #{tpu_custom_call.1} parent=31 // pred_check
          %p222 = pneg %p63
        $region34: #{tpu_custom_call.1} parent=31 // pred_check_branch
          %224 = sbr.rel (%p222) target = $region36
        $region35: #{tpu_custom_call.1} parent=31 // pred_region
          %225 = dma.done %s218, 8192
        $region36: #{tpu_custom_call.1} parent=31 // pred_fallthru
          _
        // Predicated region
        $region37: #{tpu_custom_call.1} parent=31 // pred_check
          %p226 = pneg %p91
        $region38: #{tpu_custom_call.1} parent=31 // pred_check_branch
          %228 = sbr.rel (%p226) target = $region40
        $region39: #{tpu_custom_call.1} parent=31 // pred_region
          %229 = dma.done [#allocation7], 1024
        $region40: #{tpu_custom_call.1} parent=31 // pred_fallthru
          _
        %s230 = sand.u32 %s50, 1
        %s231 = scalar_lea.sflag [#allocation4], %s230
        %s232 = sand.u32 %s50, 1
        %s233 = smul.addr %s232, 512
        %s234 = scalar_lea.vmem [#allocation3], %s233
        %p235 = pneg %p63
        %p236 = pneg %p60
        %p237 = pneg %p91
        %p238 = pneg %p88
        %p239 = scmp.lt.s32.totalorder %s27, 0
        %s240 = scalar_select %p239, %s27, 0
        %s241 = smul.addr %s240, 2
        %s242 = scalar_lea.vmem %s2, %s241
        %p243 = pneg %p117
        %p244 = pneg %p114
        %p245 = pneg %p145
        %p246 = pneg %p142
        %s247 = sand.u32 %s132, 1
        %s248 = scalar_lea.sflag [#allocation5], %s247
        %s249 = sand.u32 %s132, 1
        %s250 = smul.addr %s249, 512
        %s251 = scalar_lea.vmem [#allocation8], %s250
        %s252 = smul.u32 128, %s26
        %s253 = smul.u32 16, %s28
        %p254 = scmp.lt.s32.totalorder %s27, 0
        %s255 = scalar_select %p254, %s27, 0
        %s256 = smul.addr %s255, 2
        %s257 = scalar_lea.vmem %s2, %s256
        %s258 = smul.u32 128, %s26
        %p260 = scmp.eq.s32.totalorder %s28, 0
        // Predicated region
        $region41: #{tpu_custom_call.1} parent=31 // pred_check
          %p261 = pneg %p260
        $region42: #{tpu_custom_call.1} parent=31 // pred_check_branch
          %263 = sbr.rel (%p261) target = $region44
        $region43: #{tpu_custom_call.1} parent=31 // pred_region
          %264 = vst [vmem:[#allocation2] sm:$0xff] 0.0
          %265 = vst [vmem:[#allocation2 + $0x8] sm:$0xff] 0.0
          %266 = vst [vmem:[#allocation2 + $0x10] sm:$0xff] 0.0
          %267 = vst [vmem:[#allocation2 + $0x18] sm:$0xff] 0.0
          %268 = vst [vmem:[#allocation2 + $0x20] sm:$0xff] 0.0
          %269 = vst [vmem:[#allocation2 + $0x28] sm:$0xff] 0.0
          %270 = vst [vmem:[#allocation2 + $0x30] sm:$0xff] 0.0
          %271 = vst [vmem:[#allocation2 + $0x38] sm:$0xff] 0.0
          %272 = vst [vmem:[#allocation2 + $0x40] sm:$0xff] 0.0
          %273 = vst [vmem:[#allocation2 + $0x48] sm:$0xff] 0.0
          %274 = vst [vmem:[#allocation2 + $0x50] sm:$0xff] 0.0
          %275 = vst [vmem:[#allocation2 + $0x58] sm:$0xff] 0.0
          %276 = vst [vmem:[#allocation2 + $0x60] sm:$0xff] 0.0
          %277 = vst [vmem:[#allocation2 + $0x68] sm:$0xff] 0.0
          %278 = vst [vmem:[#allocation2 + $0x70] sm:$0xff] 0.0
          %279 = vst [vmem:[#allocation2 + $0x78] sm:$0xff] 0.0
          %280 = vst [vmem:[#allocation2 + $0x80] sm:$0xff] 0.0
          %281 = vst [vmem:[#allocation2 + $0x88] sm:$0xff] 0.0
          %282 = vst [vmem:[#allocation2 + $0x90] sm:$0xff] 0.0
          %283 = vst [vmem:[#allocation2 + $0x98] sm:$0xff] 0.0
          %284 = vst [vmem:[#allocation2 + $0xa0] sm:$0xff] 0.0
          %285 = vst [vmem:[#allocation2 + $0xa8] sm:$0xff] 0.0
          %286 = vst [vmem:[#allocation2 + $0xb0] sm:$0xff] 0.0
          %287 = vst [vmem:[#allocation2 + $0xb8] sm:$0xff] 0.0
          %288 = vst [vmem:[#allocation2 + $0xc0] sm:$0xff] 0.0
          %289 = vst [vmem:[#allocation2 + $0xc8] sm:$0xff] 0.0
          %290 = vst [vmem:[#allocation2 + $0xd0] sm:$0xff] 0.0
          %291 = vst [vmem:[#allocation2 + $0xd8] sm:$0xff] 0.0
          %292 = vst [vmem:[#allocation2 + $0xe0] sm:$0xff] 0.0
          %293 = vst [vmem:[#allocation2 + $0xe8] sm:$0xff] 0.0
          %294 = vst [vmem:[#allocation2 + $0xf0] sm:$0xff] 0.0
          %295 = vst [vmem:[#allocation2 + $0xf8] sm:$0xff] 0.0
          %296 = vst [vmem:[#allocation2 + $0x100] sm:$0xff] 0.0
          %297 = vst [vmem:[#allocation2 + $0x108] sm:$0xff] 0.0
          %298 = vst [vmem:[#allocation2 + $0x110] sm:$0xff] 0.0
          %299 = vst [vmem:[#allocation2 + $0x118] sm:$0xff] 0.0
          %300 = vst [vmem:[#allocation2 + $0x120] sm:$0xff] 0.0
          %301 = vst [vmem:[#allocation2 + $0x128] sm:$0xff] 0.0
          %302 = vst [vmem:[#allocation2 + $0x130] sm:$0xff] 0.0
          %303 = vst [vmem:[#allocation2 + $0x138] sm:$0xff] 0.0
          %304 = vst [vmem:[#allocation2 + $0x140] sm:$0xff] 0.0
          %305 = vst [vmem:[#allocation2 + $0x148] sm:$0xff] 0.0
          %306 = vst [vmem:[#allocation2 + $0x150] sm:$0xff] 0.0
          %307 = vst [vmem:[#allocation2 + $0x158] sm:$0xff] 0.0
          %308 = vst [vmem:[#allocation2 + $0x160] sm:$0xff] 0.0
          %309 = vst [vmem:[#allocation2 + $0x168] sm:$0xff] 0.0
          %310 = vst [vmem:[#allocation2 + $0x170] sm:$0xff] 0.0
          %311 = vst [vmem:[#allocation2 + $0x178] sm:$0xff] 0.0
          %312 = vst [vmem:[#allocation2 + $0x180] sm:$0xff] 0.0
          %313 = vst [vmem:[#allocation2 + $0x188] sm:$0xff] 0.0
          %314 = vst [vmem:[#allocation2 + $0x190] sm:$0xff] 0.0
          %315 = vst [vmem:[#allocation2 + $0x198] sm:$0xff] 0.0
          %316 = vst [vmem:[#allocation2 + $0x1a0] sm:$0xff] 0.0
          %317 = vst [vmem:[#allocation2 + $0x1a8] sm:$0xff] 0.0
          %318 = vst [vmem:[#allocation2 + $0x1b0] sm:$0xff] 0.0
          %319 = vst [vmem:[#allocation2 + $0x1b8] sm:$0xff] 0.0
          %320 = vst [vmem:[#allocation2 + $0x1c0] sm:$0xff] 0.0
          %321 = vst [vmem:[#allocation2 + $0x1c8] sm:$0xff] 0.0
          %322 = vst [vmem:[#allocation2 + $0x1d0] sm:$0xff] 0.0
          %323 = vst [vmem:[#allocation2 + $0x1d8] sm:$0xff] 0.0
          %324 = vst [vmem:[#allocation2 + $0x1e0] sm:$0xff] 0.0
          %325 = vst [vmem:[#allocation2 + $0x1e8] sm:$0xff] 0.0
          %326 = vst [vmem:[#allocation2 + $0x1f0] sm:$0xff] 0.0
          %327 = vst [vmem:[#allocation2 + $0x1f8] sm:$0xff] 0.0
          %328 = vst [vmem:[#allocation2 + $0x200] sm:$0xff] 0.0
          %329 = vst [vmem:[#allocation2 + $0x208] sm:$0xff] 0.0
          %330 = vst [vmem:[#allocation2 + $0x210] sm:$0xff] 0.0
          %331 = vst [vmem:[#allocation2 + $0x218] sm:$0xff] 0.0
          %332 = vst [vmem:[#allocation2 + $0x220] sm:$0xff] 0.0
          %333 = vst [vmem:[#allocation2 + $0x228] sm:$0xff] 0.0
          %334 = vst [vmem:[#allocation2 + $0x230] sm:$0xff] 0.0
          %335 = vst [vmem:[#allocation2 + $0x238] sm:$0xff] 0.0
          %336 = vst [vmem:[#allocation2 + $0x240] sm:$0xff] 0.0
          %337 = vst [vmem:[#allocation2 + $0x248] sm:$0xff] 0.0
          %338 = vst [vmem:[#allocation2 + $0x250] sm:$0xff] 0.0
          %339 = vst [vmem:[#allocation2 + $0x258] sm:$0xff] 0.0
          %340 = vst [vmem:[#allocation2 + $0x260] sm:$0xff] 0.0
          %341 = vst [vmem:[#allocation2 + $0x268] sm:$0xff] 0.0
          %342 = vst [vmem:[#allocation2 + $0x270] sm:$0xff] 0.0
          %343 = vst [vmem:[#allocation2 + $0x278] sm:$0xff] 0.0
          %344 = vst [vmem:[#allocation2 + $0x280] sm:$0xff] 0.0
          %345 = vst [vmem:[#allocation2 + $0x288] sm:$0xff] 0.0
          %346 = vst [vmem:[#allocation2 + $0x290] sm:$0xff] 0.0
          %347 = vst [vmem:[#allocation2 + $0x298] sm:$0xff] 0.0
          %348 = vst [vmem:[#allocation2 + $0x2a0] sm:$0xff] 0.0
          %349 = vst [vmem:[#allocation2 + $0x2a8] sm:$0xff] 0.0
          %350 = vst [vmem:[#allocation2 + $0x2b0] sm:$0xff] 0.0
          %351 = vst [vmem:[#allocation2 + $0x2b8] sm:$0xff] 0.0
          %352 = vst [vmem:[#allocation2 + $0x2c0] sm:$0xff] 0.0
          %353 = vst [vmem:[#allocation2 + $0x2c8] sm:$0xff] 0.0
          %354 = vst [vmem:[#allocation2 + $0x2d0] sm:$0xff] 0.0
          %355 = vst [vmem:[#allocation2 + $0x2d8] sm:$0xff] 0.0
          %356 = vst [vmem:[#allocation2 + $0x2e0] sm:$0xff] 0.0
          %357 = vst [vmem:[#allocation2 + $0x2e8] sm:$0xff] 0.0
          %358 = vst [vmem:[#allocation2 + $0x2f0] sm:$0xff] 0.0
          %359 = vst [vmem:[#allocation2 + $0x2f8] sm:$0xff] 0.0
          %360 = vst [vmem:[#allocation2 + $0x300] sm:$0xff] 0.0
          %361 = vst [vmem:[#allocation2 + $0x308] sm:$0xff] 0.0
          %362 = vst [vmem:[#allocation2 + $0x310] sm:$0xff] 0.0
          %363 = vst [vmem:[#allocation2 + $0x318] sm:$0xff] 0.0
          %364 = vst [vmem:[#allocation2 + $0x320] sm:$0xff] 0.0
          %365 = vst [vmem:[#allocation2 + $0x328] sm:$0xff] 0.0
          %366 = vst [vmem:[#allocation2 + $0x330] sm:$0xff] 0.0
          %367 = vst [vmem:[#allocation2 + $0x338] sm:$0xff] 0.0
          %368 = vst [vmem:[#allocation2 + $0x340] sm:$0xff] 0.0
          %369 = vst [vmem:[#allocation2 + $0x348] sm:$0xff] 0.0
          %370 = vst [vmem:[#allocation2 + $0x350] sm:$0xff] 0.0
          %371 = vst [vmem:[#allocation2 + $0x358] sm:$0xff] 0.0
          %372 = vst [vmem:[#allocation2 + $0x360] sm:$0xff] 0.0
          %373 = vst [vmem:[#allocation2 + $0x368] sm:$0xff] 0.0
          %374 = vst [vmem:[#allocation2 + $0x370] sm:$0xff] 0.0
          %375 = vst [vmem:[#allocation2 + $0x378] sm:$0xff] 0.0
          %376 = vst [vmem:[#allocation2 + $0x380] sm:$0xff] 0.0
          %377 = vst [vmem:[#allocation2 + $0x388] sm:$0xff] 0.0
          %378 = vst [vmem:[#allocation2 + $0x390] sm:$0xff] 0.0
          %379 = vst [vmem:[#allocation2 + $0x398] sm:$0xff] 0.0
          %380 = vst [vmem:[#allocation2 + $0x3a0] sm:$0xff] 0.0
          %381 = vst [vmem:[#allocation2 + $0x3a8] sm:$0xff] 0.0
          %382 = vst [vmem:[#allocation2 + $0x3b0] sm:$0xff] 0.0
          %383 = vst [vmem:[#allocation2 + $0x3b8] sm:$0xff] 0.0
          %384 = vst [vmem:[#allocation2 + $0x3c0] sm:$0xff] 0.0
          %385 = vst [vmem:[#allocation2 + $0x3c8] sm:$0xff] 0.0
          %386 = vst [vmem:[#allocation2 + $0x3d0] sm:$0xff] 0.0
          %387 = vst [vmem:[#allocation2 + $0x3d8] sm:$0xff] 0.0
          %388 = vst [vmem:[#allocation2 + $0x3e0] sm:$0xff] 0.0
          %389 = vst [vmem:[#allocation2 + $0x3e8] sm:$0xff] 0.0
          %390 = vst [vmem:[#allocation2 + $0x3f0] sm:$0xff] 0.0
          %391 = vst [vmem:[#allocation2 + $0x3f8] sm:$0xff] 0.0
        $region44: #{tpu_custom_call.1} parent=31 // pred_fallthru
          _
        %v392 = vld [vmem:[#allocation2] sm:$0xff]
        %v393 = vld [vmem:[#allocation2 + $0x8] sm:$0xff]
        %v394 = vld [vmem:[#allocation2 + $0x10] sm:$0xff]
        %v395 = vld [vmem:[#allocation2 + $0x18] sm:$0xff]
        %v396 = vld [vmem:[#allocation2 + $0x20] sm:$0xff]
        %v397 = vld [vmem:[#allocation2 + $0x28] sm:$0xff]
        %v398 = vld [vmem:[#allocation2 + $0x30] sm:$0xff]
        %v399 = vld [vmem:[#allocation2 + $0x38] sm:$0xff]
        %v400 = vld [vmem:[#allocation2 + $0x40] sm:$0xff]
        %v401 = vld [vmem:[#allocation2 + $0x48] sm:$0xff]
        %v402 = vld [vmem:[#allocation2 + $0x50] sm:$0xff]
        %v403 = vld [vmem:[#allocation2 + $0x58] sm:$0xff]
        %v404 = vld [vmem:[#allocation2 + $0x60] sm:$0xff]
        %v405 = vld [vmem:[#allocation2 + $0x68] sm:$0xff]
        %v406 = vld [vmem:[#allocation2 + $0x70] sm:$0xff]
        %v407 = vld [vmem:[#allocation2 + $0x78] sm:$0xff]
        %v408 = vld [vmem:[#allocation2 + $0x80] sm:$0xff]
        %v409 = vld [vmem:[#allocation2 + $0x88] sm:$0xff]
        %v410 = vld [vmem:[#allocation2 + $0x90] sm:$0xff]
        %v411 = vld [vmem:[#allocation2 + $0x98] sm:$0xff]
        %v412 = vld [vmem:[#allocation2 + $0xa0] sm:$0xff]
        %v413 = vld [vmem:[#allocation2 + $0xa8] sm:$0xff]
        %v414 = vld [vmem:[#allocation2 + $0xb0] sm:$0xff]
        %v415 = vld [vmem:[#allocation2 + $0xb8] sm:$0xff]
        %v416 = vld [vmem:[#allocation2 + $0xc0] sm:$0xff]
        %v417 = vld [vmem:[#allocation2 + $0xc8] sm:$0xff]
        %v418 = vld [vmem:[#allocation2 + $0xd0] sm:$0xff]
        %v419 = vld [vmem:[#allocation2 + $0xd8] sm:$0xff]
        %v420 = vld [vmem:[#allocation2 + $0xe0] sm:$0xff]
        %v421 = vld [vmem:[#allocation2 + $0xe8] sm:$0xff]
        %v422 = vld [vmem:[#allocation2 + $0xf0] sm:$0xff]
        %v423 = vld [vmem:[#allocation2 + $0xf8] sm:$0xff]
        %v424 = vld [vmem:[#allocation2 + $0x100] sm:$0xff]
        %v425 = vld [vmem:[#allocation2 + $0x108] sm:$0xff]
        %v426 = vld [vmem:[#allocation2 + $0x110] sm:$0xff]
        %v427 = vld [vmem:[#allocation2 + $0x118] sm:$0xff]
        %v428 = vld [vmem:[#allocation2 + $0x120] sm:$0xff]
        %v429 = vld [vmem:[#allocation2 + $0x128] sm:$0xff]
        %v430 = vld [vmem:[#allocation2 + $0x130] sm:$0xff]
        %v431 = vld [vmem:[#allocation2 + $0x138] sm:$0xff]
        %v432 = vld [vmem:[#allocation2 + $0x140] sm:$0xff]
        %v433 = vld [vmem:[#allocation2 + $0x148] sm:$0xff]
        %v434 = vld [vmem:[#allocation2 + $0x150] sm:$0xff]
        %v435 = vld [vmem:[#allocation2 + $0x158] sm:$0xff]
        %v436 = vld [vmem:[#allocation2 + $0x160] sm:$0xff]
        %v437 = vld [vmem:[#allocation2 + $0x168] sm:$0xff]
        %v438 = vld [vmem:[#allocation2 + $0x170] sm:$0xff]
        %v439 = vld [vmem:[#allocation2 + $0x178] sm:$0xff]
        %v440 = vld [vmem:[#allocation2 + $0x180] sm:$0xff]
        %v441 = vld [vmem:[#allocation2 + $0x188] sm:$0xff]
        %v442 = vld [vmem:[#allocation2 + $0x190] sm:$0xff]
        %v443 = vld [vmem:[#allocation2 + $0x198] sm:$0xff]
        %v444 = vld [vmem:[#allocation2 + $0x1a0] sm:$0xff]
        %v445 = vld [vmem:[#allocation2 + $0x1a8] sm:$0xff]
        %v446 = vld [vmem:[#allocation2 + $0x1b0] sm:$0xff]
        %v447 = vld [vmem:[#allocation2 + $0x1b8] sm:$0xff]
        %v448 = vld [vmem:[#allocation2 + $0x1c0] sm:$0xff]
        %v449 = vld [vmem:[#allocation2 + $0x1c8] sm:$0xff]
        %v450 = vld [vmem:[#allocation2 + $0x1d0] sm:$0xff]
        %v451 = vld [vmem:[#allocation2 + $0x1d8] sm:$0xff]
        %v452 = vld [vmem:[#allocation2 + $0x1e0] sm:$0xff]
        %v453 = vld [vmem:[#allocation2 + $0x1e8] sm:$0xff]
        %v454 = vld [vmem:[#allocation2 + $0x1f0] sm:$0xff]
        %v455 = vld [vmem:[#allocation2 + $0x1f8] sm:$0xff]
        %v456 = vld [vmem:[#allocation2 + $0x200] sm:$0xff]
        %v457 = vld [vmem:[#allocation2 + $0x208] sm:$0xff]
        %v458 = vld [vmem:[#allocation2 + $0x210] sm:$0xff]
        %v459 = vld [vmem:[#allocation2 + $0x218] sm:$0xff]
        %v460 = vld [vmem:[#allocation2 + $0x220] sm:$0xff]
        %v461 = vld [vmem:[#allocation2 + $0x228] sm:$0xff]
        %v462 = vld [vmem:[#allocation2 + $0x230] sm:$0xff]
        %v463 = vld [vmem:[#allocation2 + $0x238] sm:$0xff]
        %v464 = vld [vmem:[#allocation2 + $0x240] sm:$0xff]
        %v465 = vld [vmem:[#allocation2 + $0x248] sm:$0xff]
        %v466 = vld [vmem:[#allocation2 + $0x250] sm:$0xff]
        %v467 = vld [vmem:[#allocation2 + $0x258] sm:$0xff]
        %v468 = vld [vmem:[#allocation2 + $0x260] sm:$0xff]
        %v469 = vld [vmem:[#allocation2 + $0x268] sm:$0xff]
        %v470 = vld [vmem:[#allocation2 + $0x270] sm:$0xff]
        %v471 = vld [vmem:[#allocation2 + $0x278] sm:$0xff]
        %v472 = vld [vmem:[#allocation2 + $0x280] sm:$0xff]
        %v473 = vld [vmem:[#allocation2 + $0x288] sm:$0xff]
        %v474 = vld [vmem:[#allocation2 + $0x290] sm:$0xff]
        %v475 = vld [vmem:[#allocation2 + $0x298] sm:$0xff]
        %v476 = vld [vmem:[#allocation2 + $0x2a0] sm:$0xff]
        %v477 = vld [vmem:[#allocation2 + $0x2a8] sm:$0xff]
        %v478 = vld [vmem:[#allocation2 + $0x2b0] sm:$0xff]
        %v479 = vld [vmem:[#allocation2 + $0x2b8] sm:$0xff]
        %v480 = vld [vmem:[#allocation2 + $0x2c0] sm:$0xff]
        %v481 = vld [vmem:[#allocation2 + $0x2c8] sm:$0xff]
        %v482 = vld [vmem:[#allocation2 + $0x2d0] sm:$0xff]
        %v483 = vld [vmem:[#allocation2 + $0x2d8] sm:$0xff]
        %v484 = vld [vmem:[#allocation2 + $0x2e0] sm:$0xff]
        %v485 = vld [vmem:[#allocation2 + $0x2e8] sm:$0xff]
        %v486 = vld [vmem:[#allocation2 + $0x2f0] sm:$0xff]
        %v487 = vld [vmem:[#allocation2 + $0x2f8] sm:$0xff]
        %v488 = vld [vmem:[#allocation2 + $0x300] sm:$0xff]
        %v489 = vld [vmem:[#allocation2 + $0x308] sm:$0xff]
        %v490 = vld [vmem:[#allocation2 + $0x310] sm:$0xff]
        %v491 = vld [vmem:[#allocation2 + $0x318] sm:$0xff]
        %v492 = vld [vmem:[#allocation2 + $0x320] sm:$0xff]
        %v493 = vld [vmem:[#allocation2 + $0x328] sm:$0xff]
        %v494 = vld [vmem:[#allocation2 + $0x330] sm:$0xff]
        %v495 = vld [vmem:[#allocation2 + $0x338] sm:$0xff]
        %v496 = vld [vmem:[#allocation2 + $0x340] sm:$0xff]
        %v497 = vld [vmem:[#allocation2 + $0x348] sm:$0xff]
        %v498 = vld [vmem:[#allocation2 + $0x350] sm:$0xff]
        %v499 = vld [vmem:[#allocation2 + $0x358] sm:$0xff]
        %v500 = vld [vmem:[#allocation2 + $0x360] sm:$0xff]
        %v501 = vld [vmem:[#allocation2 + $0x368] sm:$0xff]
        %v502 = vld [vmem:[#allocation2 + $0x370] sm:$0xff]
        %v503 = vld [vmem:[#allocation2 + $0x378] sm:$0xff]
        %v504 = vld [vmem:[#allocation2 + $0x380] sm:$0xff]
        %v505 = vld [vmem:[#allocation2 + $0x388] sm:$0xff]
        %v506 = vld [vmem:[#allocation2 + $0x390] sm:$0xff]
        %v507 = vld [vmem:[#allocation2 + $0x398] sm:$0xff]
        %v508 = vld [vmem:[#allocation2 + $0x3a0] sm:$0xff]
        %v509 = vld [vmem:[#allocation2 + $0x3a8] sm:$0xff]
        %v510 = vld [vmem:[#allocation2 + $0x3b0] sm:$0xff]
        %v511 = vld [vmem:[#allocation2 + $0x3b8] sm:$0xff]
        %v512 = vld [vmem:[#allocation2 + $0x3c0] sm:$0xff]
        %v513 = vld [vmem:[#allocation2 + $0x3c8] sm:$0xff]
        %v514 = vld [vmem:[#allocation2 + $0x3d0] sm:$0xff]
        %v515 = vld [vmem:[#allocation2 + $0x3d8] sm:$0xff]
        %v516 = vld [vmem:[#allocation2 + $0x3e0] sm:$0xff]
        %v517 = vld [vmem:[#allocation2 + $0x3e8] sm:$0xff]
        %v518 = vld [vmem:[#allocation2 + $0x3f0] sm:$0xff]
        %v519 = vld [vmem:[#allocation2 + $0x3f8] sm:$0xff]
        %v520 = vld [vmem:[%s221] sm:$0xf]
        %v521 = vld [vmem:[%s221 + $0x4] sm:$0xf]
        %v522 = vld [vmem:[%s221 + $0x8] sm:$0xf]
        %v523 = vld [vmem:[%s221 + $0xc] sm:$0xf]
        %v524 = vld [vmem:[%s221 + $0x10] sm:$0xf]
        %v525 = vld [vmem:[%s221 + $0x14] sm:$0xf]
        %v526 = vld [vmem:[%s221 + $0x18] sm:$0xf]
        %v527 = vld [vmem:[%s221 + $0x1c] sm:$0xf]
        %v528 = vld [vmem:[%s221 + $0x20] sm:$0xf]
        %v529 = vld [vmem:[%s221 + $0x24] sm:$0xf]
        %v530 = vld [vmem:[%s221 + $0x28] sm:$0xf]
        %v531 = vld [vmem:[%s221 + $0x2c] sm:$0xf]
        %v532 = vld [vmem:[%s221 + $0x30] sm:$0xf]
        %v533 = vld [vmem:[%s221 + $0x34] sm:$0xf]
        %v534 = vld [vmem:[%s221 + $0x38] sm:$0xf]
        %v535 = vld [vmem:[%s221 + $0x3c] sm:$0xf]
        %v536 = vld [vmem:[%s221 + $0x40] sm:$0xf]
        %v537 = vld [vmem:[%s221 + $0x44] sm:$0xf]
        %v538 = vld [vmem:[%s221 + $0x48] sm:$0xf]
        %v539 = vld [vmem:[%s221 + $0x4c] sm:$0xf]
        %v540 = vld [vmem:[%s221 + $0x50] sm:$0xf]
        %v541 = vld [vmem:[%s221 + $0x54] sm:$0xf]
        %v542 = vld [vmem:[%s221 + $0x58] sm:$0xf]
        %v543 = vld [vmem:[%s221 + $0x5c] sm:$0xf]
        %v544 = vld [vmem:[%s221 + $0x60] sm:$0xf]
        %v545 = vld [vmem:[%s221 + $0x64] sm:$0xf]
        %v546 = vld [vmem:[%s221 + $0x68] sm:$0xf]
        %v547 = vld [vmem:[%s221 + $0x6c] sm:$0xf]
        %v548 = vld [vmem:[%s221 + $0x70] sm:$0xf]
        %v549 = vld [vmem:[%s221 + $0x74] sm:$0xf]
        %v550 = vld [vmem:[%s221 + $0x78] sm:$0xf]
        %v551 = vld [vmem:[%s221 + $0x7c] sm:$0xf]
        %v552 = vld [vmem:[%s221 + $0x80] sm:$0xf]
        %v553 = vld [vmem:[%s221 + $0x84] sm:$0xf]
        %v554 = vld [vmem:[%s221 + $0x88] sm:$0xf]
        %v555 = vld [vmem:[%s221 + $0x8c] sm:$0xf]
        %v556 = vld [vmem:[%s221 + $0x90] sm:$0xf]
        %v557 = vld [vmem:[%s221 + $0x94] sm:$0xf]
        %v558 = vld [vmem:[%s221 + $0x98] sm:$0xf]
        %v559 = vld [vmem:[%s221 + $0x9c] sm:$0xf]
        %v560 = vld [vmem:[%s221 + $0xa0] sm:$0xf]
        %v561 = vld [vmem:[%s221 + $0xa4] sm:$0xf]
        %v562 = vld [vmem:[%s221 + $0xa8] sm:$0xf]
        %v563 = vld [vmem:[%s221 + $0xac] sm:$0xf]
        %v564 = vld [vmem:[%s221 + $0xb0] sm:$0xf]
        %v565 = vld [vmem:[%s221 + $0xb4] sm:$0xf]
        %v566 = vld [vmem:[%s221 + $0xb8] sm:$0xf]
        %v567 = vld [vmem:[%s221 + $0xbc] sm:$0xf]
        %v568 = vld [vmem:[%s221 + $0xc0] sm:$0xf]
        %v569 = vld [vmem:[%s221 + $0xc4] sm:$0xf]
        %v570 = vld [vmem:[%s221 + $0xc8] sm:$0xf]
        %v571 = vld [vmem:[%s221 + $0xcc] sm:$0xf]
        %v572 = vld [vmem:[%s221 + $0xd0] sm:$0xf]
        %v573 = vld [vmem:[%s221 + $0xd4] sm:$0xf]
        %v574 = vld [vmem:[%s221 + $0xd8] sm:$0xf]
        %v575 = vld [vmem:[%s221 + $0xdc] sm:$0xf]
        %v576 = vld [vmem:[%s221 + $0xe0] sm:$0xf]
        %v577 = vld [vmem:[%s221 + $0xe4] sm:$0xf]
        %v578 = vld [vmem:[%s221 + $0xe8] sm:$0xf]
        %v579 = vld [vmem:[%s221 + $0xec] sm:$0xf]
        %v580 = vld [vmem:[%s221 + $0xf0] sm:$0xf]
        %v581 = vld [vmem:[%s221 + $0xf4] sm:$0xf]
        %v582 = vld [vmem:[%s221 + $0xf8] sm:$0xf]
        %v583 = vld [vmem:[%s221 + $0xfc] sm:$0xf]
        %v584 = vld [vmem:[%s221 + $0x100] sm:$0xf]
        %v585 = vld [vmem:[%s221 + $0x104] sm:$0xf]
        %v586 = vld [vmem:[%s221 + $0x108] sm:$0xf]
        %v587 = vld [vmem:[%s221 + $0x10c] sm:$0xf]
        %v588 = vld [vmem:[%s221 + $0x110] sm:$0xf]
        %v589 = vld [vmem:[%s221 + $0x114] sm:$0xf]
        %v590 = vld [vmem:[%s221 + $0x118] sm:$0xf]
        %v591 = vld [vmem:[%s221 + $0x11c] sm:$0xf]
        %v592 = vld [vmem:[%s221 + $0x120] sm:$0xf]
        %v593 = vld [vmem:[%s221 + $0x124] sm:$0xf]
        %v594 = vld [vmem:[%s221 + $0x128] sm:$0xf]
        %v595 = vld [vmem:[%s221 + $0x12c] sm:$0xf]
        %v596 = vld [vmem:[%s221 + $0x130] sm:$0xf]
        %v597 = vld [vmem:[%s221 + $0x134] sm:$0xf]
        %v598 = vld [vmem:[%s221 + $0x138] sm:$0xf]
        %v599 = vld [vmem:[%s221 + $0x13c] sm:$0xf]
        %v600 = vld [vmem:[%s221 + $0x140] sm:$0xf]
        %v601 = vld [vmem:[%s221 + $0x144] sm:$0xf]
        %v602 = vld [vmem:[%s221 + $0x148] sm:$0xf]
        %v603 = vld [vmem:[%s221 + $0x14c] sm:$0xf]
        %v604 = vld [vmem:[%s221 + $0x150] sm:$0xf]
        %v605 = vld [vmem:[%s221 + $0x154] sm:$0xf]
        %v606 = vld [vmem:[%s221 + $0x158] sm:$0xf]
        %v607 = vld [vmem:[%s221 + $0x15c] sm:$0xf]
        %v608 = vld [vmem:[%s221 + $0x160] sm:$0xf]
        %v609 = vld [vmem:[%s221 + $0x164] sm:$0xf]
        %v610 = vld [vmem:[%s221 + $0x168] sm:$0xf]
        %v611 = vld [vmem:[%s221 + $0x16c] sm:$0xf]
        %v612 = vld [vmem:[%s221 + $0x170] sm:$0xf]
        %v613 = vld [vmem:[%s221 + $0x174] sm:$0xf]
        %v614 = vld [vmem:[%s221 + $0x178] sm:$0xf]
        %v615 = vld [vmem:[%s221 + $0x17c] sm:$0xf]
        %v616 = vld [vmem:[%s221 + $0x180] sm:$0xf]
        %v617 = vld [vmem:[%s221 + $0x184] sm:$0xf]
        %v618 = vld [vmem:[%s221 + $0x188] sm:$0xf]
        %v619 = vld [vmem:[%s221 + $0x18c] sm:$0xf]
        %v620 = vld [vmem:[%s221 + $0x190] sm:$0xf]
        %v621 = vld [vmem:[%s221 + $0x194] sm:$0xf]
        %v622 = vld [vmem:[%s221 + $0x198] sm:$0xf]
        %v623 = vld [vmem:[%s221 + $0x19c] sm:$0xf]
        %v624 = vld [vmem:[%s221 + $0x1a0] sm:$0xf]
        %v625 = vld [vmem:[%s221 + $0x1a4] sm:$0xf]
        %v626 = vld [vmem:[%s221 + $0x1a8] sm:$0xf]
        %v627 = vld [vmem:[%s221 + $0x1ac] sm:$0xf]
        %v628 = vld [vmem:[%s221 + $0x1b0] sm:$0xf]
        %v629 = vld [vmem:[%s221 + $0x1b4] sm:$0xf]
        %v630 = vld [vmem:[%s221 + $0x1b8] sm:$0xf]
        %v631 = vld [vmem:[%s221 + $0x1bc] sm:$0xf]
        %v632 = vld [vmem:[%s221 + $0x1c0] sm:$0xf]
        %v633 = vld [vmem:[%s221 + $0x1c4] sm:$0xf]
        %v634 = vld [vmem:[%s221 + $0x1c8] sm:$0xf]
        %v635 = vld [vmem:[%s221 + $0x1cc] sm:$0xf]
        %v636 = vld [vmem:[%s221 + $0x1d0] sm:$0xf]
        %v637 = vld [vmem:[%s221 + $0x1d4] sm:$0xf]
        %v638 = vld [vmem:[%s221 + $0x1d8] sm:$0xf]
        %v639 = vld [vmem:[%s221 + $0x1dc] sm:$0xf]
        %v640 = vld [vmem:[%s221 + $0x1e0] sm:$0xf]
        %v641 = vld [vmem:[%s221 + $0x1e4] sm:$0xf]
        %v642 = vld [vmem:[%s221 + $0x1e8] sm:$0xf]
        %v643 = vld [vmem:[%s221 + $0x1ec] sm:$0xf]
        %v644 = vld [vmem:[%s221 + $0x1f0] sm:$0xf]
        %v645 = vld [vmem:[%s221 + $0x1f4] sm:$0xf]
        %v646 = vld [vmem:[%s221 + $0x1f8] sm:$0xf]
        %v647 = vld [vmem:[%s221 + $0x1fc] sm:$0xf]
        %v648 = vld [vmem:[#allocation6] sm:$0xf]
        %v649 = vld [vmem:[#allocation6 + $0x4] sm:$0xf]
        %v650 = vld [vmem:[#allocation6 + $0x8] sm:$0xf]
        %v651 = vld [vmem:[#allocation6 + $0xc] sm:$0xf]
        %v652 = vld [vmem:[#allocation6 + $0x10] sm:$0xf]
        %v653 = vld [vmem:[#allocation6 + $0x14] sm:$0xf]
        %v654 = vld [vmem:[#allocation6 + $0x18] sm:$0xf]
        %v655 = vld [vmem:[#allocation6 + $0x1c] sm:$0xf]
        %v656 = vld [vmem:[#allocation6 + $0x20] sm:$0xf]
        %v657 = vld [vmem:[#allocation6 + $0x24] sm:$0xf]
        %v658 = vld [vmem:[#allocation6 + $0x28] sm:$0xf]
        %v659 = vld [vmem:[#allocation6 + $0x2c] sm:$0xf]
        %v660 = vld [vmem:[#allocation6 + $0x30] sm:$0xf]
        %v661 = vld [vmem:[#allocation6 + $0x34] sm:$0xf]
        %v662 = vld [vmem:[#allocation6 + $0x38] sm:$0xf]
        %v663 = vld [vmem:[#allocation6 + $0x3c] sm:$0xf]
        %v792 = vunpack.c.l.b16 %v520
        %v793 = vunpack.c.l.b16 %v521
        %v794 = vunpack.c.l.b16 %v522
        %v795 = vunpack.c.l.b16 %v523
        %v796 = vunpack.c.l.b16 %v524
        %v797 = vunpack.c.l.b16 %v525
        %v798 = vunpack.c.l.b16 %v526
        %v799 = vunpack.c.l.b16 %v527
        %v800 = vunpack.c.l.b16 %v528
        %v801 = vunpack.c.l.b16 %v529
        %v802 = vunpack.c.l.b16 %v530
        %v803 = vunpack.c.l.b16 %v531
        %v804 = vunpack.c.l.b16 %v532
        %v805 = vunpack.c.l.b16 %v533
        %v806 = vunpack.c.l.b16 %v534
        %v807 = vunpack.c.l.b16 %v535
        %v808 = vunpack.c.l.b16 %v536
        %v809 = vunpack.c.l.b16 %v537
        %v810 = vunpack.c.l.b16 %v538
        %v811 = vunpack.c.l.b16 %v539
        %v812 = vunpack.c.l.b16 %v540
        %v813 = vunpack.c.l.b16 %v541
        %v814 = vunpack.c.l.b16 %v542
        %v815 = vunpack.c.l.b16 %v543
        %v816 = vunpack.c.l.b16 %v544
        %v817 = vunpack.c.l.b16 %v545
        %v818 = vunpack.c.l.b16 %v546
        %v819 = vunpack.c.l.b16 %v547
        %v820 = vunpack.c.l.b16 %v548
        %v821 = vunpack.c.l.b16 %v549
        %v822 = vunpack.c.l.b16 %v550
        %v823 = vunpack.c.l.b16 %v551
        %v824 = vunpack.c.l.b16 %v552
        %v825 = vunpack.c.l.b16 %v553
        %v826 = vunpack.c.l.b16 %v554
        %v827 = vunpack.c.l.b16 %v555
        %v828 = vunpack.c.l.b16 %v556
        %v829 = vunpack.c.l.b16 %v557
        %v830 = vunpack.c.l.b16 %v558
        %v831 = vunpack.c.l.b16 %v559
        %v832 = vunpack.c.l.b16 %v560
        %v833 = vunpack.c.l.b16 %v561
        %v834 = vunpack.c.l.b16 %v562
        %v835 = vunpack.c.l.b16 %v563
        %v836 = vunpack.c.l.b16 %v564
        %v837 = vunpack.c.l.b16 %v565
        %v838 = vunpack.c.l.b16 %v566
        %v839 = vunpack.c.l.b16 %v567
        %v840 = vunpack.c.l.b16 %v568
        %v841 = vunpack.c.l.b16 %v569
        %v842 = vunpack.c.l.b16 %v570
        %v843 = vunpack.c.l.b16 %v571
        %v844 = vunpack.c.l.b16 %v572
        %v845 = vunpack.c.l.b16 %v573
        %v846 = vunpack.c.l.b16 %v574
        %v847 = vunpack.c.l.b16 %v575
        %v848 = vunpack.c.l.b16 %v576
        %v849 = vunpack.c.l.b16 %v577
        %v850 = vunpack.c.l.b16 %v578
        %v851 = vunpack.c.l.b16 %v579
        %v852 = vunpack.c.l.b16 %v580
        %v853 = vunpack.c.l.b16 %v581
        %v854 = vunpack.c.l.b16 %v582
        %v855 = vunpack.c.l.b16 %v583
        %v856 = vunpack.c.l.b16 %v584
        %v857 = vunpack.c.l.b16 %v585
        %v858 = vunpack.c.l.b16 %v586
        %v859 = vunpack.c.l.b16 %v587
        %v860 = vunpack.c.l.b16 %v588
        %v861 = vunpack.c.l.b16 %v589
        %v862 = vunpack.c.l.b16 %v590
        %v863 = vunpack.c.l.b16 %v591
        %v864 = vunpack.c.l.b16 %v592
        %v865 = vunpack.c.l.b16 %v593
        %v866 = vunpack.c.l.b16 %v594
        %v867 = vunpack.c.l.b16 %v595
        %v868 = vunpack.c.l.b16 %v596
        %v869 = vunpack.c.l.b16 %v597
        %v870 = vunpack.c.l.b16 %v598
        %v871 = vunpack.c.l.b16 %v599
        %v872 = vunpack.c.l.b16 %v600
        %v873 = vunpack.c.l.b16 %v601
        %v874 = vunpack.c.l.b16 %v602
        %v875 = vunpack.c.l.b16 %v603
        %v876 = vunpack.c.l.b16 %v604
        %v877 = vunpack.c.l.b16 %v605
        %v878 = vunpack.c.l.b16 %v606
        %v879 = vunpack.c.l.b16 %v607
        %v880 = vunpack.c.l.b16 %v608
        %v881 = vunpack.c.l.b16 %v609
        %v882 = vunpack.c.l.b16 %v610
        %v883 = vunpack.c.l.b16 %v611
        %v884 = vunpack.c.l.b16 %v612
        %v885 = vunpack.c.l.b16 %v613
        %v886 = vunpack.c.l.b16 %v614
        %v887 = vunpack.c.l.b16 %v615
        %v888 = vunpack.c.l.b16 %v616
        %v889 = vunpack.c.l.b16 %v617
        %v890 = vunpack.c.l.b16 %v618
        %v891 = vunpack.c.l.b16 %v619
        %v892 = vunpack.c.l.b16 %v620
        %v893 = vunpack.c.l.b16 %v621
        %v894 = vunpack.c.l.b16 %v622
        %v895 = vunpack.c.l.b16 %v623
        %v896 = vunpack.c.l.b16 %v624
        %v897 = vunpack.c.l.b16 %v625
        %v898 = vunpack.c.l.b16 %v626
        %v899 = vunpack.c.l.b16 %v627
        %v900 = vunpack.c.l.b16 %v628
        %v901 = vunpack.c.l.b16 %v629
        %v902 = vunpack.c.l.b16 %v630
        %v903 = vunpack.c.l.b16 %v631
        %v904 = vunpack.c.l.b16 %v632
        %v905 = vunpack.c.l.b16 %v633
        %v906 = vunpack.c.l.b16 %v634
        %v907 = vunpack.c.l.b16 %v635
        %v908 = vunpack.c.l.b16 %v636
        %v909 = vunpack.c.l.b16 %v637
        %v910 = vunpack.c.l.b16 %v638
        %v911 = vunpack.c.l.b16 %v639
        %v912 = vunpack.c.l.b16 %v640
        %v913 = vunpack.c.l.b16 %v641
        %v914 = vunpack.c.l.b16 %v642
        %v915 = vunpack.c.l.b16 %v643
        %v916 = vunpack.c.l.b16 %v644
        %v917 = vunpack.c.l.b16 %v645
        %v918 = vunpack.c.l.b16 %v646
        %v919 = vunpack.c.l.b16 %v647
        %v920 = vpack.c.b16 %v793, %v792
        %v921 = vpack.c.b16 %v795, %v794
        %v922 = vpack.c.b16 %v797, %v796
        %v923 = vpack.c.b16 %v799, %v798
        %v924 = vpack.c.b16 %v801, %v800
        %v925 = vpack.c.b16 %v803, %v802
        %v926 = vpack.c.b16 %v805, %v804
        %v927 = vpack.c.b16 %v807, %v806
        %v928 = vpack.c.b16 %v809, %v808
        %v929 = vpack.c.b16 %v811, %v810
        %v930 = vpack.c.b16 %v813, %v812
        %v931 = vpack.c.b16 %v815, %v814
        %v932 = vpack.c.b16 %v817, %v816
        %v933 = vpack.c.b16 %v819, %v818
        %v934 = vpack.c.b16 %v821, %v820
        %v935 = vpack.c.b16 %v823, %v822
        %v936 = vpack.c.b16 %v825, %v824
        %v937 = vpack.c.b16 %v827, %v826
        %v938 = vpack.c.b16 %v829, %v828
        %v939 = vpack.c.b16 %v831, %v830
        %v940 = vpack.c.b16 %v833, %v832
        %v941 = vpack.c.b16 %v835, %v834
        %v942 = vpack.c.b16 %v837, %v836
        %v943 = vpack.c.b16 %v839, %v838
        %v944 = vpack.c.b16 %v841, %v840
        %v945 = vpack.c.b16 %v843, %v842
        %v946 = vpack.c.b16 %v845, %v844
        %v947 = vpack.c.b16 %v847, %v846
        %v948 = vpack.c.b16 %v849, %v848
        %v949 = vpack.c.b16 %v851, %v850
        %v950 = vpack.c.b16 %v853, %v852
        %v951 = vpack.c.b16 %v855, %v854
        %v952 = vpack.c.b16 %v857, %v856
        %v953 = vpack.c.b16 %v859, %v858
        %v954 = vpack.c.b16 %v861, %v860
        %v955 = vpack.c.b16 %v863, %v862
        %v956 = vpack.c.b16 %v865, %v864
        %v957 = vpack.c.b16 %v867, %v866
        %v958 = vpack.c.b16 %v869, %v868
        %v959 = vpack.c.b16 %v871, %v870
        %v960 = vpack.c.b16 %v873, %v872
        %v961 = vpack.c.b16 %v875, %v874
        %v962 = vpack.c.b16 %v877, %v876
        %v963 = vpack.c.b16 %v879, %v878
        %v964 = vpack.c.b16 %v881, %v880
        %v965 = vpack.c.b16 %v883, %v882
        %v966 = vpack.c.b16 %v885, %v884
        %v967 = vpack.c.b16 %v887, %v886
        %v968 = vpack.c.b16 %v889, %v888
        %v969 = vpack.c.b16 %v891, %v890
        %v970 = vpack.c.b16 %v893, %v892
        %v971 = vpack.c.b16 %v895, %v894
        %v972 = vpack.c.b16 %v897, %v896
        %v973 = vpack.c.b16 %v899, %v898
        %v974 = vpack.c.b16 %v901, %v900
        %v975 = vpack.c.b16 %v903, %v902
        %v976 = vpack.c.b16 %v905, %v904
        %v977 = vpack.c.b16 %v907, %v906
        %v978 = vpack.c.b16 %v909, %v908
        %v979 = vpack.c.b16 %v911, %v910
        %v980 = vpack.c.b16 %v913, %v912
        %v981 = vpack.c.b16 %v915, %v914
        %v982 = vpack.c.b16 %v917, %v916
        %v983 = vpack.c.b16 %v919, %v918
        %v1064 = vunpack.c.l.b16 %v648
        %v1065 = vunpack.c.l.b16 %v649
        %v1066 = vunpack.c.l.b16 %v650
        %v1067 = vunpack.c.l.b16 %v651
        %v1068 = vunpack.c.l.b16 %v652
        %v1069 = vunpack.c.l.b16 %v653
        %v1070 = vunpack.c.l.b16 %v654
        %v1071 = vunpack.c.l.b16 %v655
        %v1072 = vunpack.c.l.b16 %v656
        %v1073 = vunpack.c.l.b16 %v657
        %v1074 = vunpack.c.l.b16 %v658
        %v1075 = vunpack.c.l.b16 %v659
        %v1076 = vunpack.c.l.b16 %v660
        %v1077 = vunpack.c.l.b16 %v661
        %v1078 = vunpack.c.l.b16 %v662
        %v1079 = vunpack.c.l.b16 %v663
        %v1080 = vpack.c.b16 %v1065, %v1064
        %v1081 = vpack.c.b16 %v1067, %v1066
        %v1082 = vpack.c.b16 %v1069, %v1068
        %v1083 = vpack.c.b16 %v1071, %v1070
        %v1084 = vpack.c.b16 %v1073, %v1072
        %v1085 = vpack.c.b16 %v1075, %v1074
        %v1086 = vpack.c.b16 %v1077, %v1076
        %v1087 = vpack.c.b16 %v1079, %v1078
        %1096 = vmatprep.subr.bf16.mxu0 0
        %1097 = vmatpush1.bf16.msra.mxu0 %v1080
        %1098 = vmatprep.subr.bf16.mxu0 0
        %1099 = vmatpush1.bf16.msra.mxu0 %v1081
        %1100 = vmatprep.subr.bf16.mxu0 0
        %1101 = vmatpush1.bf16.msra.mxu0 %v1082
        %1102 = vmatprep.subr.bf16.mxu0 0
        %1103 = vmatpush1.bf16.msra.mxu0 %v1083
        %1104 = vmatprep.subr.bf16.mxu0 0
        %1105 = vmatpush1.bf16.msra.mxu0 %v1084
        %1106 = vmatprep.subr.bf16.mxu0 0
        %1107 = vmatpush1.bf16.msra.mxu0 %v1085
        %1108 = vmatprep.subr.bf16.mxu0 0
        %1109 = vmatpush1.bf16.msra.mxu0 %v1086
        %1110 = vmatprep.subr.bf16.mxu0 0
        %1111 = vmatpush1.bf16.msra.mxu0 %v1087
        %1112 = vmatprep.subr.bf16.mxu0 0
        %1113 = vmatpush1.bf16.msra.mxu0 0
        %1114 = vmatprep.subr.bf16.mxu0 0
        %1115 = vmatpush1.bf16.msra.mxu0 0
        %1116 = vmatprep.subr.bf16.mxu0 0
        %1117 = vmatpush1.bf16.msra.mxu0 0
        %1118 = vmatprep.subr.bf16.mxu0 0
        %1119 = vmatpush1.bf16.msra.mxu0 0
        %1120 = vmatprep.subr.bf16.mxu0 0
        %1121 = vmatpush1.bf16.msra.mxu0 0
        %1122 = vmatprep.subr.bf16.mxu0 0
        %1123 = vmatpush1.bf16.msra.mxu0 0
        %1124 = vmatprep.subr.bf16.mxu0 0
        %1125 = vmatpush1.bf16.msra.mxu0 0
        %1126 = vmatprep.subr.bf16.mxu0 0
        %1127 = vmatpush1.bf16.msra.mxu0 0
        %1128 = vmatprep.mubr.bf16.mxu0 0
        %1129 = vmatmul.mubr.bf16.gmra.mrb[0].mxu0 %v920
        %v1130 = vpop.f32.mrb[0].mxu0
        %v1131 = vadd.f32 0.0, %v1130
        %v1132 = vpop.f32.mrb[0].mxu0
        %v1133 = vpop.f32.mrb[0].mxu0
        %v1134 = vadd.f32 0.0, %v1133
        %v1135 = vpop.f32.mrb[0].mxu0
        %1136 = vmatprep.mubr.bf16.mxu0 0
        %1137 = vmatmul.mubr.bf16.gmra.mrb[0].mxu0 %v921
        %v1138 = vpop.f32.mrb[0].mxu0
        %v1139 = vadd.f32 0.0, %v1138
        %v1140 = vpop.f32.mrb[0].mxu0
        %v1141 = vpop.f32.mrb[0].mxu0
        %v1142 = vadd.f32 0.0, %v1141
        %v1143 = vpop.f32.mrb[0].mxu0
        %1144 = vmatprep.mubr.bf16.mxu0 0
        %1145 = vmatmul.mubr.bf16.gmra.mrb[0].mxu0 %v922
        %v1146 = vpop.f32.mrb[0].mxu0
        %v1147 = vadd.f32 0.0, %v1146
        %v1148 = vpop.f32.mrb[0].mxu0
        %v1149 = vpop.f32.mrb[0].mxu0
        %v1150 = vadd.f32 0.0, %v1149
        %v1151 = vpop.f32.mrb[0].mxu0
        %1152 = vmatprep.mubr.bf16.mxu0 0
        %1153 = vmatmul.mubr.bf16.gmra.mrb[0].mxu0 %v923
        %v1154 = vpop.f32.mrb[0].mxu0
        %v1155 = vadd.f32 0.0, %v1154
        %v1156 = vpop.f32.mrb[0].mxu0
        %v1157 = vpop.f32.mrb[0].mxu0
        %v1158 = vadd.f32 0.0, %v1157
        %v1159 = vpop.f32.mrb[0].mxu0
        %1160 = vmatprep.mubr.bf16.mxu0 0
        %1161 = vmatmul.mubr.bf16.gmra.mrb[0].mxu0 %v924
        %v1162 = vpop.f32.mrb[0].mxu0
        %v1163 = vadd.f32 0.0, %v1162
        %v1164 = vpop.f32.mrb[0].mxu0
        %v1165 = vpop.f32.mrb[0].mxu0
        %v1166 = vadd.f32 0.0, %v1165
        %v1167 = vpop.f32.mrb[0].mxu0
        %1168 = vmatprep.mubr.bf16.mxu0 0
        %1169 = vmatmul.mubr.bf16.gmra.mrb[0].mxu0 %v925
        %v1170 = vpop.f32.mrb[0].mxu0
        %v1171 = vadd.f32 0.0, %v1170
        %v1172 = vpop.f32.mrb[0].mxu0
        %v1173 = vpop.f32.mrb[0].mxu0
        %v1174 = vadd.f32 0.0, %v1173
        %v1175 = vpop.f32.mrb[0].mxu0
        %1176 = vmatprep.mubr.bf16.mxu0 0
        %1177 = vmatmul.mubr.bf16.gmra.mrb[0].mxu0 %v926
        %v1178 = vpop.f32.mrb[0].mxu0
        %v1179 = vadd.f32 0.0, %v1178
        %v1180 = vpop.f32.mrb[0].mxu0
        %v1181 = vpop.f32.mrb[0].mxu0
        %v1182 = vadd.f32 0.0, %v1181
        %v1183 = vpop.f32.mrb[0].mxu0
        %1184 = vmatprep.mubr.bf16.mxu0 0
        %1185 = vmatmul.mubr.bf16.gmra.mrb[0].mxu0 %v927
        %v1186 = vpop.f32.mrb[0].mxu0
        %v1187 = vadd.f32 0.0, %v1186
        %v1188 = vpop.f32.mrb[0].mxu0
        %v1189 = vpop.f32.mrb[0].mxu0
        %v1190 = vadd.f32 0.0, %v1189
        %v1191 = vpop.f32.mrb[0].mxu0
        %1192 = vmatprep.mubr.bf16.mxu0 0
        %1193 = vmatmul.mubr.bf16.gmra.mrb[0].mxu0 %v928
        %v1194 = vpop.f32.mrb[0].mxu0
        %v1195 = vadd.f32 0.0, %v1194
        %v1196 = vpop.f32.mrb[0].mxu0
        %v1197 = vpop.f32.mrb[0].mxu0
        %v1198 = vadd.f32 0.0, %v1197
        %v1199 = vpop.f32.mrb[0].mxu0
        %1200 = vmatprep.mubr.bf16.mxu0 0
        %1201 = vmatmul.mubr.bf16.gmra.mrb[0].mxu0 %v929
        %v1202 = vpop.f32.mrb[0].mxu0
        %v1203 = vadd.f32 0.0, %v1202
        %v1204 = vpop.f32.mrb[0].mxu0
        %v1205 = vpop.f32.mrb[0].mxu0
        %v1206 = vadd.f32 0.0, %v1205
        %v1207 = vpop.f32.mrb[0].mxu0
        %1208 = vmatprep.mubr.bf16.mxu0 0
        %1209 = vmatmul.mubr.bf16.gmra.mrb[0].mxu0 %v930
        %v1210 = vpop.f32.mrb[0].mxu0
        %v1211 = vadd.f32 0.0, %v1210
        %v1212 = vpop.f32.mrb[0].mxu0
        %v1213 = vpop.f32.mrb[0].mxu0
        %v1214 = vadd.f32 0.0, %v1213
        %v1215 = vpop.f32.mrb[0].mxu0
        %1216 = vmatprep.mubr.bf16.mxu0 0
        %1217 = vmatmul.mubr.bf16.gmra.mrb[0].mxu0 %v931
        %v1218 = vpop.f32.mrb[0].mxu0
        %v1219 = vadd.f32 0.0, %v1218
        %v1220 = vpop.f32.mrb[0].mxu0
        %v1221 = vpop.f32.mrb[0].mxu0
        %v1222 = vadd.f32 0.0, %v1221
        %v1223 = vpop.f32.mrb[0].mxu0
        %1224 = vmatprep.mubr.bf16.mxu0 0
        %1225 = vmatmul.mubr.bf16.gmra.mrb[0].mxu0 %v932
        %v1226 = vpop.f32.mrb[0].mxu0
        %v1227 = vadd.f32 0.0, %v1226
        %v1228 = vpop.f32.mrb[0].mxu0
        %v1229 = vpop.f32.mrb[0].mxu0
        %v1230 = vadd.f32 0.0, %v1229
        %v1231 = vpop.f32.mrb[0].mxu0
        %1232 = vmatprep.mubr.bf16.mxu0 0
        %1233 = vmatmul.mubr.bf16.gmra.mrb[0].mxu0 %v933
        %v1234 = vpop.f32.mrb[0].mxu0
        %v1235 = vadd.f32 0.0, %v1234
        %v1236 = vpop.f32.mrb[0].mxu0
        %v1237 = vpop.f32.mrb[0].mxu0
        %v1238 = vadd.f32 0.0, %v1237
        %v1239 = vpop.f32.mrb[0].mxu0
        %1240 = vmatprep.mubr.bf16.mxu0 0
        %1241 = vmatmul.mubr.bf16.gmra.mrb[0].mxu0 %v934
        %v1242 = vpop.f32.mrb[0].mxu0
        %v1243 = vadd.f32 0.0, %v1242
        %v1244 = vpop.f32.mrb[0].mxu0
        %v1245 = vpop.f32.mrb[0].mxu0
        %v1246 = vadd.f32 0.0, %v1245
        %v1247 = vpop.f32.mrb[0].mxu0
        %1248 = vmatprep.mubr.bf16.mxu0 0
        %1249 = vmatmul.mubr.bf16.gmra.mrb[0].mxu0 %v935
        %v1250 = vpop.f32.mrb[0].mxu0
        %v1251 = vadd.f32 0.0, %v1250
        %v1252 = vpop.f32.mrb[0].mxu0
        %v1253 = vpop.f32.mrb[0].mxu0
        %v1254 = vadd.f32 0.0, %v1253
        %v1255 = vpop.f32.mrb[0].mxu0
        %1256 = vmatprep.mubr.bf16.mxu0 0
        %1257 = vmatmul.mubr.bf16.gmra.mrb[0].mxu0 %v936
        %v1258 = vpop.f32.mrb[0].mxu0
        %v1259 = vadd.f32 0.0, %v1258
        %v1260 = vpop.f32.mrb[0].mxu0
        %v1261 = vpop.f32.mrb[0].mxu0
        %v1262 = vadd.f32 0.0, %v1261
        %v1263 = vpop.f32.mrb[0].mxu0
        %1264 = vmatprep.mubr.bf16.mxu0 0
        %1265 = vmatmul.mubr.bf16.gmra.mrb[0].mxu0 %v937
        %v1266 = vpop.f32.mrb[0].mxu0
        %v1267 = vadd.f32 0.0, %v1266
        %v1268 = vpop.f32.mrb[0].mxu0
        %v1269 = vpop.f32.mrb[0].mxu0
        %v1270 = vadd.f32 0.0, %v1269
        %v1271 = vpop.f32.mrb[0].mxu0
        %1272 = vmatprep.mubr.bf16.mxu0 0
        %1273 = vmatmul.mubr.bf16.gmra.mrb[0].mxu0 %v938
        %v1274 = vpop.f32.mrb[0].mxu0
        %v1275 = vadd.f32 0.0, %v1274
        %v1276 = vpop.f32.mrb[0].mxu0
        %v1277 = vpop.f32.mrb[0].mxu0
        %v1278 = vadd.f32 0.0, %v1277
        %v1279 = vpop.f32.mrb[0].mxu0
        %1280 = vmatprep.mubr.bf16.mxu0 0
        %1281 = vmatmul.mubr.bf16.gmra.mrb[0].mxu0 %v939
        %v1282 = vpop.f32.mrb[0].mxu0
        %v1283 = vadd.f32 0.0, %v1282
        %v1284 = vpop.f32.mrb[0].mxu0
        %v1285 = vpop.f32.mrb[0].mxu0
        %v1286 = vadd.f32 0.0, %v1285
        %v1287 = vpop.f32.mrb[0].mxu0
        %1288 = vmatprep.mubr.bf16.mxu0 0
        %1289 = vmatmul.mubr.bf16.gmra.mrb[0].mxu0 %v940
        %v1290 = vpop.f32.mrb[0].mxu0
        %v1291 = vadd.f32 0.0, %v1290
        %v1292 = vpop.f32.mrb[0].mxu0
        %v1293 = vpop.f32.mrb[0].mxu0
        %v1294 = vadd.f32 0.0, %v1293
        %v1295 = vpop.f32.mrb[0].mxu0
        %1296 = vmatprep.mubr.bf16.mxu0 0
        %1297 = vmatmul.mubr.bf16.gmra.mrb[0].mxu0 %v941
        %v1298 = vpop.f32.mrb[0].mxu0
        %v1299 = vadd.f32 0.0, %v1298
        %v1300 = vpop.f32.mrb[0].mxu0
        %v1301 = vpop.f32.mrb[0].mxu0
        %v1302 = vadd.f32 0.0, %v1301
        %v1303 = vpop.f32.mrb[0].mxu0
        %1304 = vmatprep.mubr.bf16.mxu0 0
        %1305 = vmatmul.mubr.bf16.gmra.mrb[0].mxu0 %v942
        %v1306 = vpop.f32.mrb[0].mxu0
        %v1307 = vadd.f32 0.0, %v1306
        %v1308 = vpop.f32.mrb[0].mxu0
        %v1309 = vpop.f32.mrb[0].mxu0
        %v1310 = vadd.f32 0.0, %v1309
        %v1311 = vpop.f32.mrb[0].mxu0
        %1312 = vmatprep.mubr.bf16.mxu0 0
        %1313 = vmatmul.mubr.bf16.gmra.mrb[0].mxu0 %v943
        %v1314 = vpop.f32.mrb[0].mxu0
        %v1315 = vadd.f32 0.0, %v1314
        %v1316 = vpop.f32.mrb[0].mxu0
        %v1317 = vpop.f32.mrb[0].mxu0
        %v1318 = vadd.f32 0.0, %v1317
        %v1319 = vpop.f32.mrb[0].mxu0
        %1320 = vmatprep.mubr.bf16.mxu0 0
        %1321 = vmatmul.mubr.bf16.gmra.mrb[0].mxu0 %v944
        %v1322 = vpop.f32.mrb[0].mxu0
        %v1323 = vadd.f32 0.0, %v1322
        %v1324 = vpop.f32.mrb[0].mxu0
        %v1325 = vpop.f32.mrb[0].mxu0
        %v1326 = vadd.f32 0.0, %v1325
        %v1327 = vpop.f32.mrb[0].mxu0
        %1328 = vmatprep.mubr.bf16.mxu0 0
        %1329 = vmatmul.mubr.bf16.gmra.mrb[0].mxu0 %v945
        %v1330 = vpop.f32.mrb[0].mxu0
        %v1331 = vadd.f32 0.0, %v1330
        %v1332 = vpop.f32.mrb[0].mxu0
        %v1333 = vpop.f32.mrb[0].mxu0
        %v1334 = vadd.f32 0.0, %v1333
        %v1335 = vpop.f32.mrb[0].mxu0
        %1336 = vmatprep.mubr.bf16.mxu0 0
        %1337 = vmatmul.mubr.bf16.gmra.mrb[0].mxu0 %v946
        %v1338 = vpop.f32.mrb[0].mxu0
        %v1339 = vadd.f32 0.0, %v1338
        %v1340 = vpop.f32.mrb[0].mxu0
        %v1341 = vpop.f32.mrb[0].mxu0
        %v1342 = vadd.f32 0.0, %v1341
        %v1343 = vpop.f32.mrb[0].mxu0
        %1344 = vmatprep.mubr.bf16.mxu0 0
        %1345 = vmatmul.mubr.bf16.gmra.mrb[0].mxu0 %v947
        %v1346 = vpop.f32.mrb[0].mxu0
        %v1347 = vadd.f32 0.0, %v1346
        %v1348 = vpop.f32.mrb[0].mxu0
        %v1349 = vpop.f32.mrb[0].mxu0
        %v1350 = vadd.f32 0.0, %v1349
        %v1351 = vpop.f32.mrb[0].mxu0
        %1352 = vmatprep.mubr.bf16.mxu0 0
        %1353 = vmatmul.mubr.bf16.gmra.mrb[0].mxu0 %v948
        %v1354 = vpop.f32.mrb[0].mxu0
        %v1355 = vadd.f32 0.0, %v1354
        %v1356 = vpop.f32.mrb[0].mxu0
        %v1357 = vpop.f32.mrb[0].mxu0
        %v1358 = vadd.f32 0.0, %v1357
        %v1359 = vpop.f32.mrb[0].mxu0
        %1360 = vmatprep.mubr.bf16.mxu0 0
        %1361 = vmatmul.mubr.bf16.gmra.mrb[0].mxu0 %v949
        %v1362 = vpop.f32.mrb[0].mxu0
        %v1363 = vadd.f32 0.0, %v1362
        %v1364 = vpop.f32.mrb[0].mxu0
        %v1365 = vpop.f32.mrb[0].mxu0
        %v1366 = vadd.f32 0.0, %v1365
        %v1367 = vpop.f32.mrb[0].mxu0
        %1368 = vmatprep.mubr.bf16.mxu0 0
        %1369 = vmatmul.mubr.bf16.gmra.mrb[0].mxu0 %v950
        %v1370 = vpop.f32.mrb[0].mxu0
        %v1371 = vadd.f32 0.0, %v1370
        %v1372 = vpop.f32.mrb[0].mxu0
        %v1373 = vpop.f32.mrb[0].mxu0
        %v1374 = vadd.f32 0.0, %v1373
        %v1375 = vpop.f32.mrb[0].mxu0
        %1376 = vmatprep.mubr.bf16.mxu0 0
        %1377 = vmatmul.mubr.bf16.gmra.mrb[0].mxu0 %v951
        %v1378 = vpop.f32.mrb[0].mxu0
        %v1379 = vadd.f32 0.0, %v1378
        %v1380 = vpop.f32.mrb[0].mxu0
        %v1381 = vpop.f32.mrb[0].mxu0
        %v1382 = vadd.f32 0.0, %v1381
        %v1383 = vpop.f32.mrb[0].mxu0
        %1384 = vmatprep.mubr.bf16.mxu0 0
        %1385 = vmatmul.mubr.bf16.gmra.mrb[0].mxu0 %v952
        %v1386 = vpop.f32.mrb[0].mxu0
        %v1387 = vadd.f32 0.0, %v1386
        %v1388 = vpop.f32.mrb[0].mxu0
        %v1389 = vpop.f32.mrb[0].mxu0
        %v1390 = vadd.f32 0.0, %v1389
        %v1391 = vpop.f32.mrb[0].mxu0
        %1392 = vmatprep.mubr.bf16.mxu0 0
        %1393 = vmatmul.mubr.bf16.gmra.mrb[0].mxu0 %v953
        %v1394 = vpop.f32.mrb[0].mxu0
        %v1395 = vadd.f32 0.0, %v1394
        %v1396 = vpop.f32.mrb[0].mxu0
        %v1397 = vpop.f32.mrb[0].mxu0
        %v1398 = vadd.f32 0.0, %v1397
        %v1399 = vpop.f32.mrb[0].mxu0
        %1400 = vmatprep.mubr.bf16.mxu0 0
        %1401 = vmatmul.mubr.bf16.gmra.mrb[0].mxu0 %v954
        %v1402 = vpop.f32.mrb[0].mxu0
        %v1403 = vadd.f32 0.0, %v1402
        %v1404 = vpop.f32.mrb[0].mxu0
        %v1405 = vpop.f32.mrb[0].mxu0
        %v1406 = vadd.f32 0.0, %v1405
        %v1407 = vpop.f32.mrb[0].mxu0
        %1408 = vmatprep.mubr.bf16.mxu0 0
        %1409 = vmatmul.mubr.bf16.gmra.mrb[0].mxu0 %v955
        %v1410 = vpop.f32.mrb[0].mxu0
        %v1411 = vadd.f32 0.0, %v1410
        %v1412 = vpop.f32.mrb[0].mxu0
        %v1413 = vpop.f32.mrb[0].mxu0
        %v1414 = vadd.f32 0.0, %v1413
        %v1415 = vpop.f32.mrb[0].mxu0
        %1416 = vmatprep.mubr.bf16.mxu0 0
        %1417 = vmatmul.mubr.bf16.gmra.mrb[0].mxu0 %v956
        %v1418 = vpop.f32.mrb[0].mxu0
        %v1419 = vadd.f32 0.0, %v1418
        %v1420 = vpop.f32.mrb[0].mxu0
        %v1421 = vpop.f32.mrb[0].mxu0
        %v1422 = vadd.f32 0.0, %v1421
        %v1423 = vpop.f32.mrb[0].mxu0
        %1424 = vmatprep.mubr.bf16.mxu0 0
        %1425 = vmatmul.mubr.bf16.gmra.mrb[0].mxu0 %v957
        %v1426 = vpop.f32.mrb[0].mxu0
        %v1427 = vadd.f32 0.0, %v1426
        %v1428 = vpop.f32.mrb[0].mxu0
        %v1429 = vpop.f32.mrb[0].mxu0
        %v1430 = vadd.f32 0.0, %v1429
        %v1431 = vpop.f32.mrb[0].mxu0
        %1432 = vmatprep.mubr.bf16.mxu0 0
        %1433 = vmatmul.mubr.bf16.gmra.mrb[0].mxu0 %v958
        %v1434 = vpop.f32.mrb[0].mxu0
        %v1435 = vadd.f32 0.0, %v1434
        %v1436 = vpop.f32.mrb[0].mxu0
        %v1437 = vpop.f32.mrb[0].mxu0
        %v1438 = vadd.f32 0.0, %v1437
        %v1439 = vpop.f32.mrb[0].mxu0
        %1440 = vmatprep.mubr.bf16.mxu0 0
        %1441 = vmatmul.mubr.bf16.gmra.mrb[0].mxu0 %v959
        %v1442 = vpop.f32.mrb[0].mxu0
        %v1443 = vadd.f32 0.0, %v1442
        %v1444 = vpop.f32.mrb[0].mxu0
        %v1445 = vpop.f32.mrb[0].mxu0
        %v1446 = vadd.f32 0.0, %v1445
        %v1447 = vpop.f32.mrb[0].mxu0
        %1448 = vmatprep.mubr.bf16.mxu0 0
        %1449 = vmatmul.mubr.bf16.gmra.mrb[0].mxu0 %v960
        %v1450 = vpop.f32.mrb[0].mxu0
        %v1451 = vadd.f32 0.0, %v1450
        %v1452 = vpop.f32.mrb[0].mxu0
        %v1453 = vpop.f32.mrb[0].mxu0
        %v1454 = vadd.f32 0.0, %v1453
        %v1455 = vpop.f32.mrb[0].mxu0
        %1456 = vmatprep.mubr.bf16.mxu0 0
        %1457 = vmatmul.mubr.bf16.gmra.mrb[0].mxu0 %v961
        %v1458 = vpop.f32.mrb[0].mxu0
        %v1459 = vadd.f32 0.0, %v1458
        %v1460 = vpop.f32.mrb[0].mxu0
        %v1461 = vpop.f32.mrb[0].mxu0
        %v1462 = vadd.f32 0.0, %v1461
        %v1463 = vpop.f32.mrb[0].mxu0
        %1464 = vmatprep.mubr.bf16.mxu0 0
        %1465 = vmatmul.mubr.bf16.gmra.mrb[0].mxu0 %v962
        %v1466 = vpop.f32.mrb[0].mxu0
        %v1467 = vadd.f32 0.0, %v1466
        %v1468 = vpop.f32.mrb[0].mxu0
        %v1469 = vpop.f32.mrb[0].mxu0
        %v1470 = vadd.f32 0.0, %v1469
        %v1471 = vpop.f32.mrb[0].mxu0
        %1472 = vmatprep.mubr.bf16.mxu0 0
        %1473 = vmatmul.mubr.bf16.gmra.mrb[0].mxu0 %v963
        %v1474 = vpop.f32.mrb[0].mxu0
        %v1475 = vadd.f32 0.0, %v1474
        %v1476 = vpop.f32.mrb[0].mxu0
        %v1477 = vpop.f32.mrb[0].mxu0
        %v1478 = vadd.f32 0.0, %v1477
        %v1479 = vpop.f32.mrb[0].mxu0
        %1480 = vmatprep.mubr.bf16.mxu0 0
        %1481 = vmatmul.mubr.bf16.gmra.mrb[0].mxu0 %v964
        %v1482 = vpop.f32.mrb[0].mxu0
        %v1483 = vadd.f32 0.0, %v1482
        %v1484 = vpop.f32.mrb[0].mxu0
        %v1485 = vpop.f32.mrb[0].mxu0
        %v1486 = vadd.f32 0.0, %v1485
        %v1487 = vpop.f32.mrb[0].mxu0
        %1488 = vmatprep.mubr.bf16.mxu0 0
        %1489 = vmatmul.mubr.bf16.gmra.mrb[0].mxu0 %v965
        %v1490 = vpop.f32.mrb[0].mxu0
        %v1491 = vadd.f32 0.0, %v1490
        %v1492 = vpop.f32.mrb[0].mxu0
        %v1493 = vpop.f32.mrb[0].mxu0
        %v1494 = vadd.f32 0.0, %v1493
        %v1495 = vpop.f32.mrb[0].mxu0
        %1496 = vmatprep.mubr.bf16.mxu0 0
        %1497 = vmatmul.mubr.bf16.gmra.mrb[0].mxu0 %v966
        %v1498 = vpop.f32.mrb[0].mxu0
        %v1499 = vadd.f32 0.0, %v1498
        %v1500 = vpop.f32.mrb[0].mxu0
        %v1501 = vpop.f32.mrb[0].mxu0
        %v1502 = vadd.f32 0.0, %v1501
        %v1503 = vpop.f32.mrb[0].mxu0
        %1504 = vmatprep.mubr.bf16.mxu0 0
        %1505 = vmatmul.mubr.bf16.gmra.mrb[0].mxu0 %v967
        %v1506 = vpop.f32.mrb[0].mxu0
        %v1507 = vadd.f32 0.0, %v1506
        %v1508 = vpop.f32.mrb[0].mxu0
        %v1509 = vpop.f32.mrb[0].mxu0
        %v1510 = vadd.f32 0.0, %v1509
        %v1511 = vpop.f32.mrb[0].mxu0
        %1512 = vmatprep.mubr.bf16.mxu0 0
        %1513 = vmatmul.mubr.bf16.gmra.mrb[0].mxu0 %v968
        %v1514 = vpop.f32.mrb[0].mxu0
        %v1515 = vadd.f32 0.0, %v1514
        %v1516 = vpop.f32.mrb[0].mxu0
        %v1517 = vpop.f32.mrb[0].mxu0
        %v1518 = vadd.f32 0.0, %v1517
        %v1519 = vpop.f32.mrb[0].mxu0
        %1520 = vmatprep.mubr.bf16.mxu0 0
        %1521 = vmatmul.mubr.bf16.gmra.mrb[0].mxu0 %v969
        %v1522 = vpop.f32.mrb[0].mxu0
        %v1523 = vadd.f32 0.0, %v1522
        %v1524 = vpop.f32.mrb[0].mxu0
        %v1525 = vpop.f32.mrb[0].mxu0
        %v1526 = vadd.f32 0.0, %v1525
        %v1527 = vpop.f32.mrb[0].mxu0
        %1528 = vmatprep.mubr.bf16.mxu0 0
        %1529 = vmatmul.mubr.bf16.gmra.mrb[0].mxu0 %v970
        %v1530 = vpop.f32.mrb[0].mxu0
        %v1531 = vadd.f32 0.0, %v1530
        %v1532 = vpop.f32.mrb[0].mxu0
        %v1533 = vpop.f32.mrb[0].mxu0
        %v1534 = vadd.f32 0.0, %v1533
        %v1535 = vpop.f32.mrb[0].mxu0
        %1536 = vmatprep.mubr.bf16.mxu0 0
        %1537 = vmatmul.mubr.bf16.gmra.mrb[0].mxu0 %v971
        %v1538 = vpop.f32.mrb[0].mxu0
        %v1539 = vadd.f32 0.0, %v1538
        %v1540 = vpop.f32.mrb[0].mxu0
        %v1541 = vpop.f32.mrb[0].mxu0
        %v1542 = vadd.f32 0.0, %v1541
        %v1543 = vpop.f32.mrb[0].mxu0
        %1544 = vmatprep.mubr.bf16.mxu0 0
        %1545 = vmatmul.mubr.bf16.gmra.mrb[0].mxu0 %v972
        %v1546 = vpop.f32.mrb[0].mxu0
        %v1547 = vadd.f32 0.0, %v1546
        %v1548 = vpop.f32.mrb[0].mxu0
        %v1549 = vpop.f32.mrb[0].mxu0
        %v1550 = vadd.f32 0.0, %v1549
        %v1551 = vpop.f32.mrb[0].mxu0
        %1552 = vmatprep.mubr.bf16.mxu0 0
        %1553 = vmatmul.mubr.bf16.gmra.mrb[0].mxu0 %v973
        %v1554 = vpop.f32.mrb[0].mxu0
        %v1555 = vadd.f32 0.0, %v1554
        %v1556 = vpop.f32.mrb[0].mxu0
        %v1557 = vpop.f32.mrb[0].mxu0
        %v1558 = vadd.f32 0.0, %v1557
        %v1559 = vpop.f32.mrb[0].mxu0
        %1560 = vmatprep.mubr.bf16.mxu0 0
        %1561 = vmatmul.mubr.bf16.gmra.mrb[0].mxu0 %v974
        %v1562 = vpop.f32.mrb[0].mxu0
        %v1563 = vadd.f32 0.0, %v1562
        %v1564 = vpop.f32.mrb[0].mxu0
        %v1565 = vpop.f32.mrb[0].mxu0
        %v1566 = vadd.f32 0.0, %v1565
        %v1567 = vpop.f32.mrb[0].mxu0
        %1568 = vmatprep.mubr.bf16.mxu0 0
        %1569 = vmatmul.mubr.bf16.gmra.mrb[0].mxu0 %v975
        %v1570 = vpop.f32.mrb[0].mxu0
        %v1571 = vadd.f32 0.0, %v1570
        %v1572 = vpop.f32.mrb[0].mxu0
        %v1573 = vpop.f32.mrb[0].mxu0
        %v1574 = vadd.f32 0.0, %v1573
        %v1575 = vpop.f32.mrb[0].mxu0
        %1576 = vmatprep.mubr.bf16.mxu0 0
        %1577 = vmatmul.mubr.bf16.gmra.mrb[0].mxu0 %v976
        %v1578 = vpop.f32.mrb[0].mxu0
        %v1579 = vadd.f32 0.0, %v1578
        %v1580 = vpop.f32.mrb[0].mxu0
        %v1581 = vpop.f32.mrb[0].mxu0
        %v1582 = vadd.f32 0.0, %v1581
        %v1583 = vpop.f32.mrb[0].mxu0
        %1584 = vmatprep.mubr.bf16.mxu0 0
        %1585 = vmatmul.mubr.bf16.gmra.mrb[0].mxu0 %v977
        %v1586 = vpop.f32.mrb[0].mxu0
        %v1587 = vadd.f32 0.0, %v1586
        %v1588 = vpop.f32.mrb[0].mxu0
        %v1589 = vpop.f32.mrb[0].mxu0
        %v1590 = vadd.f32 0.0, %v1589
        %v1591 = vpop.f32.mrb[0].mxu0
        %1592 = vmatprep.mubr.bf16.mxu0 0
        %1593 = vmatmul.mubr.bf16.gmra.mrb[0].mxu0 %v978
        %v1594 = vpop.f32.mrb[0].mxu0
        %v1595 = vadd.f32 0.0, %v1594
        %v1596 = vpop.f32.mrb[0].mxu0
        %v1597 = vpop.f32.mrb[0].mxu0
        %v1598 = vadd.f32 0.0, %v1597
        %v1599 = vpop.f32.mrb[0].mxu0
        %1600 = vmatprep.mubr.bf16.mxu0 0
        %1601 = vmatmul.mubr.bf16.gmra.mrb[0].mxu0 %v979
        %v1602 = vpop.f32.mrb[0].mxu0
        %v1603 = vadd.f32 0.0, %v1602
        %v1604 = vpop.f32.mrb[0].mxu0
        %v1605 = vpop.f32.mrb[0].mxu0
        %v1606 = vadd.f32 0.0, %v1605
        %v1607 = vpop.f32.mrb[0].mxu0
        %1608 = vmatprep.mubr.bf16.mxu0 0
        %1609 = vmatmul.mubr.bf16.gmra.mrb[0].mxu0 %v980
        %v1610 = vpop.f32.mrb[0].mxu0
        %v1611 = vadd.f32 0.0, %v1610
        %v1612 = vpop.f32.mrb[0].mxu0
        %v1613 = vpop.f32.mrb[0].mxu0
        %v1614 = vadd.f32 0.0, %v1613
        %v1615 = vpop.f32.mrb[0].mxu0
        %1616 = vmatprep.mubr.bf16.mxu0 0
        %1617 = vmatmul.mubr.bf16.gmra.mrb[0].mxu0 %v981
        %v1618 = vpop.f32.mrb[0].mxu0
        %v1619 = vadd.f32 0.0, %v1618
        %v1620 = vpop.f32.mrb[0].mxu0
        %v1621 = vpop.f32.mrb[0].mxu0
        %v1622 = vadd.f32 0.0, %v1621
        %v1623 = vpop.f32.mrb[0].mxu0
        %1624 = vmatprep.mubr.bf16.mxu0 0
        %1625 = vmatmul.mubr.bf16.gmra.mrb[0].mxu0 %v982
        %v1626 = vpop.f32.mrb[0].mxu0
        %v1627 = vadd.f32 0.0, %v1626
        %v1628 = vpop.f32.mrb[0].mxu0
        %v1629 = vpop.f32.mrb[0].mxu0
        %v1630 = vadd.f32 0.0, %v1629
        %v1631 = vpop.f32.mrb[0].mxu0
        %1632 = vmatprep.mubr.bf16.mxu0 0
        %1633 = vmatmul.mubr.bf16.gmra.mrb[0].mxu0 %v983
        %v1634 = vpop.f32.mrb[0].mxu0
        %v1635 = vadd.f32 0.0, %v1634
        %v1636 = vpop.f32.mrb[0].mxu0
        %v1637 = vpop.f32.mrb[0].mxu0
        %v1638 = vadd.f32 0.0, %v1637
        %v1639 = vpop.f32.mrb[0].mxu0
        %1640 = vdwg.mxu0
        %v1641 = vadd.f32 %v392, %v1131
        %v1642 = vadd.f32 %v393, %v1134
        %v1643 = vadd.f32 %v394, %v1139
        %v1644 = vadd.f32 %v395, %v1142
        %v1645 = vadd.f32 %v396, %v1147
        %v1646 = vadd.f32 %v397, %v1150
        %v1647 = vadd.f32 %v398, %v1155
        %v1648 = vadd.f32 %v399, %v1158
        %v1649 = vadd.f32 %v400, %v1163
        %v1650 = vadd.f32 %v401, %v1166
        %v1651 = vadd.f32 %v402, %v1171
        %v1652 = vadd.f32 %v403, %v1174
        %v1653 = vadd.f32 %v404, %v1179
        %v1654 = vadd.f32 %v405, %v1182
        %v1655 = vadd.f32 %v406, %v1187
        %v1656 = vadd.f32 %v407, %v1190
        %v1657 = vadd.f32 %v408, %v1195
        %v1658 = vadd.f32 %v409, %v1198
        %v1659 = vadd.f32 %v410, %v1203
        %v1660 = vadd.f32 %v411, %v1206
        %v1661 = vadd.f32 %v412, %v1211
        %v1662 = vadd.f32 %v413, %v1214
        %v1663 = vadd.f32 %v414, %v1219
        %v1664 = vadd.f32 %v415, %v1222
        %v1665 = vadd.f32 %v416, %v1227
        %v1666 = vadd.f32 %v417, %v1230
        %v1667 = vadd.f32 %v418, %v1235
        %v1668 = vadd.f32 %v419, %v1238
        %v1669 = vadd.f32 %v420, %v1243
        %v1670 = vadd.f32 %v421, %v1246
        %v1671 = vadd.f32 %v422, %v1251
        %v1672 = vadd.f32 %v423, %v1254
        %v1673 = vadd.f32 %v424, %v1259
        %v1674 = vadd.f32 %v425, %v1262
        %v1675 = vadd.f32 %v426, %v1267
        %v1676 = vadd.f32 %v427, %v1270
        %v1677 = vadd.f32 %v428, %v1275
        %v1678 = vadd.f32 %v429, %v1278
        %v1679 = vadd.f32 %v430, %v1283
        %v1680 = vadd.f32 %v431, %v1286
        %v1681 = vadd.f32 %v432, %v1291
        %v1682 = vadd.f32 %v433, %v1294
        %v1683 = vadd.f32 %v434, %v1299
        %v1684 = vadd.f32 %v435, %v1302
        %v1685 = vadd.f32 %v436, %v1307
        %v1686 = vadd.f32 %v437, %v1310
        %v1687 = vadd.f32 %v438, %v1315
        %v1688 = vadd.f32 %v439, %v1318
        %v1689 = vadd.f32 %v440, %v1323
        %v1690 = vadd.f32 %v441, %v1326
        %v1691 = vadd.f32 %v442, %v1331
        %v1692 = vadd.f32 %v443, %v1334
        %v1693 = vadd.f32 %v444, %v1339
        %v1694 = vadd.f32 %v445, %v1342
        %v1695 = vadd.f32 %v446, %v1347
        %v1696 = vadd.f32 %v447, %v1350
        %v1697 = vadd.f32 %v448, %v1355
        %v1698 = vadd.f32 %v449, %v1358
        %v1699 = vadd.f32 %v450, %v1363
        %v1700 = vadd.f32 %v451, %v1366
        %v1701 = vadd.f32 %v452, %v1371
        %v1702 = vadd.f32 %v453, %v1374
        %v1703 = vadd.f32 %v454, %v1379
        %v1704 = vadd.f32 %v455, %v1382
        %v1705 = vadd.f32 %v456, %v1387
        %v1706 = vadd.f32 %v457, %v1390
        %v1707 = vadd.f32 %v458, %v1395
        %v1708 = vadd.f32 %v459, %v1398
        %v1709 = vadd.f32 %v460, %v1403
        %v1710 = vadd.f32 %v461, %v1406
        %v1711 = vadd.f32 %v462, %v1411
        %v1712 = vadd.f32 %v463, %v1414
        %v1713 = vadd.f32 %v464, %v1419
        %v1714 = vadd.f32 %v465, %v1422
        %v1715 = vadd.f32 %v466, %v1427
        %v1716 = vadd.f32 %v467, %v1430
        %v1717 = vadd.f32 %v468, %v1435
        %v1718 = vadd.f32 %v469, %v1438
        %v1719 = vadd.f32 %v470, %v1443
        %v1720 = vadd.f32 %v471, %v1446
        %v1721 = vadd.f32 %v472, %v1451
        %v1722 = vadd.f32 %v473, %v1454
        %v1723 = vadd.f32 %v474, %v1459
        %v1724 = vadd.f32 %v475, %v1462
        %v1725 = vadd.f32 %v476, %v1467
        %v1726 = vadd.f32 %v477, %v1470
        %v1727 = vadd.f32 %v478, %v1475
        %v1728 = vadd.f32 %v479, %v1478
        %v1729 = vadd.f32 %v480, %v1483
        %v1730 = vadd.f32 %v481, %v1486
        %v1731 = vadd.f32 %v482, %v1491
        %v1732 = vadd.f32 %v483, %v1494
        %v1733 = vadd.f32 %v484, %v1499
        %v1734 = vadd.f32 %v485, %v1502
        %v1735 = vadd.f32 %v486, %v1507
        %v1736 = vadd.f32 %v487, %v1510
        %v1737 = vadd.f32 %v488, %v1515
        %v1738 = vadd.f32 %v489, %v1518
        %v1739 = vadd.f32 %v490, %v1523
        %v1740 = vadd.f32 %v491, %v1526
        %v1741 = vadd.f32 %v492, %v1531
        %v1742 = vadd.f32 %v493, %v1534
        %v1743 = vadd.f32 %v494, %v1539
        %v1744 = vadd.f32 %v495, %v1542
        %v1745 = vadd.f32 %v496, %v1547
        %v1746 = vadd.f32 %v497, %v1550
        %v1747 = vadd.f32 %v498, %v1555
        %v1748 = vadd.f32 %v499, %v1558
        %v1749 = vadd.f32 %v500, %v1563
        %v1750 = vadd.f32 %v501, %v1566
        %v1751 = vadd.f32 %v502, %v1571
        %v1752 = vadd.f32 %v503, %v1574
        %v1753 = vadd.f32 %v504, %v1579
        %v1754 = vadd.f32 %v505, %v1582
        %v1755 = vadd.f32 %v506, %v1587
        %v1756 = vadd.f32 %v507, %v1590
        %v1757 = vadd.f32 %v508, %v1595
        %v1758 = vadd.f32 %v509, %v1598
        %v1759 = vadd.f32 %v510, %v1603
        %v1760 = vadd.f32 %v511, %v1606
        %v1761 = vadd.f32 %v512, %v1611
        %v1762 = vadd.f32 %v513, %v1614
        %v1763 = vadd.f32 %v514, %v1619
        %v1764 = vadd.f32 %v515, %v1622
        %v1765 = vadd.f32 %v516, %v1627
        %v1766 = vadd.f32 %v517, %v1630
        %v1767 = vadd.f32 %v518, %v1635
        %v1768 = vadd.f32 %v519, %v1638
        %1769 = vst [vmem:[#allocation2] sm:$0xff] %v1641
        %1770 = vst [vmem:[#allocation2 + $0x8] sm:$0xff] %v1642
        %1771 = vst [vmem:[#allocation2 + $0x10] sm:$0xff] %v1643
        %1772 = vst [vmem:[#allocation2 + $0x18] sm:$0xff] %v1644
        %1773 = vst [vmem:[#allocation2 + $0x20] sm:$0xff] %v1645
        %1774 = vst [vmem:[#allocation2 + $0x28] sm:$0xff] %v1646
        %1775 = vst [vmem:[#allocation2 + $0x30] sm:$0xff] %v1647
        %1776 = vst [vmem:[#allocation2 + $0x38] sm:$0xff] %v1648
        %1777 = vst [vmem:[#allocation2 + $0x40] sm:$0xff] %v1649
        %1778 = vst [vmem:[#allocation2 + $0x48] sm:$0xff] %v1650
        %1779 = vst [vmem:[#allocation2 + $0x50] sm:$0xff] %v1651
        %1780 = vst [vmem:[#allocation2 + $0x58] sm:$0xff] %v1652
        %1781 = vst [vmem:[#allocation2 + $0x60] sm:$0xff] %v1653
        %1782 = vst [vmem:[#allocation2 + $0x68] sm:$0xff] %v1654
        %1783 = vst [vmem:[#allocation2 + $0x70] sm:$0xff] %v1655
        %1784 = vst [vmem:[#allocation2 + $0x78] sm:$0xff] %v1656
        %1785 = vst [vmem:[#allocation2 + $0x80] sm:$0xff] %v1657
        %1786 = vst [vmem:[#allocation2 + $0x88] sm:$0xff] %v1658
        %1787 = vst [vmem:[#allocation2 + $0x90] sm:$0xff] %v1659
        %1788 = vst [vmem:[#allocation2 + $0x98] sm:$0xff] %v1660
        %1789 = vst [vmem:[#allocation2 + $0xa0] sm:$0xff] %v1661
        %1790 = vst [vmem:[#allocation2 + $0xa8] sm:$0xff] %v1662
        %1791 = vst [vmem:[#allocation2 + $0xb0] sm:$0xff] %v1663
        %1792 = vst [vmem:[#allocation2 + $0xb8] sm:$0xff] %v1664
        %1793 = vst [vmem:[#allocation2 + $0xc0] sm:$0xff] %v1665
        %1794 = vst [vmem:[#allocation2 + $0xc8] sm:$0xff] %v1666
        %1795 = vst [vmem:[#allocation2 + $0xd0] sm:$0xff] %v1667
        %1796 = vst [vmem:[#allocation2 + $0xd8] sm:$0xff] %v1668
        %1797 = vst [vmem:[#allocation2 + $0xe0] sm:$0xff] %v1669
        %1798 = vst [vmem:[#allocation2 + $0xe8] sm:$0xff] %v1670
        %1799 = vst [vmem:[#allocation2 + $0xf0] sm:$0xff] %v1671
        %1800 = vst [vmem:[#allocation2 + $0xf8] sm:$0xff] %v1672
        %1801 = vst [vmem:[#allocation2 + $0x100] sm:$0xff] %v1673
        %1802 = vst [vmem:[#allocation2 + $0x108] sm:$0xff] %v1674
        %1803 = vst [vmem:[#allocation2 + $0x110] sm:$0xff] %v1675
        %1804 = vst [vmem:[#allocation2 + $0x118] sm:$0xff] %v1676
        %1805 = vst [vmem:[#allocation2 + $0x120] sm:$0xff] %v1677
        %1806 = vst [vmem:[#allocation2 + $0x128] sm:$0xff] %v1678
        %1807 = vst [vmem:[#allocation2 + $0x130] sm:$0xff] %v1679
        %1808 = vst [vmem:[#allocation2 + $0x138] sm:$0xff] %v1680
        %1809 = vst [vmem:[#allocation2 + $0x140] sm:$0xff] %v1681
        %1810 = vst [vmem:[#allocation2 + $0x148] sm:$0xff] %v1682
        %1811 = vst [vmem:[#allocation2 + $0x150] sm:$0xff] %v1683
        %1812 = vst [vmem:[#allocation2 + $0x158] sm:$0xff] %v1684
        %1813 = vst [vmem:[#allocation2 + $0x160] sm:$0xff] %v1685
        %1814 = vst [vmem:[#allocation2 + $0x168] sm:$0xff] %v1686
        %1815 = vst [vmem:[#allocation2 + $0x170] sm:$0xff] %v1687
        %1816 = vst [vmem:[#allocation2 + $0x178] sm:$0xff] %v1688
        %1817 = vst [vmem:[#allocation2 + $0x180] sm:$0xff] %v1689
        %1818 = vst [vmem:[#allocation2 + $0x188] sm:$0xff] %v1690
        %1819 = vst [vmem:[#allocation2 + $0x190] sm:$0xff] %v1691
        %1820 = vst [vmem:[#allocation2 + $0x198] sm:$0xff] %v1692
        %1821 = vst [vmem:[#allocation2 + $0x1a0] sm:$0xff] %v1693
        %1822 = vst [vmem:[#allocation2 + $0x1a8] sm:$0xff] %v1694
        %1823 = vst [vmem:[#allocation2 + $0x1b0] sm:$0xff] %v1695
        %1824 = vst [vmem:[#allocation2 + $0x1b8] sm:$0xff] %v1696
        %1825 = vst [vmem:[#allocation2 + $0x1c0] sm:$0xff] %v1697
        %1826 = vst [vmem:[#allocation2 + $0x1c8] sm:$0xff] %v1698
        %1827 = vst [vmem:[#allocation2 + $0x1d0] sm:$0xff] %v1699
        %1828 = vst [vmem:[#allocation2 + $0x1d8] sm:$0xff] %v1700
        %1829 = vst [vmem:[#allocation2 + $0x1e0] sm:$0xff] %v1701
        %1830 = vst [vmem:[#allocation2 + $0x1e8] sm:$0xff] %v1702
        %1831 = vst [vmem:[#allocation2 + $0x1f0] sm:$0xff] %v1703
        %1832 = vst [vmem:[#allocation2 + $0x1f8] sm:$0xff] %v1704
        %1833 = vst [vmem:[#allocation2 + $0x200] sm:$0xff] %v1705
        %1834 = vst [vmem:[#allocation2 + $0x208] sm:$0xff] %v1706
        %1835 = vst [vmem:[#allocation2 + $0x210] sm:$0xff] %v1707
        %1836 = vst [vmem:[#allocation2 + $0x218] sm:$0xff] %v1708
        %1837 = vst [vmem:[#allocation2 + $0x220] sm:$0xff] %v1709
        %1838 = vst [vmem:[#allocation2 + $0x228] sm:$0xff] %v1710
        %1839 = vst [vmem:[#allocation2 + $0x230] sm:$0xff] %v1711
        %1840 = vst [vmem:[#allocation2 + $0x238] sm:$0xff] %v1712
        %1841 = vst [vmem:[#allocation2 + $0x240] sm:$0xff] %v1713
        %1842 = vst [vmem:[#allocation2 + $0x248] sm:$0xff] %v1714
        %1843 = vst [vmem:[#allocation2 + $0x250] sm:$0xff] %v1715
        %1844 = vst [vmem:[#allocation2 + $0x258] sm:$0xff] %v1716
        %1845 = vst [vmem:[#allocation2 + $0x260] sm:$0xff] %v1717
        %1846 = vst [vmem:[#allocation2 + $0x268] sm:$0xff] %v1718
        %1847 = vst [vmem:[#allocation2 + $0x270] sm:$0xff] %v1719
        %1848 = vst [vmem:[#allocation2 + $0x278] sm:$0xff] %v1720
        %1849 = vst [vmem:[#allocation2 + $0x280] sm:$0xff] %v1721
        %1850 = vst [vmem:[#allocation2 + $0x288] sm:$0xff] %v1722
        %1851 = vst [vmem:[#allocation2 + $0x290] sm:$0xff] %v1723
        %1852 = vst [vmem:[#allocation2 + $0x298] sm:$0xff] %v1724
        %1853 = vst [vmem:[#allocation2 + $0x2a0] sm:$0xff] %v1725
        %1854 = vst [vmem:[#allocation2 + $0x2a8] sm:$0xff] %v1726
        %1855 = vst [vmem:[#allocation2 + $0x2b0] sm:$0xff] %v1727
        %1856 = vst [vmem:[#allocation2 + $0x2b8] sm:$0xff] %v1728
        %1857 = vst [vmem:[#allocation2 + $0x2c0] sm:$0xff] %v1729
        %1858 = vst [vmem:[#allocation2 + $0x2c8] sm:$0xff] %v1730
        %1859 = vst [vmem:[#allocation2 + $0x2d0] sm:$0xff] %v1731
        %1860 = vst [vmem:[#allocation2 + $0x2d8] sm:$0xff] %v1732
        %1861 = vst [vmem:[#allocation2 + $0x2e0] sm:$0xff] %v1733
        %1862 = vst [vmem:[#allocation2 + $0x2e8] sm:$0xff] %v1734
        %1863 = vst [vmem:[#allocation2 + $0x2f0] sm:$0xff] %v1735
        %1864 = vst [vmem:[#allocation2 + $0x2f8] sm:$0xff] %v1736
        %1865 = vst [vmem:[#allocation2 + $0x300] sm:$0xff] %v1737
        %1866 = vst [vmem:[#allocation2 + $0x308] sm:$0xff] %v1738
        %1867 = vst [vmem:[#allocation2 + $0x310] sm:$0xff] %v1739
        %1868 = vst [vmem:[#allocation2 + $0x318] sm:$0xff] %v1740
        %1869 = vst [vmem:[#allocation2 + $0x320] sm:$0xff] %v1741
        %1870 = vst [vmem:[#allocation2 + $0x328] sm:$0xff] %v1742
        %1871 = vst [vmem:[#allocation2 + $0x330] sm:$0xff] %v1743
        %1872 = vst [vmem:[#allocation2 + $0x338] sm:$0xff] %v1744
        %1873 = vst [vmem:[#allocation2 + $0x340] sm:$0xff] %v1745
        %1874 = vst [vmem:[#allocation2 + $0x348] sm:$0xff] %v1746
        %1875 = vst [vmem:[#allocation2 + $0x350] sm:$0xff] %v1747
        %1876 = vst [vmem:[#allocation2 + $0x358] sm:$0xff] %v1748
        %1877 = vst [vmem:[#allocation2 + $0x360] sm:$0xff] %v1749
        %1878 = vst [vmem:[#allocation2 + $0x368] sm:$0xff] %v1750
        %1879 = vst [vmem:[#allocation2 + $0x370] sm:$0xff] %v1751
        %1880 = vst [vmem:[#allocation2 + $0x378] sm:$0xff] %v1752
        %1881 = vst [vmem:[#allocation2 + $0x380] sm:$0xff] %v1753
        %1882 = vst [vmem:[#allocation2 + $0x388] sm:$0xff] %v1754
        %1883 = vst [vmem:[#allocation2 + $0x390] sm:$0xff] %v1755
        %1884 = vst [vmem:[#allocation2 + $0x398] sm:$0xff] %v1756
        %1885 = vst [vmem:[#allocation2 + $0x3a0] sm:$0xff] %v1757
        %1886 = vst [vmem:[#allocation2 + $0x3a8] sm:$0xff] %v1758
        %1887 = vst [vmem:[#allocation2 + $0x3b0] sm:$0xff] %v1759
        %1888 = vst [vmem:[#allocation2 + $0x3b8] sm:$0xff] %v1760
        %1889 = vst [vmem:[#allocation2 + $0x3c0] sm:$0xff] %v1761
        %1890 = vst [vmem:[#allocation2 + $0x3c8] sm:$0xff] %v1762
        %1891 = vst [vmem:[#allocation2 + $0x3d0] sm:$0xff] %v1763
        %1892 = vst [vmem:[#allocation2 + $0x3d8] sm:$0xff] %v1764
        %1893 = vst [vmem:[#allocation2 + $0x3e0] sm:$0xff] %v1765
        %1894 = vst [vmem:[#allocation2 + $0x3e8] sm:$0xff] %v1766
        %1895 = vst [vmem:[#allocation2 + $0x3f0] sm:$0xff] %v1767
        %1896 = vst [vmem:[#allocation2 + $0x3f8] sm:$0xff] %v1768
        // Predicated region
        $region45: #{tpu_custom_call.1} parent=31 // pred_check
          %p1897 = pneg %p260
        $region46: #{tpu_custom_call.1} parent=31 // pred_check_branch
          %1899 = sbr.rel (%p1897) target = $region48
        $region47: #{tpu_custom_call.1} parent=31 // pred_region
          %v1900 = vld [vmem:[#allocation2] sm:$0xff]
          %v1901 = vld [vmem:[#allocation2 + $0x8] sm:$0xff]
          %v1902 = vld [vmem:[#allocation2 + $0x10] sm:$0xff]
          %v1903 = vld [vmem:[#allocation2 + $0x18] sm:$0xff]
          %v1904 = vld [vmem:[#allocation2 + $0x20] sm:$0xff]
          %v1905 = vld [vmem:[#allocation2 + $0x28] sm:$0xff]
          %v1906 = vld [vmem:[#allocation2 + $0x30] sm:$0xff]
          %v1907 = vld [vmem:[#allocation2 + $0x38] sm:$0xff]
          %v1908 = vld [vmem:[#allocation2 + $0x40] sm:$0xff]
          %v1909 = vld [vmem:[#allocation2 + $0x48] sm:$0xff]
          %v1910 = vld [vmem:[#allocation2 + $0x50] sm:$0xff]
          %v1911 = vld [vmem:[#allocation2 + $0x58] sm:$0xff]
          %v1912 = vld [vmem:[#allocation2 + $0x60] sm:$0xff]
          %v1913 = vld [vmem:[#allocation2 + $0x68] sm:$0xff]
          %v1914 = vld [vmem:[#allocation2 + $0x70] sm:$0xff]
          %v1915 = vld [vmem:[#allocation2 + $0x78] sm:$0xff]
          %v1916 = vld [vmem:[#allocation2 + $0x80] sm:$0xff]
          %v1917 = vld [vmem:[#allocation2 + $0x88] sm:$0xff]
          %v1918 = vld [vmem:[#allocation2 + $0x90] sm:$0xff]
          %v1919 = vld [vmem:[#allocation2 + $0x98] sm:$0xff]
          %v1920 = vld [vmem:[#allocation2 + $0xa0] sm:$0xff]
          %v1921 = vld [vmem:[#allocation2 + $0xa8] sm:$0xff]
          %v1922 = vld [vmem:[#allocation2 + $0xb0] sm:$0xff]
          %v1923 = vld [vmem:[#allocation2 + $0xb8] sm:$0xff]
          %v1924 = vld [vmem:[#allocation2 + $0xc0] sm:$0xff]
          %v1925 = vld [vmem:[#allocation2 + $0xc8] sm:$0xff]
          %v1926 = vld [vmem:[#allocation2 + $0xd0] sm:$0xff]
          %v1927 = vld [vmem:[#allocation2 + $0xd8] sm:$0xff]
          %v1928 = vld [vmem:[#allocation2 + $0xe0] sm:$0xff]
          %v1929 = vld [vmem:[#allocation2 + $0xe8] sm:$0xff]
          %v1930 = vld [vmem:[#allocation2 + $0xf0] sm:$0xff]
          %v1931 = vld [vmem:[#allocation2 + $0xf8] sm:$0xff]
          %v1932 = vld [vmem:[#allocation2 + $0x100] sm:$0xff]
          %v1933 = vld [vmem:[#allocation2 + $0x108] sm:$0xff]
          %v1934 = vld [vmem:[#allocation2 + $0x110] sm:$0xff]
          %v1935 = vld [vmem:[#allocation2 + $0x118] sm:$0xff]
          %v1936 = vld [vmem:[#allocation2 + $0x120] sm:$0xff]
          %v1937 = vld [vmem:[#allocation2 + $0x128] sm:$0xff]
          %v1938 = vld [vmem:[#allocation2 + $0x130] sm:$0xff]
          %v1939 = vld [vmem:[#allocation2 + $0x138] sm:$0xff]
          %v1940 = vld [vmem:[#allocation2 + $0x140] sm:$0xff]
          %v1941 = vld [vmem:[#allocation2 + $0x148] sm:$0xff]
          %v1942 = vld [vmem:[#allocation2 + $0x150] sm:$0xff]
          %v1943 = vld [vmem:[#allocation2 + $0x158] sm:$0xff]
          %v1944 = vld [vmem:[#allocation2 + $0x160] sm:$0xff]
          %v1945 = vld [vmem:[#allocation2 + $0x168] sm:$0xff]
          %v1946 = vld [vmem:[#allocation2 + $0x170] sm:$0xff]
          %v1947 = vld [vmem:[#allocation2 + $0x178] sm:$0xff]
          %v1948 = vld [vmem:[#allocation2 + $0x180] sm:$0xff]
          %v1949 = vld [vmem:[#allocation2 + $0x188] sm:$0xff]
          %v1950 = vld [vmem:[#allocation2 + $0x190] sm:$0xff]
          %v1951 = vld [vmem:[#allocation2 + $0x198] sm:$0xff]
          %v1952 = vld [vmem:[#allocation2 + $0x1a0] sm:$0xff]
          %v1953 = vld [vmem:[#allocation2 + $0x1a8] sm:$0xff]
          %v1954 = vld [vmem:[#allocation2 + $0x1b0] sm:$0xff]
          %v1955 = vld [vmem:[#allocation2 + $0x1b8] sm:$0xff]
          %v1956 = vld [vmem:[#allocation2 + $0x1c0] sm:$0xff]
          %v1957 = vld [vmem:[#allocation2 + $0x1c8] sm:$0xff]
          %v1958 = vld [vmem:[#allocation2 + $0x1d0] sm:$0xff]
          %v1959 = vld [vmem:[#allocation2 + $0x1d8] sm:$0xff]
          %v1960 = vld [vmem:[#allocation2 + $0x1e0] sm:$0xff]
          %v1961 = vld [vmem:[#allocation2 + $0x1e8] sm:$0xff]
          %v1962 = vld [vmem:[#allocation2 + $0x1f0] sm:$0xff]
          %v1963 = vld [vmem:[#allocation2 + $0x1f8] sm:$0xff]
          %v1964 = vld [vmem:[#allocation2 + $0x200] sm:$0xff]
          %v1965 = vld [vmem:[#allocation2 + $0x208] sm:$0xff]
          %v1966 = vld [vmem:[#allocation2 + $0x210] sm:$0xff]
          %v1967 = vld [vmem:[#allocation2 + $0x218] sm:$0xff]
          %v1968 = vld [vmem:[#allocation2 + $0x220] sm:$0xff]
          %v1969 = vld [vmem:[#allocation2 + $0x228] sm:$0xff]
          %v1970 = vld [vmem:[#allocation2 + $0x230] sm:$0xff]
          %v1971 = vld [vmem:[#allocation2 + $0x238] sm:$0xff]
          %v1972 = vld [vmem:[#allocation2 + $0x240] sm:$0xff]
          %v1973 = vld [vmem:[#allocation2 + $0x248] sm:$0xff]
          %v1974 = vld [vmem:[#allocation2 + $0x250] sm:$0xff]
          %v1975 = vld [vmem:[#allocation2 + $0x258] sm:$0xff]
          %v1976 = vld [vmem:[#allocation2 + $0x260] sm:$0xff]
          %v1977 = vld [vmem:[#allocation2 + $0x268] sm:$0xff]
          %v1978 = vld [vmem:[#allocation2 + $0x270] sm:$0xff]
          %v1979 = vld [vmem:[#allocation2 + $0x278] sm:$0xff]
          %v1980 = vld [vmem:[#allocation2 + $0x280] sm:$0xff]
          %v1981 = vld [vmem:[#allocation2 + $0x288] sm:$0xff]
          %v1982 = vld [vmem:[#allocation2 + $0x290] sm:$0xff]
          %v1983 = vld [vmem:[#allocation2 + $0x298] sm:$0xff]
          %v1984 = vld [vmem:[#allocation2 + $0x2a0] sm:$0xff]
          %v1985 = vld [vmem:[#allocation2 + $0x2a8] sm:$0xff]
          %v1986 = vld [vmem:[#allocation2 + $0x2b0] sm:$0xff]
          %v1987 = vld [vmem:[#allocation2 + $0x2b8] sm:$0xff]
          %v1988 = vld [vmem:[#allocation2 + $0x2c0] sm:$0xff]
          %v1989 = vld [vmem:[#allocation2 + $0x2c8] sm:$0xff]
          %v1990 = vld [vmem:[#allocation2 + $0x2d0] sm:$0xff]
          %v1991 = vld [vmem:[#allocation2 + $0x2d8] sm:$0xff]
          %v1992 = vld [vmem:[#allocation2 + $0x2e0] sm:$0xff]
          %v1993 = vld [vmem:[#allocation2 + $0x2e8] sm:$0xff]
          %v1994 = vld [vmem:[#allocation2 + $0x2f0] sm:$0xff]
          %v1995 = vld [vmem:[#allocation2 + $0x2f8] sm:$0xff]
          %v1996 = vld [vmem:[#allocation2 + $0x300] sm:$0xff]
          %v1997 = vld [vmem:[#allocation2 + $0x308] sm:$0xff]
          %v1998 = vld [vmem:[#allocation2 + $0x310] sm:$0xff]
          %v1999 = vld [vmem:[#allocation2 + $0x318] sm:$0xff]
          %v2000 = vld [vmem:[#allocation2 + $0x320] sm:$0xff]
          %v2001 = vld [vmem:[#allocation2 + $0x328] sm:$0xff]
          %v2002 = vld [vmem:[#allocation2 + $0x330] sm:$0xff]
          %v2003 = vld [vmem:[#allocation2 + $0x338] sm:$0xff]
          %v2004 = vld [vmem:[#allocation2 + $0x340] sm:$0xff]
          %v2005 = vld [vmem:[#allocation2 + $0x348] sm:$0xff]
          %v2006 = vld [vmem:[#allocation2 + $0x350] sm:$0xff]
          %v2007 = vld [vmem:[#allocation2 + $0x358] sm:$0xff]
          %v2008 = vld [vmem:[#allocation2 + $0x360] sm:$0xff]
          %v2009 = vld [vmem:[#allocation2 + $0x368] sm:$0xff]
          %v2010 = vld [vmem:[#allocation2 + $0x370] sm:$0xff]
          %v2011 = vld [vmem:[#allocation2 + $0x378] sm:$0xff]
          %v2012 = vld [vmem:[#allocation2 + $0x380] sm:$0xff]
          %v2013 = vld [vmem:[#allocation2 + $0x388] sm:$0xff]
          %v2014 = vld [vmem:[#allocation2 + $0x390] sm:$0xff]
          %v2015 = vld [vmem:[#allocation2 + $0x398] sm:$0xff]
          %v2016 = vld [vmem:[#allocation2 + $0x3a0] sm:$0xff]
          %v2017 = vld [vmem:[#allocation2 + $0x3a8] sm:$0xff]
          %v2018 = vld [vmem:[#allocation2 + $0x3b0] sm:$0xff]
          %v2019 = vld [vmem:[#allocation2 + $0x3b8] sm:$0xff]
          %v2020 = vld [vmem:[#allocation2 + $0x3c0] sm:$0xff]
          %v2021 = vld [vmem:[#allocation2 + $0x3c8] sm:$0xff]
          %v2022 = vld [vmem:[#allocation2 + $0x3d0] sm:$0xff]
          %v2023 = vld [vmem:[#allocation2 + $0x3d8] sm:$0xff]
          %v2024 = vld [vmem:[#allocation2 + $0x3e0] sm:$0xff]
          %v2025 = vld [vmem:[#allocation2 + $0x3e8] sm:$0xff]
          %v2026 = vld [vmem:[#allocation2 + $0x3f0] sm:$0xff]
          %v2027 = vld [vmem:[#allocation2 + $0x3f8] sm:$0xff]
          %v2028 = vld [vmem:[%s257] sm:$0x1]
          %v2029 = vlaneseq
          %v2030 = vshrl.u32 %v2029, 7
          %v2031 = vsub.s32 0, %v2030
          %v2032 = vrot.slane %v2028, %v2031
          %v2033 = vmul.f32 %v1900, %v2032
          %v2034 = vmul.f32 %v1901, %v2032
          %v2035 = vmul.f32 %v1902, %v2032
          %v2036 = vmul.f32 %v1903, %v2032
          %v2037 = vmul.f32 %v1904, %v2032
          %v2038 = vmul.f32 %v1905, %v2032
          %v2039 = vmul.f32 %v1906, %v2032
          %v2040 = vmul.f32 %v1907, %v2032
          %v2041 = vmul.f32 %v1908, %v2032
          %v2042 = vmul.f32 %v1909, %v2032
          %v2043 = vmul.f32 %v1910, %v2032
          %v2044 = vmul.f32 %v1911, %v2032
          %v2045 = vmul.f32 %v1912, %v2032
          %v2046 = vmul.f32 %v1913, %v2032
          %v2047 = vmul.f32 %v1914, %v2032
          %v2048 = vmul.f32 %v1915, %v2032
          %v2049 = vmul.f32 %v1916, %v2032
          %v2050 = vmul.f32 %v1917, %v2032
          %v2051 = vmul.f32 %v1918, %v2032
          %v2052 = vmul.f32 %v1919, %v2032
          %v2053 = vmul.f32 %v1920, %v2032
          %v2054 = vmul.f32 %v1921, %v2032
          %v2055 = vmul.f32 %v1922, %v2032
          %v2056 = vmul.f32 %v1923, %v2032
          %v2057 = vmul.f32 %v1924, %v2032
          %v2058 = vmul.f32 %v1925, %v2032
          %v2059 = vmul.f32 %v1926, %v2032
          %v2060 = vmul.f32 %v1927, %v2032
          %v2061 = vmul.f32 %v1928, %v2032
          %v2062 = vmul.f32 %v1929, %v2032
          %v2063 = vmul.f32 %v1930, %v2032
          %v2064 = vmul.f32 %v1931, %v2032
          %v2065 = vmul.f32 %v1932, %v2032
          %v2066 = vmul.f32 %v1933, %v2032
          %v2067 = vmul.f32 %v1934, %v2032
          %v2068 = vmul.f32 %v1935, %v2032
          %v2069 = vmul.f32 %v1936, %v2032
          %v2070 = vmul.f32 %v1937, %v2032
          %v2071 = vmul.f32 %v1938, %v2032
          %v2072 = vmul.f32 %v1939, %v2032
          %v2073 = vmul.f32 %v1940, %v2032
          %v2074 = vmul.f32 %v1941, %v2032
          %v2075 = vmul.f32 %v1942, %v2032
          %v2076 = vmul.f32 %v1943, %v2032
          %v2077 = vmul.f32 %v1944, %v2032
          %v2078 = vmul.f32 %v1945, %v2032
          %v2079 = vmul.f32 %v1946, %v2032
          %v2080 = vmul.f32 %v1947, %v2032
          %v2081 = vmul.f32 %v1948, %v2032
          %v2082 = vmul.f32 %v1949, %v2032
          %v2083 = vmul.f32 %v1950, %v2032
          %v2084 = vmul.f32 %v1951, %v2032
          %v2085 = vmul.f32 %v1952, %v2032
          %v2086 = vmul.f32 %v1953, %v2032
          %v2087 = vmul.f32 %v1954, %v2032
          %v2088 = vmul.f32 %v1955, %v2032
          %v2089 = vmul.f32 %v1956, %v2032
          %v2090 = vmul.f32 %v1957, %v2032
          %v2091 = vmul.f32 %v1958, %v2032
          %v2092 = vmul.f32 %v1959, %v2032
          %v2093 = vmul.f32 %v1960, %v2032
          %v2094 = vmul.f32 %v1961, %v2032
          %v2095 = vmul.f32 %v1962, %v2032
          %v2096 = vmul.f32 %v1963, %v2032
          %v2097 = vmul.f32 %v1964, %v2032
          %v2098 = vmul.f32 %v1965, %v2032
          %v2099 = vmul.f32 %v1966, %v2032
          %v2100 = vmul.f32 %v1967, %v2032
          %v2101 = vmul.f32 %v1968, %v2032
          %v2102 = vmul.f32 %v1969, %v2032
          %v2103 = vmul.f32 %v1970, %v2032
          %v2104 = vmul.f32 %v1971, %v2032
          %v2105 = vmul.f32 %v1972, %v2032
          %v2106 = vmul.f32 %v1973, %v2032
          %v2107 = vmul.f32 %v1974, %v2032
          %v2108 = vmul.f32 %v1975, %v2032
          %v2109 = vmul.f32 %v1976, %v2032
          %v2110 = vmul.f32 %v1977, %v2032
          %v2111 = vmul.f32 %v1978, %v2032
          %v2112 = vmul.f32 %v1979, %v2032
          %v2113 = vmul.f32 %v1980, %v2032
          %v2114 = vmul.f32 %v1981, %v2032
          %v2115 = vmul.f32 %v1982, %v2032
          %v2116 = vmul.f32 %v1983, %v2032
          %v2117 = vmul.f32 %v1984, %v2032
          %v2118 = vmul.f32 %v1985, %v2032
          %v2119 = vmul.f32 %v1986, %v2032
          %v2120 = vmul.f32 %v1987, %v2032
          %v2121 = vmul.f32 %v1988, %v2032
          %v2122 = vmul.f32 %v1989, %v2032
          %v2123 = vmul.f32 %v1990, %v2032
          %v2124 = vmul.f32 %v1991, %v2032
          %v2125 = vmul.f32 %v1992, %v2032
          %v2126 = vmul.f32 %v1993, %v2032
          %v2127 = vmul.f32 %v1994, %v2032
          %v2128 = vmul.f32 %v1995, %v2032
          %v2129 = vmul.f32 %v1996, %v2032
          %v2130 = vmul.f32 %v1997, %v2032
          %v2131 = vmul.f32 %v1998, %v2032
          %v2132 = vmul.f32 %v1999, %v2032
          %v2133 = vmul.f32 %v2000, %v2032
          %v2134 = vmul.f32 %v2001, %v2032
          %v2135 = vmul.f32 %v2002, %v2032
          %v2136 = vmul.f32 %v2003, %v2032
          %v2137 = vmul.f32 %v2004, %v2032
          %v2138 = vmul.f32 %v2005, %v2032
          %v2139 = vmul.f32 %v2006, %v2032
          %v2140 = vmul.f32 %v2007, %v2032
          %v2141 = vmul.f32 %v2008, %v2032
          %v2142 = vmul.f32 %v2009, %v2032
          %v2143 = vmul.f32 %v2010, %v2032
          %v2144 = vmul.f32 %v2011, %v2032
          %v2145 = vmul.f32 %v2012, %v2032
          %v2146 = vmul.f32 %v2013, %v2032
          %v2147 = vmul.f32 %v2014, %v2032
          %v2148 = vmul.f32 %v2015, %v2032
          %v2149 = vmul.f32 %v2016, %v2032
          %v2150 = vmul.f32 %v2017, %v2032
          %v2151 = vmul.f32 %v2018, %v2032
          %v2152 = vmul.f32 %v2019, %v2032
          %v2153 = vmul.f32 %v2020, %v2032
          %v2154 = vmul.f32 %v2021, %v2032
          %v2155 = vmul.f32 %v2022, %v2032
          %v2156 = vmul.f32 %v2023, %v2032
          %v2157 = vmul.f32 %v2024, %v2032
          %v2158 = vmul.f32 %v2025, %v2032
          %v2159 = vmul.f32 %v2026, %v2032
          %v2160 = vmul.f32 %v2027, %v2032
          %v2161 = vld [vmem:[%s257 + $0x1] sm:$0x1]
          %v2162 = vlaneseq
          %v2163 = vshrl.u32 %v2162, 7
          %v2164 = vsub.s32 0, %v2163
          %v2165 = vrot.slane %v2161, %v2164
          %v2166 = vadd.f32 %v2033, %v2165
          %v2167 = vadd.f32 %v2034, %v2165
          %v2168 = vadd.f32 %v2035, %v2165
          %v2169 = vadd.f32 %v2036, %v2165
          %v2170 = vadd.f32 %v2037, %v2165
          %v2171 = vadd.f32 %v2038, %v2165
          %v2172 = vadd.f32 %v2039, %v2165
          %v2173 = vadd.f32 %v2040, %v2165
          %v2174 = vadd.f32 %v2041, %v2165
          %v2175 = vadd.f32 %v2042, %v2165
          %v2176 = vadd.f32 %v2043, %v2165
          %v2177 = vadd.f32 %v2044, %v2165
          %v2178 = vadd.f32 %v2045, %v2165
          %v2179 = vadd.f32 %v2046, %v2165
          %v2180 = vadd.f32 %v2047, %v2165
          %v2181 = vadd.f32 %v2048, %v2165
          %v2182 = vadd.f32 %v2049, %v2165
          %v2183 = vadd.f32 %v2050, %v2165
          %v2184 = vadd.f32 %v2051, %v2165
          %v2185 = vadd.f32 %v2052, %v2165
          %v2186 = vadd.f32 %v2053, %v2165
          %v2187 = vadd.f32 %v2054, %v2165
          %v2188 = vadd.f32 %v2055, %v2165
          %v2189 = vadd.f32 %v2056, %v2165
          %v2190 = vadd.f32 %v2057, %v2165
          %v2191 = vadd.f32 %v2058, %v2165
          %v2192 = vadd.f32 %v2059, %v2165
          %v2193 = vadd.f32 %v2060, %v2165
          %v2194 = vadd.f32 %v2061, %v2165
          %v2195 = vadd.f32 %v2062, %v2165
          %v2196 = vadd.f32 %v2063, %v2165
          %v2197 = vadd.f32 %v2064, %v2165
          %v2198 = vadd.f32 %v2065, %v2165
          %v2199 = vadd.f32 %v2066, %v2165
          %v2200 = vadd.f32 %v2067, %v2165
          %v2201 = vadd.f32 %v2068, %v2165
          %v2202 = vadd.f32 %v2069, %v2165
          %v2203 = vadd.f32 %v2070, %v2165
          %v2204 = vadd.f32 %v2071, %v2165
          %v2205 = vadd.f32 %v2072, %v2165
          %v2206 = vadd.f32 %v2073, %v2165
          %v2207 = vadd.f32 %v2074, %v2165
          %v2208 = vadd.f32 %v2075, %v2165
          %v2209 = vadd.f32 %v2076, %v2165
          %v2210 = vadd.f32 %v2077, %v2165
          %v2211 = vadd.f32 %v2078, %v2165
          %v2212 = vadd.f32 %v2079, %v2165
          %v2213 = vadd.f32 %v2080, %v2165
          %v2214 = vadd.f32 %v2081, %v2165
          %v2215 = vadd.f32 %v2082, %v2165
          %v2216 = vadd.f32 %v2083, %v2165
          %v2217 = vadd.f32 %v2084, %v2165
          %v2218 = vadd.f32 %v2085, %v2165
          %v2219 = vadd.f32 %v2086, %v2165
          %v2220 = vadd.f32 %v2087, %v2165
          %v2221 = vadd.f32 %v2088, %v2165
          %v2222 = vadd.f32 %v2089, %v2165
          %v2223 = vadd.f32 %v2090, %v2165
          %v2224 = vadd.f32 %v2091, %v2165
          %v2225 = vadd.f32 %v2092, %v2165
          %v2226 = vadd.f32 %v2093, %v2165
          %v2227 = vadd.f32 %v2094, %v2165
          %v2228 = vadd.f32 %v2095, %v2165
          %v2229 = vadd.f32 %v2096, %v2165
          %v2230 = vadd.f32 %v2097, %v2165
          %v2231 = vadd.f32 %v2098, %v2165
          %v2232 = vadd.f32 %v2099, %v2165
          %v2233 = vadd.f32 %v2100, %v2165
          %v2234 = vadd.f32 %v2101, %v2165
          %v2235 = vadd.f32 %v2102, %v2165
          %v2236 = vadd.f32 %v2103, %v2165
          %v2237 = vadd.f32 %v2104, %v2165
          %v2238 = vadd.f32 %v2105, %v2165
          %v2239 = vadd.f32 %v2106, %v2165
          %v2240 = vadd.f32 %v2107, %v2165
          %v2241 = vadd.f32 %v2108, %v2165
          %v2242 = vadd.f32 %v2109, %v2165
          %v2243 = vadd.f32 %v2110, %v2165
          %v2244 = vadd.f32 %v2111, %v2165
          %v2245 = vadd.f32 %v2112, %v2165
          %v2246 = vadd.f32 %v2113, %v2165
          %v2247 = vadd.f32 %v2114, %v2165
          %v2248 = vadd.f32 %v2115, %v2165
          %v2249 = vadd.f32 %v2116, %v2165
          %v2250 = vadd.f32 %v2117, %v2165
          %v2251 = vadd.f32 %v2118, %v2165
          %v2252 = vadd.f32 %v2119, %v2165
          %v2253 = vadd.f32 %v2120, %v2165
          %v2254 = vadd.f32 %v2121, %v2165
          %v2255 = vadd.f32 %v2122, %v2165
          %v2256 = vadd.f32 %v2123, %v2165
          %v2257 = vadd.f32 %v2124, %v2165
          %v2258 = vadd.f32 %v2125, %v2165
          %v2259 = vadd.f32 %v2126, %v2165
          %v2260 = vadd.f32 %v2127, %v2165
          %v2261 = vadd.f32 %v2128, %v2165
          %v2262 = vadd.f32 %v2129, %v2165
          %v2263 = vadd.f32 %v2130, %v2165
          %v2264 = vadd.f32 %v2131, %v2165
          %v2265 = vadd.f32 %v2132, %v2165
          %v2266 = vadd.f32 %v2133, %v2165
          %v2267 = vadd.f32 %v2134, %v2165
          %v2268 = vadd.f32 %v2135, %v2165
          %v2269 = vadd.f32 %v2136, %v2165
          %v2270 = vadd.f32 %v2137, %v2165
          %v2271 = vadd.f32 %v2138, %v2165
          %v2272 = vadd.f32 %v2139, %v2165
          %v2273 = vadd.f32 %v2140, %v2165
          %v2274 = vadd.f32 %v2141, %v2165
          %v2275 = vadd.f32 %v2142, %v2165
          %v2276 = vadd.f32 %v2143, %v2165
          %v2277 = vadd.f32 %v2144, %v2165
          %v2278 = vadd.f32 %v2145, %v2165
          %v2279 = vadd.f32 %v2146, %v2165
          %v2280 = vadd.f32 %v2147, %v2165
          %v2281 = vadd.f32 %v2148, %v2165
          %v2282 = vadd.f32 %v2149, %v2165
          %v2283 = vadd.f32 %v2150, %v2165
          %v2284 = vadd.f32 %v2151, %v2165
          %v2285 = vadd.f32 %v2152, %v2165
          %v2286 = vadd.f32 %v2153, %v2165
          %v2287 = vadd.f32 %v2154, %v2165
          %v2288 = vadd.f32 %v2155, %v2165
          %v2289 = vadd.f32 %v2156, %v2165
          %v2290 = vadd.f32 %v2157, %v2165
          %v2291 = vadd.f32 %v2158, %v2165
          %v2292 = vadd.f32 %v2159, %v2165
          %v2293 = vadd.f32 %v2160, %v2165
          %v2294 = vmul.f32 %v2166, 0.2
          %v2295 = vmul.f32 %v2167, 0.2
          %v2296 = vmul.f32 %v2168, 0.2
          %v2297 = vmul.f32 %v2169, 0.2
          %v2298 = vmul.f32 %v2170, 0.2
          %v2299 = vmul.f32 %v2171, 0.2
          %v2300 = vmul.f32 %v2172, 0.2
          %v2301 = vmul.f32 %v2173, 0.2
          %v2302 = vmul.f32 %v2174, 0.2
          %v2303 = vmul.f32 %v2175, 0.2
          %v2304 = vmul.f32 %v2176, 0.2
          %v2305 = vmul.f32 %v2177, 0.2
          %v2306 = vmul.f32 %v2178, 0.2
          %v2307 = vmul.f32 %v2179, 0.2
          %v2308 = vmul.f32 %v2180, 0.2
          %v2309 = vmul.f32 %v2181, 0.2
          %v2310 = vmul.f32 %v2182, 0.2
          %v2311 = vmul.f32 %v2183, 0.2
          %v2312 = vmul.f32 %v2184, 0.2
          %v2313 = vmul.f32 %v2185, 0.2
          %v2314 = vmul.f32 %v2186, 0.2
          %v2315 = vmul.f32 %v2187, 0.2
          %v2316 = vmul.f32 %v2188, 0.2
          %v2317 = vmul.f32 %v2189, 0.2
          %v2318 = vmul.f32 %v2190, 0.2
          %v2319 = vmul.f32 %v2191, 0.2
          %v2320 = vmul.f32 %v2192, 0.2
          %v2321 = vmul.f32 %v2193, 0.2
          %v2322 = vmul.f32 %v2194, 0.2
          %v2323 = vmul.f32 %v2195, 0.2
          %v2324 = vmul.f32 %v2196, 0.2
          %v2325 = vmul.f32 %v2197, 0.2
          %v2326 = vmul.f32 %v2198, 0.2
          %v2327 = vmul.f32 %v2199, 0.2
          %v2328 = vmul.f32 %v2200, 0.2
          %v2329 = vmul.f32 %v2201, 0.2
          %v2330 = vmul.f32 %v2202, 0.2
          %v2331 = vmul.f32 %v2203, 0.2
          %v2332 = vmul.f32 %v2204, 0.2
          %v2333 = vmul.f32 %v2205, 0.2
          %v2334 = vmul.f32 %v2206, 0.2
          %v2335 = vmul.f32 %v2207, 0.2
          %v2336 = vmul.f32 %v2208, 0.2
          %v2337 = vmul.f32 %v2209, 0.2
          %v2338 = vmul.f32 %v2210, 0.2
          %v2339 = vmul.f32 %v2211, 0.2
          %v2340 = vmul.f32 %v2212, 0.2
          %v2341 = vmul.f32 %v2213, 0.2
          %v2342 = vmul.f32 %v2214, 0.2
          %v2343 = vmul.f32 %v2215, 0.2
          %v2344 = vmul.f32 %v2216, 0.2
          %v2345 = vmul.f32 %v2217, 0.2
          %v2346 = vmul.f32 %v2218, 0.2
          %v2347 = vmul.f32 %v2219, 0.2
          %v2348 = vmul.f32 %v2220, 0.2
          %v2349 = vmul.f32 %v2221, 0.2
          %v2350 = vmul.f32 %v2222, 0.2
          %v2351 = vmul.f32 %v2223, 0.2
          %v2352 = vmul.f32 %v2224, 0.2
          %v2353 = vmul.f32 %v2225, 0.2
          %v2354 = vmul.f32 %v2226, 0.2
          %v2355 = vmul.f32 %v2227, 0.2
          %v2356 = vmul.f32 %v2228, 0.2
          %v2357 = vmul.f32 %v2229, 0.2
          %v2358 = vmul.f32 %v2230, 0.2
          %v2359 = vmul.f32 %v2231, 0.2
          %v2360 = vmul.f32 %v2232, 0.2
          %v2361 = vmul.f32 %v2233, 0.2
          %v2362 = vmul.f32 %v2234, 0.2
          %v2363 = vmul.f32 %v2235, 0.2
          %v2364 = vmul.f32 %v2236, 0.2
          %v2365 = vmul.f32 %v2237, 0.2
          %v2366 = vmul.f32 %v2238, 0.2
          %v2367 = vmul.f32 %v2239, 0.2
          %v2368 = vmul.f32 %v2240, 0.2
          %v2369 = vmul.f32 %v2241, 0.2
          %v2370 = vmul.f32 %v2242, 0.2
          %v2371 = vmul.f32 %v2243, 0.2
          %v2372 = vmul.f32 %v2244, 0.2
          %v2373 = vmul.f32 %v2245, 0.2
          %v2374 = vmul.f32 %v2246, 0.2
          %v2375 = vmul.f32 %v2247, 0.2
          %v2376 = vmul.f32 %v2248, 0.2
          %v2377 = vmul.f32 %v2249, 0.2
          %v2378 = vmul.f32 %v2250, 0.2
          %v2379 = vmul.f32 %v2251, 0.2
          %v2380 = vmul.f32 %v2252, 0.2
          %v2381 = vmul.f32 %v2253, 0.2
          %v2382 = vmul.f32 %v2254, 0.2
          %v2383 = vmul.f32 %v2255, 0.2
          %v2384 = vmul.f32 %v2256, 0.2
          %v2385 = vmul.f32 %v2257, 0.2
          %v2386 = vmul.f32 %v2258, 0.2
          %v2387 = vmul.f32 %v2259, 0.2
          %v2388 = vmul.f32 %v2260, 0.2
          %v2389 = vmul.f32 %v2261, 0.2
          %v2390 = vmul.f32 %v2262, 0.2
          %v2391 = vmul.f32 %v2263, 0.2
          %v2392 = vmul.f32 %v2264, 0.2
          %v2393 = vmul.f32 %v2265, 0.2
          %v2394 = vmul.f32 %v2266, 0.2
          %v2395 = vmul.f32 %v2267, 0.2
          %v2396 = vmul.f32 %v2268, 0.2
          %v2397 = vmul.f32 %v2269, 0.2
          %v2398 = vmul.f32 %v2270, 0.2
          %v2399 = vmul.f32 %v2271, 0.2
          %v2400 = vmul.f32 %v2272, 0.2
          %v2401 = vmul.f32 %v2273, 0.2
          %v2402 = vmul.f32 %v2274, 0.2
          %v2403 = vmul.f32 %v2275, 0.2
          %v2404 = vmul.f32 %v2276, 0.2
          %v2405 = vmul.f32 %v2277, 0.2
          %v2406 = vmul.f32 %v2278, 0.2
          %v2407 = vmul.f32 %v2279, 0.2
          %v2408 = vmul.f32 %v2280, 0.2
          %v2409 = vmul.f32 %v2281, 0.2
          %v2410 = vmul.f32 %v2282, 0.2
          %v2411 = vmul.f32 %v2283, 0.2
          %v2412 = vmul.f32 %v2284, 0.2
          %v2413 = vmul.f32 %v2285, 0.2
          %v2414 = vmul.f32 %v2286, 0.2
          %v2415 = vmul.f32 %v2287, 0.2
          %v2416 = vmul.f32 %v2288, 0.2
          %v2417 = vmul.f32 %v2289, 0.2
          %v2418 = vmul.f32 %v2290, 0.2
          %v2419 = vmul.f32 %v2291, 0.2
          %v2420 = vmul.f32 %v2292, 0.2
          %v2421 = vmul.f32 %v2293, 0.2
          %v2422 = vmax.f32 %v2166, %v2294
          %v2423 = vmax.f32 %v2167, %v2295
          %v2424 = vmax.f32 %v2168, %v2296
          %v2425 = vmax.f32 %v2169, %v2297
          %v2426 = vmax.f32 %v2170, %v2298
          %v2427 = vmax.f32 %v2171, %v2299
          %v2428 = vmax.f32 %v2172, %v2300
          %v2429 = vmax.f32 %v2173, %v2301
          %v2430 = vmax.f32 %v2174, %v2302
          %v2431 = vmax.f32 %v2175, %v2303
          %v2432 = vmax.f32 %v2176, %v2304
          %v2433 = vmax.f32 %v2177, %v2305
          %v2434 = vmax.f32 %v2178, %v2306
          %v2435 = vmax.f32 %v2179, %v2307
          %v2436 = vmax.f32 %v2180, %v2308
          %v2437 = vmax.f32 %v2181, %v2309
          %v2438 = vmax.f32 %v2182, %v2310
          %v2439 = vmax.f32 %v2183, %v2311
          %v2440 = vmax.f32 %v2184, %v2312
          %v2441 = vmax.f32 %v2185, %v2313
          %v2442 = vmax.f32 %v2186, %v2314
          %v2443 = vmax.f32 %v2187, %v2315
          %v2444 = vmax.f32 %v2188, %v2316
          %v2445 = vmax.f32 %v2189, %v2317
          %v2446 = vmax.f32 %v2190, %v2318
          %v2447 = vmax.f32 %v2191, %v2319
          %v2448 = vmax.f32 %v2192, %v2320
          %v2449 = vmax.f32 %v2193, %v2321
          %v2450 = vmax.f32 %v2194, %v2322
          %v2451 = vmax.f32 %v2195, %v2323
          %v2452 = vmax.f32 %v2196, %v2324
          %v2453 = vmax.f32 %v2197, %v2325
          %v2454 = vmax.f32 %v2198, %v2326
          %v2455 = vmax.f32 %v2199, %v2327
          %v2456 = vmax.f32 %v2200, %v2328
          %v2457 = vmax.f32 %v2201, %v2329
          %v2458 = vmax.f32 %v2202, %v2330
          %v2459 = vmax.f32 %v2203, %v2331
          %v2460 = vmax.f32 %v2204, %v2332
          %v2461 = vmax.f32 %v2205, %v2333
          %v2462 = vmax.f32 %v2206, %v2334
          %v2463 = vmax.f32 %v2207, %v2335
          %v2464 = vmax.f32 %v2208, %v2336
          %v2465 = vmax.f32 %v2209, %v2337
          %v2466 = vmax.f32 %v2210, %v2338
          %v2467 = vmax.f32 %v2211, %v2339
          %v2468 = vmax.f32 %v2212, %v2340
          %v2469 = vmax.f32 %v2213, %v2341
          %v2470 = vmax.f32 %v2214, %v2342
          %v2471 = vmax.f32 %v2215, %v2343
          %v2472 = vmax.f32 %v2216, %v2344
          %v2473 = vmax.f32 %v2217, %v2345
          %v2474 = vmax.f32 %v2218, %v2346
          %v2475 = vmax.f32 %v2219, %v2347
          %v2476 = vmax.f32 %v2220, %v2348
          %v2477 = vmax.f32 %v2221, %v2349
          %v2478 = vmax.f32 %v2222, %v2350
          %v2479 = vmax.f32 %v2223, %v2351
          %v2480 = vmax.f32 %v2224, %v2352
          %v2481 = vmax.f32 %v2225, %v2353
          %v2482 = vmax.f32 %v2226, %v2354
          %v2483 = vmax.f32 %v2227, %v2355
          %v2484 = vmax.f32 %v2228, %v2356
          %v2485 = vmax.f32 %v2229, %v2357
          %v2486 = vmax.f32 %v2230, %v2358
          %v2487 = vmax.f32 %v2231, %v2359
          %v2488 = vmax.f32 %v2232, %v2360
          %v2489 = vmax.f32 %v2233, %v2361
          %v2490 = vmax.f32 %v2234, %v2362
          %v2491 = vmax.f32 %v2235, %v2363
          %v2492 = vmax.f32 %v2236, %v2364
          %v2493 = vmax.f32 %v2237, %v2365
          %v2494 = vmax.f32 %v2238, %v2366
          %v2495 = vmax.f32 %v2239, %v2367
          %v2496 = vmax.f32 %v2240, %v2368
          %v2497 = vmax.f32 %v2241, %v2369
          %v2498 = vmax.f32 %v2242, %v2370
          %v2499 = vmax.f32 %v2243, %v2371
          %v2500 = vmax.f32 %v2244, %v2372
          %v2501 = vmax.f32 %v2245, %v2373
          %v2502 = vmax.f32 %v2246, %v2374
          %v2503 = vmax.f32 %v2247, %v2375
          %v2504 = vmax.f32 %v2248, %v2376
          %v2505 = vmax.f32 %v2249, %v2377
          %v2506 = vmax.f32 %v2250, %v2378
          %v2507 = vmax.f32 %v2251, %v2379
          %v2508 = vmax.f32 %v2252, %v2380
          %v2509 = vmax.f32 %v2253, %v2381
          %v2510 = vmax.f32 %v2254, %v2382
          %v2511 = vmax.f32 %v2255, %v2383
          %v2512 = vmax.f32 %v2256, %v2384
          %v2513 = vmax.f32 %v2257, %v2385
          %v2514 = vmax.f32 %v2258, %v2386
          %v2515 = vmax.f32 %v2259, %v2387
          %v2516 = vmax.f32 %v2260, %v2388
          %v2517 = vmax.f32 %v2261, %v2389
          %v2518 = vmax.f32 %v2262, %v2390
          %v2519 = vmax.f32 %v2263, %v2391
          %v2520 = vmax.f32 %v2264, %v2392
          %v2521 = vmax.f32 %v2265, %v2393
          %v2522 = vmax.f32 %v2266, %v2394
          %v2523 = vmax.f32 %v2267, %v2395
          %v2524 = vmax.f32 %v2268, %v2396
          %v2525 = vmax.f32 %v2269, %v2397
          %v2526 = vmax.f32 %v2270, %v2398
          %v2527 = vmax.f32 %v2271, %v2399
          %v2528 = vmax.f32 %v2272, %v2400
          %v2529 = vmax.f32 %v2273, %v2401
          %v2530 = vmax.f32 %v2274, %v2402
          %v2531 = vmax.f32 %v2275, %v2403
          %v2532 = vmax.f32 %v2276, %v2404
          %v2533 = vmax.f32 %v2277, %v2405
          %v2534 = vmax.f32 %v2278, %v2406
          %v2535 = vmax.f32 %v2279, %v2407
          %v2536 = vmax.f32 %v2280, %v2408
          %v2537 = vmax.f32 %v2281, %v2409
          %v2538 = vmax.f32 %v2282, %v2410
          %v2539 = vmax.f32 %v2283, %v2411
          %v2540 = vmax.f32 %v2284, %v2412
          %v2541 = vmax.f32 %v2285, %v2413
          %v2542 = vmax.f32 %v2286, %v2414
          %v2543 = vmax.f32 %v2287, %v2415
          %v2544 = vmax.f32 %v2288, %v2416
          %v2545 = vmax.f32 %v2289, %v2417
          %v2546 = vmax.f32 %v2290, %v2418
          %v2547 = vmax.f32 %v2291, %v2419
          %v2548 = vmax.f32 %v2292, %v2420
          %v2549 = vmax.f32 %v2293, %v2421
          %v2550 = vpack.c.bf16 %v2423, %v2422
          %v2551 = vpack.c.bf16 %v2425, %v2424
          %v2552 = vpack.c.bf16 %v2427, %v2426
          %v2553 = vpack.c.bf16 %v2429, %v2428
          %v2554 = vpack.c.bf16 %v2431, %v2430
          %v2555 = vpack.c.bf16 %v2433, %v2432
          %v2556 = vpack.c.bf16 %v2435, %v2434
          %v2557 = vpack.c.bf16 %v2437, %v2436
          %v2558 = vpack.c.bf16 %v2439, %v2438
          %v2559 = vpack.c.bf16 %v2441, %v2440
          %v2560 = vpack.c.bf16 %v2443, %v2442
          %v2561 = vpack.c.bf16 %v2445, %v2444
          %v2562 = vpack.c.bf16 %v2447, %v2446
          %v2563 = vpack.c.bf16 %v2449, %v2448
          %v2564 = vpack.c.bf16 %v2451, %v2450
          %v2565 = vpack.c.bf16 %v2453, %v2452
          %v2566 = vpack.c.bf16 %v2455, %v2454
          %v2567 = vpack.c.bf16 %v2457, %v2456
          %v2568 = vpack.c.bf16 %v2459, %v2458
          %v2569 = vpack.c.bf16 %v2461, %v2460
          %v2570 = vpack.c.bf16 %v2463, %v2462
          %v2571 = vpack.c.bf16 %v2465, %v2464
          %v2572 = vpack.c.bf16 %v2467, %v2466
          %v2573 = vpack.c.bf16 %v2469, %v2468
          %v2574 = vpack.c.bf16 %v2471, %v2470
          %v2575 = vpack.c.bf16 %v2473, %v2472
          %v2576 = vpack.c.bf16 %v2475, %v2474
          %v2577 = vpack.c.bf16 %v2477, %v2476
          %v2578 = vpack.c.bf16 %v2479, %v2478
          %v2579 = vpack.c.bf16 %v2481, %v2480
          %v2580 = vpack.c.bf16 %v2483, %v2482
          %v2581 = vpack.c.bf16 %v2485, %v2484
          %v2582 = vpack.c.bf16 %v2487, %v2486
          %v2583 = vpack.c.bf16 %v2489, %v2488
          %v2584 = vpack.c.bf16 %v2491, %v2490
          %v2585 = vpack.c.bf16 %v2493, %v2492
          %v2586 = vpack.c.bf16 %v2495, %v2494
          %v2587 = vpack.c.bf16 %v2497, %v2496
          %v2588 = vpack.c.bf16 %v2499, %v2498
          %v2589 = vpack.c.bf16 %v2501, %v2500
          %v2590 = vpack.c.bf16 %v2503, %v2502
          %v2591 = vpack.c.bf16 %v2505, %v2504
          %v2592 = vpack.c.bf16 %v2507, %v2506
          %v2593 = vpack.c.bf16 %v2509, %v2508
          %v2594 = vpack.c.bf16 %v2511, %v2510
          %v2595 = vpack.c.bf16 %v2513, %v2512
          %v2596 = vpack.c.bf16 %v2515, %v2514
          %v2597 = vpack.c.bf16 %v2517, %v2516
          %v2598 = vpack.c.bf16 %v2519, %v2518
          %v2599 = vpack.c.bf16 %v2521, %v2520
          %v2600 = vpack.c.bf16 %v2523, %v2522
          %v2601 = vpack.c.bf16 %v2525, %v2524
          %v2602 = vpack.c.bf16 %v2527, %v2526
          %v2603 = vpack.c.bf16 %v2529, %v2528
          %v2604 = vpack.c.bf16 %v2531, %v2530
          %v2605 = vpack.c.bf16 %v2533, %v2532
          %v2606 = vpack.c.bf16 %v2535, %v2534
          %v2607 = vpack.c.bf16 %v2537, %v2536
          %v2608 = vpack.c.bf16 %v2539, %v2538
          %v2609 = vpack.c.bf16 %v2541, %v2540
          %v2610 = vpack.c.bf16 %v2543, %v2542
          %v2611 = vpack.c.bf16 %v2545, %v2544
          %v2612 = vpack.c.bf16 %v2547, %v2546
          %v2613 = vpack.c.bf16 %v2549, %v2548
          %v2678 = vunpack.c.l.b16 %v2550
          %v2679 = vunpack.c.h.b16 %v2550
          %v2680 = vunpack.c.l.b16 %v2551
          %v2681 = vunpack.c.h.b16 %v2551
          %v2682 = vunpack.c.l.b16 %v2552
          %v2683 = vunpack.c.h.b16 %v2552
          %v2684 = vunpack.c.l.b16 %v2553
          %v2685 = vunpack.c.h.b16 %v2553
          %v2686 = vunpack.c.l.b16 %v2554
          %v2687 = vunpack.c.h.b16 %v2554
          %v2688 = vunpack.c.l.b16 %v2555
          %v2689 = vunpack.c.h.b16 %v2555
          %v2690 = vunpack.c.l.b16 %v2556
          %v2691 = vunpack.c.h.b16 %v2556
          %v2692 = vunpack.c.l.b16 %v2557
          %v2693 = vunpack.c.h.b16 %v2557
          %v2694 = vunpack.c.l.b16 %v2558
          %v2695 = vunpack.c.h.b16 %v2558
          %v2696 = vunpack.c.l.b16 %v2559
          %v2697 = vunpack.c.h.b16 %v2559
          %v2698 = vunpack.c.l.b16 %v2560
          %v2699 = vunpack.c.h.b16 %v2560
          %v2700 = vunpack.c.l.b16 %v2561
          %v2701 = vunpack.c.h.b16 %v2561
          %v2702 = vunpack.c.l.b16 %v2562
          %v2703 = vunpack.c.h.b16 %v2562
          %v2704 = vunpack.c.l.b16 %v2563
          %v2705 = vunpack.c.h.b16 %v2563
          %v2706 = vunpack.c.l.b16 %v2564
          %v2707 = vunpack.c.h.b16 %v2564
          %v2708 = vunpack.c.l.b16 %v2565
          %v2709 = vunpack.c.h.b16 %v2565
          %v2710 = vunpack.c.l.b16 %v2566
          %v2711 = vunpack.c.h.b16 %v2566
          %v2712 = vunpack.c.l.b16 %v2567
          %v2713 = vunpack.c.h.b16 %v2567
          %v2714 = vunpack.c.l.b16 %v2568
          %v2715 = vunpack.c.h.b16 %v2568
          %v2716 = vunpack.c.l.b16 %v2569
          %v2717 = vunpack.c.h.b16 %v2569
          %v2718 = vunpack.c.l.b16 %v2570
          %v2719 = vunpack.c.h.b16 %v2570
          %v2720 = vunpack.c.l.b16 %v2571
          %v2721 = vunpack.c.h.b16 %v2571
          %v2722 = vunpack.c.l.b16 %v2572
          %v2723 = vunpack.c.h.b16 %v2572
          %v2724 = vunpack.c.l.b16 %v2573
          %v2725 = vunpack.c.h.b16 %v2573
          %v2726 = vunpack.c.l.b16 %v2574
          %v2727 = vunpack.c.h.b16 %v2574
          %v2728 = vunpack.c.l.b16 %v2575
          %v2729 = vunpack.c.h.b16 %v2575
          %v2730 = vunpack.c.l.b16 %v2576
          %v2731 = vunpack.c.h.b16 %v2576
          %v2732 = vunpack.c.l.b16 %v2577
          %v2733 = vunpack.c.h.b16 %v2577
          %v2734 = vunpack.c.l.b16 %v2578
          %v2735 = vunpack.c.h.b16 %v2578
          %v2736 = vunpack.c.l.b16 %v2579
          %v2737 = vunpack.c.h.b16 %v2579
          %v2738 = vunpack.c.l.b16 %v2580
          %v2739 = vunpack.c.h.b16 %v2580
          %v2740 = vunpack.c.l.b16 %v2581
          %v2741 = vunpack.c.h.b16 %v2581
          %v2742 = vunpack.c.l.b16 %v2582
          %v2743 = vunpack.c.h.b16 %v2582
          %v2744 = vunpack.c.l.b16 %v2583
          %v2745 = vunpack.c.h.b16 %v2583
          %v2746 = vunpack.c.l.b16 %v2584
          %v2747 = vunpack.c.h.b16 %v2584
          %v2748 = vunpack.c.l.b16 %v2585
          %v2749 = vunpack.c.h.b16 %v2585
          %v2750 = vunpack.c.l.b16 %v2586
          %v2751 = vunpack.c.h.b16 %v2586
          %v2752 = vunpack.c.l.b16 %v2587
          %v2753 = vunpack.c.h.b16 %v2587
          %v2754 = vunpack.c.l.b16 %v2588
          %v2755 = vunpack.c.h.b16 %v2588
          %v2756 = vunpack.c.l.b16 %v2589
          %v2757 = vunpack.c.h.b16 %v2589
          %v2758 = vunpack.c.l.b16 %v2590
          %v2759 = vunpack.c.h.b16 %v2590
          %v2760 = vunpack.c.l.b16 %v2591
          %v2761 = vunpack.c.h.b16 %v2591
          %v2762 = vunpack.c.l.b16 %v2592
          %v2763 = vunpack.c.h.b16 %v2592
          %v2764 = vunpack.c.l.b16 %v2593
          %v2765 = vunpack.c.h.b16 %v2593
          %v2766 = vunpack.c.l.b16 %v2594
          %v2767 = vunpack.c.h.b16 %v2594
          %v2768 = vunpack.c.l.b16 %v2595
          %v2769 = vunpack.c.h.b16 %v2595
          %v2770 = vunpack.c.l.b16 %v2596
          %v2771 = vunpack.c.h.b16 %v2596
          %v2772 = vunpack.c.l.b16 %v2597
          %v2773 = vunpack.c.h.b16 %v2597
          %v2774 = vunpack.c.l.b16 %v2598
          %v2775 = vunpack.c.h.b16 %v2598
          %v2776 = vunpack.c.l.b16 %v2599
          %v2777 = vunpack.c.h.b16 %v2599
          %v2778 = vunpack.c.l.b16 %v2600
          %v2779 = vunpack.c.h.b16 %v2600
          %v2780 = vunpack.c.l.b16 %v2601
          %v2781 = vunpack.c.h.b16 %v2601
          %v2782 = vunpack.c.l.b16 %v2602
          %v2783 = vunpack.c.h.b16 %v2602
          %v2784 = vunpack.c.l.b16 %v2603
          %v2785 = vunpack.c.h.b16 %v2603
          %v2786 = vunpack.c.l.b16 %v2604
          %v2787 = vunpack.c.h.b16 %v2604
          %v2788 = vunpack.c.l.b16 %v2605
          %v2789 = vunpack.c.h.b16 %v2605
          %v2790 = vunpack.c.l.b16 %v2606
          %v2791 = vunpack.c.h.b16 %v2606
          %v2792 = vunpack.c.l.b16 %v2607
          %v2793 = vunpack.c.h.b16 %v2607
          %v2794 = vunpack.c.l.b16 %v2608
          %v2795 = vunpack.c.h.b16 %v2608
          %v2796 = vunpack.c.l.b16 %v2609
          %v2797 = vunpack.c.h.b16 %v2609
          %v2798 = vunpack.c.l.b16 %v2610
          %v2799 = vunpack.c.h.b16 %v2610
          %v2800 = vunpack.c.l.b16 %v2611
          %v2801 = vunpack.c.h.b16 %v2611
          %v2802 = vunpack.c.l.b16 %v2612
          %v2803 = vunpack.c.h.b16 %v2612
          %v2804 = vunpack.c.l.b16 %v2613
          %v2805 = vunpack.c.h.b16 %v2613
          %v2806 = vpack.c.b16 %v2678, %v2678
          %v2807 = vpack.c.b16 %v2679, %v2679
          %v2808 = vpack.c.b16 %v2680, %v2680
          %v2809 = vpack.c.b16 %v2681, %v2681
          %v2810 = vpack.c.b16 %v2682, %v2682
          %v2811 = vpack.c.b16 %v2683, %v2683
          %v2812 = vpack.c.b16 %v2684, %v2684
          %v2813 = vpack.c.b16 %v2685, %v2685
          %v2814 = vpack.c.b16 %v2686, %v2686
          %v2815 = vpack.c.b16 %v2687, %v2687
          %v2816 = vpack.c.b16 %v2688, %v2688
          %v2817 = vpack.c.b16 %v2689, %v2689
          %v2818 = vpack.c.b16 %v2690, %v2690
          %v2819 = vpack.c.b16 %v2691, %v2691
          %v2820 = vpack.c.b16 %v2692, %v2692
          %v2821 = vpack.c.b16 %v2693, %v2693
          %v2822 = vpack.c.b16 %v2694, %v2694
          %v2823 = vpack.c.b16 %v2695, %v2695
          %v2824 = vpack.c.b16 %v2696, %v2696
          %v2825 = vpack.c.b16 %v2697, %v2697
          %v2826 = vpack.c.b16 %v2698, %v2698
          %v2827 = vpack.c.b16 %v2699, %v2699
          %v2828 = vpack.c.b16 %v2700, %v2700
          %v2829 = vpack.c.b16 %v2701, %v2701
          %v2830 = vpack.c.b16 %v2702, %v2702
          %v2831 = vpack.c.b16 %v2703, %v2703
          %v2832 = vpack.c.b16 %v2704, %v2704
          %v2833 = vpack.c.b16 %v2705, %v2705
          %v2834 = vpack.c.b16 %v2706, %v2706
          %v2835 = vpack.c.b16 %v2707, %v2707
          %v2836 = vpack.c.b16 %v2708, %v2708
          %v2837 = vpack.c.b16 %v2709, %v2709
          %v2838 = vpack.c.b16 %v2710, %v2710
          %v2839 = vpack.c.b16 %v2711, %v2711
          %v2840 = vpack.c.b16 %v2712, %v2712
          %v2841 = vpack.c.b16 %v2713, %v2713
          %v2842 = vpack.c.b16 %v2714, %v2714
          %v2843 = vpack.c.b16 %v2715, %v2715
          %v2844 = vpack.c.b16 %v2716, %v2716
          %v2845 = vpack.c.b16 %v2717, %v2717
          %v2846 = vpack.c.b16 %v2718, %v2718
          %v2847 = vpack.c.b16 %v2719, %v2719
          %v2848 = vpack.c.b16 %v2720, %v2720
          %v2849 = vpack.c.b16 %v2721, %v2721
          %v2850 = vpack.c.b16 %v2722, %v2722
          %v2851 = vpack.c.b16 %v2723, %v2723
          %v2852 = vpack.c.b16 %v2724, %v2724
          %v2853 = vpack.c.b16 %v2725, %v2725
          %v2854 = vpack.c.b16 %v2726, %v2726
          %v2855 = vpack.c.b16 %v2727, %v2727
          %v2856 = vpack.c.b16 %v2728, %v2728
          %v2857 = vpack.c.b16 %v2729, %v2729
          %v2858 = vpack.c.b16 %v2730, %v2730
          %v2859 = vpack.c.b16 %v2731, %v2731
          %v2860 = vpack.c.b16 %v2732, %v2732
          %v2861 = vpack.c.b16 %v2733, %v2733
          %v2862 = vpack.c.b16 %v2734, %v2734
          %v2863 = vpack.c.b16 %v2735, %v2735
          %v2864 = vpack.c.b16 %v2736, %v2736
          %v2865 = vpack.c.b16 %v2737, %v2737
          %v2866 = vpack.c.b16 %v2738, %v2738
          %v2867 = vpack.c.b16 %v2739, %v2739
          %v2868 = vpack.c.b16 %v2740, %v2740
          %v2869 = vpack.c.b16 %v2741, %v2741
          %v2870 = vpack.c.b16 %v2742, %v2742
          %v2871 = vpack.c.b16 %v2743, %v2743
          %v2872 = vpack.c.b16 %v2744, %v2744
          %v2873 = vpack.c.b16 %v2745, %v2745
          %v2874 = vpack.c.b16 %v2746, %v2746
          %v2875 = vpack.c.b16 %v2747, %v2747
          %v2876 = vpack.c.b16 %v2748, %v2748
          %v2877 = vpack.c.b16 %v2749, %v2749
          %v2878 = vpack.c.b16 %v2750, %v2750
          %v2879 = vpack.c.b16 %v2751, %v2751
          %v2880 = vpack.c.b16 %v2752, %v2752
          %v2881 = vpack.c.b16 %v2753, %v2753
          %v2882 = vpack.c.b16 %v2754, %v2754
          %v2883 = vpack.c.b16 %v2755, %v2755
          %v2884 = vpack.c.b16 %v2756, %v2756
          %v2885 = vpack.c.b16 %v2757, %v2757
          %v2886 = vpack.c.b16 %v2758, %v2758
          %v2887 = vpack.c.b16 %v2759, %v2759
          %v2888 = vpack.c.b16 %v2760, %v2760
          %v2889 = vpack.c.b16 %v2761, %v2761
          %v2890 = vpack.c.b16 %v2762, %v2762
          %v2891 = vpack.c.b16 %v2763, %v2763
          %v2892 = vpack.c.b16 %v2764, %v2764
          %v2893 = vpack.c.b16 %v2765, %v2765
          %v2894 = vpack.c.b16 %v2766, %v2766
          %v2895 = vpack.c.b16 %v2767, %v2767
          %v2896 = vpack.c.b16 %v2768, %v2768
          %v2897 = vpack.c.b16 %v2769, %v2769
          %v2898 = vpack.c.b16 %v2770, %v2770
          %v2899 = vpack.c.b16 %v2771, %v2771
          %v2900 = vpack.c.b16 %v2772, %v2772
          %v2901 = vpack.c.b16 %v2773, %v2773
          %v2902 = vpack.c.b16 %v2774, %v2774
          %v2903 = vpack.c.b16 %v2775, %v2775
          %v2904 = vpack.c.b16 %v2776, %v2776
          %v2905 = vpack.c.b16 %v2777, %v2777
          %v2906 = vpack.c.b16 %v2778, %v2778
          %v2907 = vpack.c.b16 %v2779, %v2779
          %v2908 = vpack.c.b16 %v2780, %v2780
          %v2909 = vpack.c.b16 %v2781, %v2781
          %v2910 = vpack.c.b16 %v2782, %v2782
          %v2911 = vpack.c.b16 %v2783, %v2783
          %v2912 = vpack.c.b16 %v2784, %v2784
          %v2913 = vpack.c.b16 %v2785, %v2785
          %v2914 = vpack.c.b16 %v2786, %v2786
          %v2915 = vpack.c.b16 %v2787, %v2787
          %v2916 = vpack.c.b16 %v2788, %v2788
          %v2917 = vpack.c.b16 %v2789, %v2789
          %v2918 = vpack.c.b16 %v2790, %v2790
          %v2919 = vpack.c.b16 %v2791, %v2791
          %v2920 = vpack.c.b16 %v2792, %v2792
          %v2921 = vpack.c.b16 %v2793, %v2793
          %v2922 = vpack.c.b16 %v2794, %v2794
          %v2923 = vpack.c.b16 %v2795, %v2795
          %v2924 = vpack.c.b16 %v2796, %v2796
          %v2925 = vpack.c.b16 %v2797, %v2797
          %v2926 = vpack.c.b16 %v2798, %v2798
          %v2927 = vpack.c.b16 %v2799, %v2799
          %v2928 = vpack.c.b16 %v2800, %v2800
          %v2929 = vpack.c.b16 %v2801, %v2801
          %v2930 = vpack.c.b16 %v2802, %v2802
          %v2931 = vpack.c.b16 %v2803, %v2803
          %v2932 = vpack.c.b16 %v2804, %v2804
          %v2933 = vpack.c.b16 %v2805, %v2805
          %3062 = vst [vmem:[%s251] sm:$0xf] %v2806
          %3063 = vst [vmem:[%s251 + $0x4] sm:$0xf] %v2807
          %3064 = vst [vmem:[%s251 + $0x8] sm:$0xf] %v2808
          %3065 = vst [vmem:[%s251 + $0xc] sm:$0xf] %v2809
          %3066 = vst [vmem:[%s251 + $0x10] sm:$0xf] %v2810
          %3067 = vst [vmem:[%s251 + $0x14] sm:$0xf] %v2811
          %3068 = vst [vmem:[%s251 + $0x18] sm:$0xf] %v2812
          %3069 = vst [vmem:[%s251 + $0x1c] sm:$0xf] %v2813
          %3070 = vst [vmem:[%s251 + $0x20] sm:$0xf] %v2814
          %3071 = vst [vmem:[%s251 + $0x24] sm:$0xf] %v2815
          %3072 = vst [vmem:[%s251 + $0x28] sm:$0xf] %v2816
          %3073 = vst [vmem:[%s251 + $0x2c] sm:$0xf] %v2817
          %3074 = vst [vmem:[%s251 + $0x30] sm:$0xf] %v2818
          %3075 = vst [vmem:[%s251 + $0x34] sm:$0xf] %v2819
          %3076 = vst [vmem:[%s251 + $0x38] sm:$0xf] %v2820
          %3077 = vst [vmem:[%s251 + $0x3c] sm:$0xf] %v2821
          %3078 = vst [vmem:[%s251 + $0x40] sm:$0xf] %v2822
          %3079 = vst [vmem:[%s251 + $0x44] sm:$0xf] %v2823
          %3080 = vst [vmem:[%s251 + $0x48] sm:$0xf] %v2824
          %3081 = vst [vmem:[%s251 + $0x4c] sm:$0xf] %v2825
          %3082 = vst [vmem:[%s251 + $0x50] sm:$0xf] %v2826
          %3083 = vst [vmem:[%s251 + $0x54] sm:$0xf] %v2827
          %3084 = vst [vmem:[%s251 + $0x58] sm:$0xf] %v2828
          %3085 = vst [vmem:[%s251 + $0x5c] sm:$0xf] %v2829
          %3086 = vst [vmem:[%s251 + $0x60] sm:$0xf] %v2830
          %3087 = vst [vmem:[%s251 + $0x64] sm:$0xf] %v2831
          %3088 = vst [vmem:[%s251 + $0x68] sm:$0xf] %v2832
          %3089 = vst [vmem:[%s251 + $0x6c] sm:$0xf] %v2833
          %3090 = vst [vmem:[%s251 + $0x70] sm:$0xf] %v2834
          %3091 = vst [vmem:[%s251 + $0x74] sm:$0xf] %v2835
          %3092 = vst [vmem:[%s251 + $0x78] sm:$0xf] %v2836
          %3093 = vst [vmem:[%s251 + $0x7c] sm:$0xf] %v2837
          %3094 = vst [vmem:[%s251 + $0x80] sm:$0xf] %v2838
          %3095 = vst [vmem:[%s251 + $0x84] sm:$0xf] %v2839
          %3096 = vst [vmem:[%s251 + $0x88] sm:$0xf] %v2840
          %3097 = vst [vmem:[%s251 + $0x8c] sm:$0xf] %v2841
          %3098 = vst [vmem:[%s251 + $0x90] sm:$0xf] %v2842
          %3099 = vst [vmem:[%s251 + $0x94] sm:$0xf] %v2843
          %3100 = vst [vmem:[%s251 + $0x98] sm:$0xf] %v2844
          %3101 = vst [vmem:[%s251 + $0x9c] sm:$0xf] %v2845
          %3102 = vst [vmem:[%s251 + $0xa0] sm:$0xf] %v2846
          %3103 = vst [vmem:[%s251 + $0xa4] sm:$0xf] %v2847
          %3104 = vst [vmem:[%s251 + $0xa8] sm:$0xf] %v2848
          %3105 = vst [vmem:[%s251 + $0xac] sm:$0xf] %v2849
          %3106 = vst [vmem:[%s251 + $0xb0] sm:$0xf] %v2850
          %3107 = vst [vmem:[%s251 + $0xb4] sm:$0xf] %v2851
          %3108 = vst [vmem:[%s251 + $0xb8] sm:$0xf] %v2852
          %3109 = vst [vmem:[%s251 + $0xbc] sm:$0xf] %v2853
          %3110 = vst [vmem:[%s251 + $0xc0] sm:$0xf] %v2854
          %3111 = vst [vmem:[%s251 + $0xc4] sm:$0xf] %v2855
          %3112 = vst [vmem:[%s251 + $0xc8] sm:$0xf] %v2856
          %3113 = vst [vmem:[%s251 + $0xcc] sm:$0xf] %v2857
          %3114 = vst [vmem:[%s251 + $0xd0] sm:$0xf] %v2858
          %3115 = vst [vmem:[%s251 + $0xd4] sm:$0xf] %v2859
          %3116 = vst [vmem:[%s251 + $0xd8] sm:$0xf] %v2860
          %3117 = vst [vmem:[%s251 + $0xdc] sm:$0xf] %v2861
          %3118 = vst [vmem:[%s251 + $0xe0] sm:$0xf] %v2862
          %3119 = vst [vmem:[%s251 + $0xe4] sm:$0xf] %v2863
          %3120 = vst [vmem:[%s251 + $0xe8] sm:$0xf] %v2864
          %3121 = vst [vmem:[%s251 + $0xec] sm:$0xf] %v2865
          %3122 = vst [vmem:[%s251 + $0xf0] sm:$0xf] %v2866
          %3123 = vst [vmem:[%s251 + $0xf4] sm:$0xf] %v2867
          %3124 = vst [vmem:[%s251 + $0xf8] sm:$0xf] %v2868
          %3125 = vst [vmem:[%s251 + $0xfc] sm:$0xf] %v2869
          %3126 = vst [vmem:[%s251 + $0x100] sm:$0xf] %v2870
          %3127 = vst [vmem:[%s251 + $0x104] sm:$0xf] %v2871
          %3128 = vst [vmem:[%s251 + $0x108] sm:$0xf] %v2872
          %3129 = vst [vmem:[%s251 + $0x10c] sm:$0xf] %v2873
          %3130 = vst [vmem:[%s251 + $0x110] sm:$0xf] %v2874
          %3131 = vst [vmem:[%s251 + $0x114] sm:$0xf] %v2875
          %3132 = vst [vmem:[%s251 + $0x118] sm:$0xf] %v2876
          %3133 = vst [vmem:[%s251 + $0x11c] sm:$0xf] %v2877
          %3134 = vst [vmem:[%s251 + $0x120] sm:$0xf] %v2878
          %3135 = vst [vmem:[%s251 + $0x124] sm:$0xf] %v2879
          %3136 = vst [vmem:[%s251 + $0x128] sm:$0xf] %v2880
          %3137 = vst [vmem:[%s251 + $0x12c] sm:$0xf] %v2881
          %3138 = vst [vmem:[%s251 + $0x130] sm:$0xf] %v2882
          %3139 = vst [vmem:[%s251 + $0x134] sm:$0xf] %v2883
          %3140 = vst [vmem:[%s251 + $0x138] sm:$0xf] %v2884
          %3141 = vst [vmem:[%s251 + $0x13c] sm:$0xf] %v2885
          %3142 = vst [vmem:[%s251 + $0x140] sm:$0xf] %v2886
          %3143 = vst [vmem:[%s251 + $0x144] sm:$0xf] %v2887
          %3144 = vst [vmem:[%s251 + $0x148] sm:$0xf] %v2888
          %3145 = vst [vmem:[%s251 + $0x14c] sm:$0xf] %v2889
          %3146 = vst [vmem:[%s251 + $0x150] sm:$0xf] %v2890
          %3147 = vst [vmem:[%s251 + $0x154] sm:$0xf] %v2891
          %3148 = vst [vmem:[%s251 + $0x158] sm:$0xf] %v2892
          %3149 = vst [vmem:[%s251 + $0x15c] sm:$0xf] %v2893
          %3150 = vst [vmem:[%s251 + $0x160] sm:$0xf] %v2894
          %3151 = vst [vmem:[%s251 + $0x164] sm:$0xf] %v2895
          %3152 = vst [vmem:[%s251 + $0x168] sm:$0xf] %v2896
          %3153 = vst [vmem:[%s251 + $0x16c] sm:$0xf] %v2897
          %3154 = vst [vmem:[%s251 + $0x170] sm:$0xf] %v2898
          %3155 = vst [vmem:[%s251 + $0x174] sm:$0xf] %v2899
          %3156 = vst [vmem:[%s251 + $0x178] sm:$0xf] %v2900
          %3157 = vst [vmem:[%s251 + $0x17c] sm:$0xf] %v2901
          %3158 = vst [vmem:[%s251 + $0x180] sm:$0xf] %v2902
          %3159 = vst [vmem:[%s251 + $0x184] sm:$0xf] %v2903
          %3160 = vst [vmem:[%s251 + $0x188] sm:$0xf] %v2904
          %3161 = vst [vmem:[%s251 + $0x18c] sm:$0xf] %v2905
          %3162 = vst [vmem:[%s251 + $0x190] sm:$0xf] %v2906
          %3163 = vst [vmem:[%s251 + $0x194] sm:$0xf] %v2907
          %3164 = vst [vmem:[%s251 + $0x198] sm:$0xf] %v2908
          %3165 = vst [vmem:[%s251 + $0x19c] sm:$0xf] %v2909
          %3166 = vst [vmem:[%s251 + $0x1a0] sm:$0xf] %v2910
          %3167 = vst [vmem:[%s251 + $0x1a4] sm:$0xf] %v2911
          %3168 = vst [vmem:[%s251 + $0x1a8] sm:$0xf] %v2912
          %3169 = vst [vmem:[%s251 + $0x1ac] sm:$0xf] %v2913
          %3170 = vst [vmem:[%s251 + $0x1b0] sm:$0xf] %v2914
          %3171 = vst [vmem:[%s251 + $0x1b4] sm:$0xf] %v2915
          %3172 = vst [vmem:[%s251 + $0x1b8] sm:$0xf] %v2916
          %3173 = vst [vmem:[%s251 + $0x1bc] sm:$0xf] %v2917
          %3174 = vst [vmem:[%s251 + $0x1c0] sm:$0xf] %v2918
          %3175 = vst [vmem:[%s251 + $0x1c4] sm:$0xf] %v2919
          %3176 = vst [vmem:[%s251 + $0x1c8] sm:$0xf] %v2920
          %3177 = vst [vmem:[%s251 + $0x1cc] sm:$0xf] %v2921
          %3178 = vst [vmem:[%s251 + $0x1d0] sm:$0xf] %v2922
          %3179 = vst [vmem:[%s251 + $0x1d4] sm:$0xf] %v2923
          %3180 = vst [vmem:[%s251 + $0x1d8] sm:$0xf] %v2924
          %3181 = vst [vmem:[%s251 + $0x1dc] sm:$0xf] %v2925
          %3182 = vst [vmem:[%s251 + $0x1e0] sm:$0xf] %v2926
          %3183 = vst [vmem:[%s251 + $0x1e4] sm:$0xf] %v2927
          %3184 = vst [vmem:[%s251 + $0x1e8] sm:$0xf] %v2928
          %3185 = vst [vmem:[%s251 + $0x1ec] sm:$0xf] %v2929
          %3186 = vst [vmem:[%s251 + $0x1f0] sm:$0xf] %v2930
          %3187 = vst [vmem:[%s251 + $0x1f4] sm:$0xf] %v2931
          %3188 = vst [vmem:[%s251 + $0x1f8] sm:$0xf] %v2932
          %3189 = vst [vmem:[%s251 + $0x1fc] sm:$0xf] %v2933
        $region48: #{tpu_custom_call.1} parent=31 // pred_fallthru
          _
        %s3190 = sand.u32 %s132, 1
        %s3191 = scalar_lea.sflag [#allocation5], %s3190
        %s3192 = sand.u32 %s132, 1
        %s3193 = smul.addr %s3192, 512
        %s3194 = scalar_lea.vmem [#allocation8], %s3193
        // Predicated region
        $region49: #{tpu_custom_call.1} parent=31 // pred_check
          %p3195 = pneg %p142
        $region50: #{tpu_custom_call.1} parent=31 // pred_check_branch
          %3197 = sbr.rel (%p3195) target = $region52
        $region51: #{tpu_custom_call.1} parent=31 // pred_region
          %s3198 = smul.u32 128, %s26
          %s3200 = ssub.s32 8192, 8192
          %3201 = vsyncadd %s3191, %s3200
          %s3202 = sadd.s32 %s27, %s3198
          %s3203 = smul.addr %s3202, 64
          %s3204 = scalar_lea.hbm %s3, %s3203
          %s3205 = sshll.u32 %s3194, 4
          %s3206 = int_to_ptr.vmem [resolvable:$true] %s3205
          %3211 = dma.vmem_to_hbm [thread:$0]  %s3206, 8192, %s3204, %s3191, 64, 64, 4
        $region52: #{tpu_custom_call.1} parent=31 // pred_fallthru
          _
      $region32: #{tpu_custom_call.1} parent=5 // pred_fallthru
        _
      %p3212 = scmp.le.s32.totalorder 2, %s16
      // Predicated region
      $region53: #{tpu_custom_call.1} parent=5 // pred_check
        %p3213 = pneg %p3212
      $region54: #{tpu_custom_call.1} parent=5 // pred_check_branch
        %3215 = sbr.rel (%p3213) target = $region56
      $region55: #{tpu_custom_call.1} parent=5 // pred_region
        %s3216 = ssub.s32 %s16, 2
        // Predicated region
        $region57: #{tpu_custom_call.1} parent=55 // pred_check
          %p3217 = pneg %p148
        $region58: #{tpu_custom_call.1} parent=55 // pred_check_branch
          %3219 = sbr.rel (%p3217) target = $region60
        $region59: #{tpu_custom_call.1} parent=55 // pred_region
          %s3220 = sand.u32 %s133, 1
          %s3221 = scalar_lea.sflag [#allocation5], %s3220
          %s3222 = sand.u32 %s133, 1
          %s3223 = smul.addr %s3222, 512
          %s3224 = scalar_lea.vmem [#allocation8], %s3223
          %3225 = dma.done %s3221, 8192
        $region60: #{tpu_custom_call.1} parent=55 // pred_fallthru
          _
      $region56: #{tpu_custom_call.1} parent=5 // pred_fallthru
        _
    $region6: #{tpu_custom_call.1} parent=1 // loop_footer
      %s20 = sadd.s32 1, %s16
    $region7: #{tpu_custom_call.1} parent=1 // loop_footer_branch
      %15 = sbr.rel target = $region3
    $region8: #{tpu_custom_call.1} parent=1 // loop_exit
      _
    %3226 = vsyncpa [#allocation4], 1
    %s3227 = scalar_lea.sflag [#allocation4], 1
    %3228 = vsyncpa %s3227, 1
    %3229 = vsyncpa [#allocation7], 1
    %3230 = vsyncpa [#allocation5], 1
    %s3231 = scalar_lea.sflag [#allocation5], 1
    %3232 = vsyncpa %s3231, 1

</llo_original>
